<compile_context>
chip_gen: v6e
topology: v6e:2x2x1
jax: 0.10.0
libtpu: 0.0.40
codegen_flags: <defaults>
</compile_context>

<pallas_src>
import math

import jax
import jax.numpy as jnp
from jax.experimental import pallas as pl
from jax.experimental.pallas import tpu as pltpu

# ----------------------------- config ---------------------------------------
HIDDEN = 128
N_HEADS = 2
HEAD_DIM = HIDDEN // N_HEADS
INTERMEDIATE = 256
N_LAYERS = 2
VOCAB = 96
TYPE_VOCAB = 2
MAX_POS = 64
LN_EPS = 1e-12
ATTN_SCALE = 1.0 / math.sqrt(HEAD_DIM)
GELU_C = math.sqrt(2.0 / math.pi)


# ----------------------------- in-kernel helpers -----------------------------
def _layernorm(x, g, b):
    """LayerNorm over the last dim, f32 math."""
    mu = jnp.mean(x, axis=-1, keepdims=True)
    xc = x - mu
    var = jnp.mean(xc * xc, axis=-1, keepdims=True)
    return xc * jax.lax.rsqrt(var + LN_EPS) * g + b


def _gelu(x):
    # TODO(synk): tanh-approx GELU (EUP tanh slot); PyTorch default is erf GELU.
    return 0.5 * x * (1.0 + jnp.tanh(GELU_C * (x + 0.044715 * x * x * x)))


# ----------------------------- fully fused forward kernel --------------------
def _fused_forward_kernel(x_ref, am_ref, embg_ref, embb_ref,
                          wqkv_ref, bqkv_ref, wo_ref, bo_ref,
                          ln1g_ref, ln1b_ref, w1_ref, b1_ref,
                          w2_ref, b2_ref, ln2g_ref, ln2b_ref,
                          pw_ref, pb_ref, cw_ref, cb_ref, o_ref):
    am = am_ref[0]                                      # (M, M) additive mask
    # --- embedding LayerNorm (folded in; input is the raw embedding sum) ---
    x = _layernorm(x_ref[...].astype(jnp.float32), embg_ref[...], embb_ref[...])

    # --- encoder layers, unrolled (N_LAYERS = 2), all VMEM-resident ---------
    for l in range(N_LAYERS):
        # fused Q|K|V projection: one wide MXU matmul (K=128, N=384, bf16)
        qkv = jnp.dot(x.astype(jnp.bfloat16), wqkv_ref[l],
                      preferred_element_type=jnp.float32) + bqkv_ref[l]  # (M,3H)

        # block-diagonal multi-head attention over all sequences in the slab.
        # Per-head output projection (ctx_h @ wo_h) summed -> no lane concat.
        attn = bo_ref[l]                                                  # (1,H)
        for h in range(N_HEADS):
            lo = h * HEAD_DIM
            qh = qkv[:, lo:lo + HEAD_DIM].astype(jnp.bfloat16)
            kh = qkv[:, HIDDEN + lo:HIDDEN + lo + HEAD_DIM].astype(jnp.bfloat16)
            vh = qkv[:, 2 * HIDDEN + lo:2 * HIDDEN + lo + HEAD_DIM].astype(jnp.bfloat16)
            # ATTN_SCALE already folded into the Q columns of wqkv.
            s = jax.lax.dot_general(qh, kh, (((1,), (1,)), ((), ())),
                                    preferred_element_type=jnp.float32)  # (M,M)
            s = s + am
            s = s - jnp.max(s, axis=-1, keepdims=True)
            p = jnp.exp(s)
            p = p * pl.reciprocal(jnp.sum(p, axis=-1, keepdims=True), approx=True)
            ctx = jnp.dot(p.astype(jnp.bfloat16), vh,
                          preferred_element_type=jnp.float32)             # (M,dh)
            attn = attn + jnp.dot(ctx.astype(jnp.bfloat16),
                                  wo_ref[l, lo:lo + HEAD_DIM, :],
                                  preferred_element_type=jnp.float32)     # (M,H)

        x = _layernorm(attn + x, ln1g_ref[l], ln1b_ref[l])

        # FFN: w1 + GELU, w2, residual + LN2
        h1 = _gelu(jnp.dot(x.astype(jnp.bfloat16), w1_ref[l],
                           preferred_element_type=jnp.float32) + b1_ref[l])
        ffn = jnp.dot(h1.astype(jnp.bfloat16), w2_ref[l],
                      preferred_element_type=jnp.float32) + b2_ref[l]
        x = _layernorm(ffn + x, ln2g_ref[l], ln2b_ref[l])

    # --- pooler(tanh dense) + Linear(H -> 1), computed on all resident rows;
    #     CLS rows are selected by a trivial XLA slice of the tiny output. ----
    pooled = jnp.tanh(jnp.dot(x.astype(jnp.bfloat16), pw_ref[...],
                              preferred_element_type=jnp.float32) + pb_ref[...])
    logit = jnp.sum(pooled * cw_ref[...], axis=-1, keepdims=True) + cb_ref[...]
    o_ref[...] = logit.astype(o_ref.dtype)


def fused_forward(emb_flat, add_mask, params):
    total, H = emb_flat.shape
    G = add_mask.shape[0]          # grid size (2 -> both v7x TensorCores)
    M = total // G                 # rows per grid step
    rep2 = lambda i: (0, 0)
    rep3 = lambda i: (0, 0, 0)
    return pl.pallas_call(
        _fused_forward_kernel,
        out_shape=jax.ShapeDtypeStruct((total, 1), jnp.float32),
        grid=(G,),
        in_specs=[
            pl.BlockSpec((M, H), lambda i: (i, 0)),             # emb slab
            pl.BlockSpec((1, M, M), lambda i: (i, 0, 0)),       # block-diag mask
            pl.BlockSpec((1, H), rep2),                         # emb LN gamma
            pl.BlockSpec((1, H), rep2),                         # emb LN beta
            pl.BlockSpec((N_LAYERS, H, 3 * H), rep3),           # wqkv (bf16)
            pl.BlockSpec((N_LAYERS, 1, 3 * H), rep3),           # bqkv
            pl.BlockSpec((N_LAYERS, H, H), rep3),               # wo (bf16)
            pl.BlockSpec((N_LAYERS, 1, H), rep3),               # bo
            pl.BlockSpec((N_LAYERS, 1, H), rep3),               # ln1_g
            pl.BlockSpec((N_LAYERS, 1, H), rep3),               # ln1_b
            pl.BlockSpec((N_LAYERS, H, INTERMEDIATE), rep3),    # w1 (bf16)
            pl.BlockSpec((N_LAYERS, 1, INTERMEDIATE), rep3),    # b1
            pl.BlockSpec((N_LAYERS, INTERMEDIATE, H), rep3),    # w2 (bf16)
            pl.BlockSpec((N_LAYERS, 1, H), rep3),               # b2
            pl.BlockSpec((N_LAYERS, 1, H), rep3),               # ln2_g
            pl.BlockSpec((N_LAYERS, 1, H), rep3),               # ln2_b
            pl.BlockSpec((H, H), rep2),                         # pooler W (bf16)
            pl.BlockSpec((1, H), rep2),                         # pooler b
            pl.BlockSpec((1, H), rep2),                         # classifier row
            pl.BlockSpec((1, 1), rep2),                         # classifier bias
        ],
        out_specs=pl.BlockSpec((M, 1), lambda i: (i, 0)),
        compiler_params=pltpu.CompilerParams(dimension_semantics=("parallel",)),
    )(emb_flat, add_mask,
      params["emb_ln_g"], params["emb_ln_b"],
      params["wqkv"], params["bqkv"], params["wo"], params["bo"],
      params["ln1_g"], params["ln1_b"], params["w1"], params["b1"],
      params["w2"], params["b2"], params["ln2_g"], params["ln2_b"],
      params["pool_w"], params["pool_b"], params["cls_w"], params["cls_b"])


# ----------------------------- parameter init --------------------------------
def init_params(key):
    def nrm(k, shape, std=0.02):
        return jax.random.normal(k, shape, jnp.float32) * std

    keys = iter(jax.random.split(key, 64))
    wqkv, bqkv, wo, bo = [], [], [], []
    ln1g, ln1b, w1, b1, w2, b2, ln2g, ln2b = [], [], [], [], [], [], [], []
    for _ in range(N_LAYERS):
        wq = nrm(next(keys), (HIDDEN, HIDDEN)) * ATTN_SCALE   # fold 1/sqrt(dh)
        wk = nrm(next(keys), (HIDDEN, HIDDEN))
        wv = nrm(next(keys), (HIDDEN, HIDDEN))
        wqkv.append(jnp.concatenate([wq, wk, wv], axis=1))
        bqkv.append(jnp.zeros((1, 3 * HIDDEN), jnp.float32))
        wo.append(nrm(next(keys), (HIDDEN, HIDDEN)))
        bo.append(jnp.zeros((1, HIDDEN), jnp.float32))
        ln1g.append(jnp.ones((1, HIDDEN), jnp.float32))
        ln1b.append(jnp.zeros((1, HIDDEN), jnp.float32))
        w1.append(nrm(next(keys), (HIDDEN, INTERMEDIATE)))
        b1.append(jnp.zeros((1, INTERMEDIATE), jnp.float32))
        w2.append(nrm(next(keys), (INTERMEDIATE, HIDDEN)))
        b2.append(jnp.zeros((1, HIDDEN), jnp.float32))
        ln2g.append(jnp.ones((1, HIDDEN), jnp.float32))
        ln2b.append(jnp.zeros((1, HIDDEN), jnp.float32))

    stack = lambda xs: jnp.stack(xs, axis=0)
    return {
        "word_emb": nrm(next(keys), (VOCAB, HIDDEN)),
        "pos_emb": nrm(next(keys), (MAX_POS, HIDDEN)),
        "type_emb": nrm(next(keys), (TYPE_VOCAB, HIDDEN)),
        "emb_ln_g": jnp.ones((1, HIDDEN), jnp.float32),
        "emb_ln_b": jnp.zeros((1, HIDDEN), jnp.float32),
        "wqkv": stack(wqkv).astype(jnp.bfloat16),
        "bqkv": stack(bqkv),
        "wo": stack(wo).astype(jnp.bfloat16),
        "bo": stack(bo),
        "ln1_g": stack(ln1g), "ln1_b": stack(ln1b),
        "w1": stack(w1).astype(jnp.bfloat16), "b1": stack(b1),
        "w2": stack(w2).astype(jnp.bfloat16), "b2": stack(b2),
        "ln2_g": stack(ln2g), "ln2_b": stack(ln2b),
        "pool_w": nrm(next(keys), (HIDDEN, HIDDEN)).astype(jnp.bfloat16),
        "pool_b": jnp.zeros((1, HIDDEN), jnp.float32),
        "cls_w": nrm(next(keys), (1, HIDDEN)),
        "cls_b": jnp.zeros((1, 1), jnp.float32),
    }


# ----------------------------- forward pass ----------------------------------
@jax.jit
def bert_pair_pro_forward(params, input_ids, attention_mask, token_type_ids):
    B, N, S = input_ids.shape
    BN = B * N
    ids = input_ids.reshape(BN, S)
    mask = attention_mask.reshape(BN, S).astype(jnp.float32)
    ttids = token_type_ids.reshape(BN, S)

    # --- embeddings (table gathers stay in XLA; adds fuse into the gather) ---
    emb = (jnp.take(params["word_emb"], ids, axis=0)
           + params["pos_emb"][:S][None, :, :]
           + jnp.take(params["type_emb"], ttids, axis=0))          # (BN, S, H)
    emb_flat = emb.reshape(BN * S, HIDDEN)

    # grid split: 2-wide parallel axis when possible (v7x dual TensorCores)
    G = 2 if BN % 2 == 0 else 1
    M = (BN // G) * S

    # block-diagonal additive mask: 0 where query/key share a sequence AND the
    # key is not padded, -1e4 elsewhere; computed once for all layers/heads.
    seq_ids = jnp.arange(M) // S
    same_seq = (seq_ids[:, None] == seq_ids[None, :]).astype(jnp.float32)  # (M,M)
    key_valid = mask.reshape(G, 1, M)                                       # (G,1,M)
    add_mask = (1.0 - same_seq[None, :, :] * key_valid) * -10000.0          # (G,M,M)

    # --- single fused kernel: emb LN + 2 encoder layers + pooler + classifier
    logits_all = fused_forward(emb_flat, add_mask, params)          # (BN*S, 1)

    # CLS logits are rows 0, S, 2S, ... : cheap XLA slice of 4 numbers.
    return logits_all.reshape(BN, S)[:, 0].reshape(B, N)


# ----------------------------- main ------------------------------------------
if __name__ == "__main__":
    key = jax.random.PRNGKey(0)
    k_param, k_ids, k_tt = jax.random.split(key, 3)

    B, N, S = 2, 2, 16
    params = init_params(k_param)

    input_ids = jax.random.randint(k_ids, (B, N, S), 0, VOCAB, dtype=jnp.int32)
    token_type_ids = jax.random.randint(k_tt, (B, N, S), 0, TYPE_VOCAB,
                                        dtype=jnp.int32)
    # attention_mask: 1s with a few trailing pad positions masked out.
    attention_mask = jnp.ones((B, N, S), jnp.int32).at[:, :, S - 3:].set(0)

    out = bert_pair_pro_forward(params, input_ids, attention_mask, token_type_ids)
    out = jax.block_until_ready(out)
    assert out.shape == (B, N), out.shape
    assert bool(jnp.all(jnp.isfinite(out)))
    print("KERNEL_OK")
</pallas_src>

<mosaic_0001>
module attributes {stable_mosaic.version = 11 : i64} {
  func.func @_fused_forward_kernel(%arg0: i32, %arg1: memref<32x128xf32, #tpu.memory_space<vmem>>, %arg2: memref<1x32x32xf32, #tpu.memory_space<vmem>>, %arg3: memref<1x128xf32, #tpu.memory_space<vmem>>, %arg4: memref<1x128xf32, #tpu.memory_space<vmem>>, %arg5: memref<2x128x384xbf16, #tpu.memory_space<vmem>>, %arg6: memref<2x1x384xf32, #tpu.memory_space<vmem>>, %arg7: memref<2x128x128xbf16, #tpu.memory_space<vmem>>, %arg8: memref<2x1x128xf32, #tpu.memory_space<vmem>>, %arg9: memref<2x1x128xf32, #tpu.memory_space<vmem>>, %arg10: memref<2x1x128xf32, #tpu.memory_space<vmem>>, %arg11: memref<2x128x256xbf16, #tpu.memory_space<vmem>>, %arg12: memref<2x1x256xf32, #tpu.memory_space<vmem>>, %arg13: memref<2x256x128xbf16, #tpu.memory_space<vmem>>, %arg14: memref<2x1x128xf32, #tpu.memory_space<vmem>>, %arg15: memref<2x1x128xf32, #tpu.memory_space<vmem>>, %arg16: memref<2x1x128xf32, #tpu.memory_space<vmem>>, %arg17: memref<128x128xbf16, #tpu.memory_space<vmem>>, %arg18: memref<1x128xf32, #tpu.memory_space<vmem>>, %arg19: memref<1x128xf32, #tpu.memory_space<vmem>>, %arg20: memref<1x1xf32, #tpu.memory_space<vmem>>, %arg21: memref<32x1xf32, #tpu.memory_space<vmem>>) attributes {dimension_semantics = [#tpu.dimension_semantics<parallel>], iteration_bounds = array<i64: 2>, scalar_prefetch = 0 : i64, scratch_operands = 0 : i64, tpu.core_type = #tpu.core_type<tc>, window_params = [{transform_indices = @transform_0, window_bounds = array<i64: 32, 128>}, {transform_indices = @transform_1, window_bounds = array<i64: 1, 32, 32>}, {pipeline_mode = #tpu.pipeline_mode<synchronous>, transform_indices = @transform_2, window_bounds = array<i64: 1, 128>}, {pipeline_mode = #tpu.pipeline_mode<synchronous>, transform_indices = @transform_3, window_bounds = array<i64: 1, 128>}, {pipeline_mode = #tpu.pipeline_mode<synchronous>, transform_indices = @transform_4, window_bounds = array<i64: 2, 128, 384>}, {pipeline_mode = #tpu.pipeline_mode<synchronous>, transform_indices = @transform_5, window_bounds = array<i64: 2, 1, 384>}, {pipeline_mode = #tpu.pipeline_mode<synchronous>, transform_indices = @transform_6, window_bounds = array<i64: 2, 128, 128>}, {pipeline_mode = #tpu.pipeline_mode<synchronous>, transform_indices = @transform_7, window_bounds = array<i64: 2, 1, 128>}, {pipeline_mode = #tpu.pipeline_mode<synchronous>, transform_indices = @transform_8, window_bounds = array<i64: 2, 1, 128>}, {pipeline_mode = #tpu.pipeline_mode<synchronous>, transform_indices = @transform_9, window_bounds = array<i64: 2, 1, 128>}, {pipeline_mode = #tpu.pipeline_mode<synchronous>, transform_indices = @transform_10, window_bounds = array<i64: 2, 128, 256>}, {pipeline_mode = #tpu.pipeline_mode<synchronous>, transform_indices = @transform_11, window_bounds = array<i64: 2, 1, 256>}, {pipeline_mode = #tpu.pipeline_mode<synchronous>, transform_indices = @transform_12, window_bounds = array<i64: 2, 256, 128>}, {pipeline_mode = #tpu.pipeline_mode<synchronous>, transform_indices = @transform_13, window_bounds = array<i64: 2, 1, 128>}, {pipeline_mode = #tpu.pipeline_mode<synchronous>, transform_indices = @transform_14, window_bounds = array<i64: 2, 1, 128>}, {pipeline_mode = #tpu.pipeline_mode<synchronous>, transform_indices = @transform_15, window_bounds = array<i64: 2, 1, 128>}, {pipeline_mode = #tpu.pipeline_mode<synchronous>, transform_indices = @transform_16, window_bounds = array<i64: 128, 128>}, {pipeline_mode = #tpu.pipeline_mode<synchronous>, transform_indices = @transform_17, window_bounds = array<i64: 1, 128>}, {pipeline_mode = #tpu.pipeline_mode<synchronous>, transform_indices = @transform_18, window_bounds = array<i64: 1, 128>}, {pipeline_mode = #tpu.pipeline_mode<synchronous>, transform_indices = @transform_19, window_bounds = array<i64: 1, 1>}, {transform_indices = @transform_20, window_bounds = array<i64: 32, 1>}]} {
    %c0 = arith.constant 0 : index
    %c0_0 = arith.constant 0 : index
    %c0_1 = arith.constant 0 : index
    %0 = vector.load %arg2[%c0, %c0_0, %c0_1] : memref<1x32x32xf32, #tpu.memory_space<vmem>>, vector<1x32x32xf32>
    %1 = vector.shape_cast %0 : vector<1x32x32xf32> to vector<32x32xf32>
    %c0_2 = arith.constant 0 : index
    %c0_3 = arith.constant 0 : index
    %2 = vector.load %arg1[%c0_2, %c0_3] : memref<32x128xf32, #tpu.memory_space<vmem>>, vector<32x128xf32>
    %c0_4 = arith.constant 0 : index
    %c0_5 = arith.constant 0 : index
    %3 = vector.load %arg3[%c0_4, %c0_5] : memref<1x128xf32, #tpu.memory_space<vmem>>, vector<1x128xf32>
    %c0_6 = arith.constant 0 : index
    %c0_7 = arith.constant 0 : index
    %4 = vector.load %arg4[%c0_6, %c0_7] : memref<1x128xf32, #tpu.memory_space<vmem>>, vector<1x128xf32>
    %cst = arith.constant dense<0.000000e+00> : vector<32xf32>
    %5 = vector.multi_reduction <add>, %2, %cst [1] : vector<32x128xf32> to vector<32xf32>
    %6 = vector.shape_cast %5 : vector<32xf32> to vector<32x1xf32>
    %cst_8 = arith.constant 1.280000e+02 : f32
    %7 = vector.broadcast %cst_8 : f32 to vector<32x1xf32>
    %8 = arith.divf %6, %7 : vector<32x1xf32>
    %9 = vector.broadcast %8 : vector<32x1xf32> to vector<32x128xf32>
    %10 = arith.subf %2, %9 : vector<32x128xf32>
    %11 = arith.mulf %10, %10 : vector<32x128xf32>
    %cst_9 = arith.constant dense<0.000000e+00> : vector<32xf32>
    %12 = vector.multi_reduction <add>, %11, %cst_9 [1] : vector<32x128xf32> to vector<32xf32>
    %13 = vector.shape_cast %12 : vector<32xf32> to vector<32x1xf32>
    %cst_10 = arith.constant 1.280000e+02 : f32
    %14 = vector.broadcast %cst_10 : f32 to vector<32x1xf32>
    %15 = arith.divf %13, %14 : vector<32x1xf32>
    %cst_11 = arith.constant 9.99999996E-13 : f32
    %16 = vector.broadcast %cst_11 : f32 to vector<32x1xf32>
    %17 = arith.addf %15, %16 : vector<32x1xf32>
    %18 = math.rsqrt %17 : vector<32x1xf32>
    %19 = vector.broadcast %18 : vector<32x1xf32> to vector<32x128xf32>
    %20 = arith.mulf %10, %19 : vector<32x128xf32>
    %21 = vector.broadcast %3 : vector<1x128xf32> to vector<32x128xf32>
    %22 = arith.mulf %20, %21 : vector<32x128xf32>
    %23 = vector.broadcast %4 : vector<1x128xf32> to vector<32x128xf32>
    %24 = arith.addf %22, %23 : vector<32x128xf32>
    %25 = arith.truncf %24 : vector<32x128xf32> to vector<32x128xbf16>
    %c0_12 = arith.constant 0 : index
    %c0_13 = arith.constant 0 : index
    %c0_14 = arith.constant 0 : index
    %26 = vector.load %arg5[%c0_12, %c0_13, %c0_14] : memref<2x128x384xbf16, #tpu.memory_space<vmem>>, vector<1x128x384xbf16>
    %27 = vector.shape_cast %26 : vector<1x128x384xbf16> to vector<128x384xbf16>
    %cst_15 = arith.constant dense<0.000000e+00> : vector<32x384xf32>
    %28 = tpu.matmul %25, %27, %cst_15 {dimension_numbers = #tpu.dot_dimension_numbers<[1], [0], [0], [1], [0, 0, 1, 1], [], []>} : vector<32x128xbf16>, vector<128x384xbf16>, vector<32x384xf32> -> vector<32x384xf32>
    %c0_16 = arith.constant 0 : index
    %c0_17 = arith.constant 0 : index
    %c0_18 = arith.constant 0 : index
    %29 = vector.load %arg6[%c0_16, %c0_17, %c0_18] : memref<2x1x384xf32, #tpu.memory_space<vmem>>, vector<1x1x384xf32>
    %30 = vector.shape_cast %29 : vector<1x1x384xf32> to vector<1x384xf32>
    %31 = vector.broadcast %30 : vector<1x384xf32> to vector<32x384xf32>
    %32 = arith.addf %28, %31 : vector<32x384xf32>
    %c0_19 = arith.constant 0 : index
    %c0_20 = arith.constant 0 : index
    %c0_21 = arith.constant 0 : index
    %33 = vector.load %arg8[%c0_19, %c0_20, %c0_21] : memref<2x1x128xf32, #tpu.memory_space<vmem>>, vector<1x1x128xf32>
    %34 = vector.shape_cast %33 : vector<1x1x128xf32> to vector<1x128xf32>
    %35 = vector.extract_strided_slice %32 {offsets = [0, 0], sizes = [32, 64], strides = [1, 1]} : vector<32x384xf32> to vector<32x64xf32>
    %36 = arith.truncf %35 : vector<32x64xf32> to vector<32x64xbf16>
    %37 = vector.extract_strided_slice %32 {offsets = [0, 128], sizes = [32, 64], strides = [1, 1]} : vector<32x384xf32> to vector<32x64xf32>
    %38 = arith.truncf %37 : vector<32x64xf32> to vector<32x64xbf16>
    %39 = vector.extract_strided_slice %32 {offsets = [0, 256], sizes = [32, 64], strides = [1, 1]} : vector<32x384xf32> to vector<32x64xf32>
    %40 = arith.truncf %39 : vector<32x64xf32> to vector<32x64xbf16>
    %cst_22 = arith.constant dense<0.000000e+00> : vector<32x32xf32>
    %41 = tpu.matmul %36, %38, %cst_22 {dimension_numbers = #tpu.dot_dimension_numbers<[1], [1], [0], [0], [0, 0, 1, 0], [], []>} : vector<32x64xbf16>, vector<32x64xbf16>, vector<32x32xf32> -> vector<32x32xf32>
    %42 = arith.addf %41, %1 : vector<32x32xf32>
    %cst_23 = arith.constant dense<0xFF800000> : vector<32xf32>
    %43 = vector.multi_reduction <maximumf>, %42, %cst_23 [1] : vector<32x32xf32> to vector<32xf32>
    %44 = vector.shape_cast %43 : vector<32xf32> to vector<32x1xf32>
    %45 = vector.broadcast %44 : vector<32x1xf32> to vector<32x32xf32>
    %46 = arith.subf %42, %45 : vector<32x32xf32>
    %47 = math.exp %46 : vector<32x32xf32>
    %cst_24 = arith.constant dense<0.000000e+00> : vector<32xf32>
    %48 = vector.multi_reduction <add>, %47, %cst_24 [1] : vector<32x32xf32> to vector<32xf32>
    %49 = vector.shape_cast %48 : vector<32xf32> to vector<32x1xf32>
    %50 = tpu.reciprocal %49 {approx = true} : vector<32x1xf32> -> vector<32x1xf32>
    %51 = vector.broadcast %50 : vector<32x1xf32> to vector<32x32xf32>
    %52 = arith.mulf %47, %51 : vector<32x32xf32>
    %53 = arith.truncf %52 : vector<32x32xf32> to vector<32x32xbf16>
    %cst_25 = arith.constant dense<0.000000e+00> : vector<32x64xf32>
    %54 = tpu.matmul %53, %40, %cst_25 {dimension_numbers = #tpu.dot_dimension_numbers<[1], [0], [0], [1], [0, 0, 1, 1], [], []>} : vector<32x32xbf16>, vector<32x64xbf16>, vector<32x64xf32> -> vector<32x64xf32>
    %55 = arith.truncf %54 : vector<32x64xf32> to vector<32x64xbf16>
    %c0_26 = arith.constant 0 : index
    %c0_27 = arith.constant 0 : index
    %c0_28 = arith.constant 0 : index
    %56 = vector.load %arg7[%c0_26, %c0_27, %c0_28] : memref<2x128x128xbf16, #tpu.memory_space<vmem>>, vector<1x64x128xbf16>
    %57 = vector.shape_cast %56 : vector<1x64x128xbf16> to vector<64x128xbf16>
    %cst_29 = arith.constant dense<0.000000e+00> : vector<32x128xf32>
    %58 = tpu.matmul %55, %57, %cst_29 {dimension_numbers = #tpu.dot_dimension_numbers<[1], [0], [0], [1], [0, 0, 1, 1], [], []>} : vector<32x64xbf16>, vector<64x128xbf16>, vector<32x128xf32> -> vector<32x128xf32>
    %59 = vector.broadcast %34 : vector<1x128xf32> to vector<32x128xf32>
    %60 = arith.addf %59, %58 : vector<32x128xf32>
    %61 = vector.extract_strided_slice %32 {offsets = [0, 64], sizes = [32, 64], strides = [1, 1]} : vector<32x384xf32> to vector<32x64xf32>
    %62 = arith.truncf %61 : vector<32x64xf32> to vector<32x64xbf16>
    %63 = vector.extract_strided_slice %32 {offsets = [0, 192], sizes = [32, 64], strides = [1, 1]} : vector<32x384xf32> to vector<32x64xf32>
    %64 = arith.truncf %63 : vector<32x64xf32> to vector<32x64xbf16>
    %65 = vector.extract_strided_slice %32 {offsets = [0, 320], sizes = [32, 64], strides = [1, 1]} : vector<32x384xf32> to vector<32x64xf32>
    %66 = arith.truncf %65 : vector<32x64xf32> to vector<32x64xbf16>
    %cst_30 = arith.constant dense<0.000000e+00> : vector<32x32xf32>
    %67 = tpu.matmul %62, %64, %cst_30 {dimension_numbers = #tpu.dot_dimension_numbers<[1], [1], [0], [0], [0, 0, 1, 0], [], []>} : vector<32x64xbf16>, vector<32x64xbf16>, vector<32x32xf32> -> vector<32x32xf32>
    %68 = arith.addf %67, %1 : vector<32x32xf32>
    %cst_31 = arith.constant dense<0xFF800000> : vector<32xf32>
    %69 = vector.multi_reduction <maximumf>, %68, %cst_31 [1] : vector<32x32xf32> to vector<32xf32>
    %70 = vector.shape_cast %69 : vector<32xf32> to vector<32x1xf32>
    %71 = vector.broadcast %70 : vector<32x1xf32> to vector<32x32xf32>
    %72 = arith.subf %68, %71 : vector<32x32xf32>
    %73 = math.exp %72 : vector<32x32xf32>
    %cst_32 = arith.constant dense<0.000000e+00> : vector<32xf32>
    %74 = vector.multi_reduction <add>, %73, %cst_32 [1] : vector<32x32xf32> to vector<32xf32>
    %75 = vector.shape_cast %74 : vector<32xf32> to vector<32x1xf32>
    %76 = tpu.reciprocal %75 {approx = true} : vector<32x1xf32> -> vector<32x1xf32>
    %77 = vector.broadcast %76 : vector<32x1xf32> to vector<32x32xf32>
    %78 = arith.mulf %73, %77 : vector<32x32xf32>
    %79 = arith.truncf %78 : vector<32x32xf32> to vector<32x32xbf16>
    %cst_33 = arith.constant dense<0.000000e+00> : vector<32x64xf32>
    %80 = tpu.matmul %79, %66, %cst_33 {dimension_numbers = #tpu.dot_dimension_numbers<[1], [0], [0], [1], [0, 0, 1, 1], [], []>} : vector<32x32xbf16>, vector<32x64xbf16>, vector<32x64xf32> -> vector<32x64xf32>
    %81 = arith.truncf %80 : vector<32x64xf32> to vector<32x64xbf16>
    %c0_34 = arith.constant 0 : index
    %c64 = arith.constant 64 : index
    %c0_35 = arith.constant 0 : index
    %82 = vector.load %arg7[%c0_34, %c64, %c0_35] : memref<2x128x128xbf16, #tpu.memory_space<vmem>>, vector<1x64x128xbf16>
    %83 = vector.shape_cast %82 : vector<1x64x128xbf16> to vector<64x128xbf16>
    %cst_36 = arith.constant dense<0.000000e+00> : vector<32x128xf32>
    %84 = tpu.matmul %81, %83, %cst_36 {dimension_numbers = #tpu.dot_dimension_numbers<[1], [0], [0], [1], [0, 0, 1, 1], [], []>} : vector<32x64xbf16>, vector<64x128xbf16>, vector<32x128xf32> -> vector<32x128xf32>
    %85 = arith.addf %60, %84 : vector<32x128xf32>
    %86 = arith.addf %85, %24 : vector<32x128xf32>
    %c0_37 = arith.constant 0 : index
    %c0_38 = arith.constant 0 : index
    %c0_39 = arith.constant 0 : index
    %87 = vector.load %arg9[%c0_37, %c0_38, %c0_39] : memref<2x1x128xf32, #tpu.memory_space<vmem>>, vector<1x1x128xf32>
    %88 = vector.shape_cast %87 : vector<1x1x128xf32> to vector<1x128xf32>
    %c0_40 = arith.constant 0 : index
    %c0_41 = arith.constant 0 : index
    %c0_42 = arith.constant 0 : index
    %89 = vector.load %arg10[%c0_40, %c0_41, %c0_42] : memref<2x1x128xf32, #tpu.memory_space<vmem>>, vector<1x1x128xf32>
    %90 = vector.shape_cast %89 : vector<1x1x128xf32> to vector<1x128xf32>
    %cst_43 = arith.constant dense<0.000000e+00> : vector<32xf32>
    %91 = vector.multi_reduction <add>, %86, %cst_43 [1] : vector<32x128xf32> to vector<32xf32>
    %92 = vector.shape_cast %91 : vector<32xf32> to vector<32x1xf32>
    %cst_44 = arith.constant 1.280000e+02 : f32
    %93 = vector.broadcast %cst_44 : f32 to vector<32x1xf32>
    %94 = arith.divf %92, %93 : vector<32x1xf32>
    %95 = vector.broadcast %94 : vector<32x1xf32> to vector<32x128xf32>
    %96 = arith.subf %86, %95 : vector<32x128xf32>
    %97 = arith.mulf %96, %96 : vector<32x128xf32>
    %cst_45 = arith.constant dense<0.000000e+00> : vector<32xf32>
    %98 = vector.multi_reduction <add>, %97, %cst_45 [1] : vector<32x128xf32> to vector<32xf32>
    %99 = vector.shape_cast %98 : vector<32xf32> to vector<32x1xf32>
    %cst_46 = arith.constant 1.280000e+02 : f32
    %100 = vector.broadcast %cst_46 : f32 to vector<32x1xf32>
    %101 = arith.divf %99, %100 : vector<32x1xf32>
    %cst_47 = arith.constant 9.99999996E-13 : f32
    %102 = vector.broadcast %cst_47 : f32 to vector<32x1xf32>
    %103 = arith.addf %101, %102 : vector<32x1xf32>
    %104 = math.rsqrt %103 : vector<32x1xf32>
    %105 = vector.broadcast %104 : vector<32x1xf32> to vector<32x128xf32>
    %106 = arith.mulf %96, %105 : vector<32x128xf32>
    %107 = vector.broadcast %88 : vector<1x128xf32> to vector<32x128xf32>
    %108 = arith.mulf %106, %107 : vector<32x128xf32>
    %109 = vector.broadcast %90 : vector<1x128xf32> to vector<32x128xf32>
    %110 = arith.addf %108, %109 : vector<32x128xf32>
    %111 = arith.truncf %110 : vector<32x128xf32> to vector<32x128xbf16>
    %c0_48 = arith.constant 0 : index
    %c0_49 = arith.constant 0 : index
    %c0_50 = arith.constant 0 : index
    %112 = vector.load %arg11[%c0_48, %c0_49, %c0_50] : memref<2x128x256xbf16, #tpu.memory_space<vmem>>, vector<1x128x256xbf16>
    %113 = vector.shape_cast %112 : vector<1x128x256xbf16> to vector<128x256xbf16>
    %cst_51 = arith.constant dense<0.000000e+00> : vector<32x256xf32>
    %114 = tpu.matmul %111, %113, %cst_51 {dimension_numbers = #tpu.dot_dimension_numbers<[1], [0], [0], [1], [0, 0, 1, 1], [], []>} : vector<32x128xbf16>, vector<128x256xbf16>, vector<32x256xf32> -> vector<32x256xf32>
    %c0_52 = arith.constant 0 : index
    %c0_53 = arith.constant 0 : index
    %c0_54 = arith.constant 0 : index
    %115 = vector.load %arg12[%c0_52, %c0_53, %c0_54] : memref<2x1x256xf32, #tpu.memory_space<vmem>>, vector<1x1x256xf32>
    %116 = vector.shape_cast %115 : vector<1x1x256xf32> to vector<1x256xf32>
    %117 = vector.broadcast %116 : vector<1x256xf32> to vector<32x256xf32>
    %118 = arith.addf %114, %117 : vector<32x256xf32>
    %cst_55 = arith.constant 5.000000e-01 : f32
    %119 = vector.broadcast %cst_55 : f32 to vector<32x256xf32>
    %120 = arith.mulf %119, %118 : vector<32x256xf32>
    %cst_56 = arith.constant 4.471500e-02 : f32
    %121 = vector.broadcast %cst_56 : f32 to vector<32x256xf32>
    %122 = arith.mulf %121, %118 : vector<32x256xf32>
    %123 = arith.mulf %122, %118 : vector<32x256xf32>
    %124 = arith.mulf %123, %118 : vector<32x256xf32>
    %125 = arith.addf %118, %124 : vector<32x256xf32>
    %cst_57 = arith.constant 0.797884583 : f32
    %126 = vector.broadcast %cst_57 : f32 to vector<32x256xf32>
    %127 = arith.mulf %126, %125 : vector<32x256xf32>
    %128 = math.tanh %127 : vector<32x256xf32>
    %cst_58 = arith.constant 1.000000e+00 : f32
    %129 = vector.broadcast %cst_58 : f32 to vector<32x256xf32>
    %130 = arith.addf %129, %128 : vector<32x256xf32>
    %131 = arith.mulf %120, %130 : vector<32x256xf32>
    %132 = arith.truncf %131 : vector<32x256xf32> to vector<32x256xbf16>
    %c0_59 = arith.constant 0 : index
    %c0_60 = arith.constant 0 : index
    %c0_61 = arith.constant 0 : index
    %133 = vector.load %arg13[%c0_59, %c0_60, %c0_61] : memref<2x256x128xbf16, #tpu.memory_space<vmem>>, vector<1x256x128xbf16>
    %134 = vector.shape_cast %133 : vector<1x256x128xbf16> to vector<256x128xbf16>
    %cst_62 = arith.constant dense<0.000000e+00> : vector<32x128xf32>
    %135 = tpu.matmul %132, %134, %cst_62 {dimension_numbers = #tpu.dot_dimension_numbers<[1], [0], [0], [1], [0, 0, 1, 1], [], []>} : vector<32x256xbf16>, vector<256x128xbf16>, vector<32x128xf32> -> vector<32x128xf32>
    %c0_63 = arith.constant 0 : index
    %c0_64 = arith.constant 0 : index
    %c0_65 = arith.constant 0 : index
    %136 = vector.load %arg14[%c0_63, %c0_64, %c0_65] : memref<2x1x128xf32, #tpu.memory_space<vmem>>, vector<1x1x128xf32>
    %137 = vector.shape_cast %136 : vector<1x1x128xf32> to vector<1x128xf32>
    %138 = vector.broadcast %137 : vector<1x128xf32> to vector<32x128xf32>
    %139 = arith.addf %135, %138 : vector<32x128xf32>
    %140 = arith.addf %139, %110 : vector<32x128xf32>
    %c0_66 = arith.constant 0 : index
    %c0_67 = arith.constant 0 : index
    %c0_68 = arith.constant 0 : index
    %141 = vector.load %arg15[%c0_66, %c0_67, %c0_68] : memref<2x1x128xf32, #tpu.memory_space<vmem>>, vector<1x1x128xf32>
    %142 = vector.shape_cast %141 : vector<1x1x128xf32> to vector<1x128xf32>
    %c0_69 = arith.constant 0 : index
    %c0_70 = arith.constant 0 : index
    %c0_71 = arith.constant 0 : index
    %143 = vector.load %arg16[%c0_69, %c0_70, %c0_71] : memref<2x1x128xf32, #tpu.memory_space<vmem>>, vector<1x1x128xf32>
    %144 = vector.shape_cast %143 : vector<1x1x128xf32> to vector<1x128xf32>
    %cst_72 = arith.constant dense<0.000000e+00> : vector<32xf32>
    %145 = vector.multi_reduction <add>, %140, %cst_72 [1] : vector<32x128xf32> to vector<32xf32>
    %146 = vector.shape_cast %145 : vector<32xf32> to vector<32x1xf32>
    %cst_73 = arith.constant 1.280000e+02 : f32
    %147 = vector.broadcast %cst_73 : f32 to vector<32x1xf32>
    %148 = arith.divf %146, %147 : vector<32x1xf32>
    %149 = vector.broadcast %148 : vector<32x1xf32> to vector<32x128xf32>
    %150 = arith.subf %140, %149 : vector<32x128xf32>
    %151 = arith.mulf %150, %150 : vector<32x128xf32>
    %cst_74 = arith.constant dense<0.000000e+00> : vector<32xf32>
    %152 = vector.multi_reduction <add>, %151, %cst_74 [1] : vector<32x128xf32> to vector<32xf32>
    %153 = vector.shape_cast %152 : vector<32xf32> to vector<32x1xf32>
    %cst_75 = arith.constant 1.280000e+02 : f32
    %154 = vector.broadcast %cst_75 : f32 to vector<32x1xf32>
    %155 = arith.divf %153, %154 : vector<32x1xf32>
    %cst_76 = arith.constant 9.99999996E-13 : f32
    %156 = vector.broadcast %cst_76 : f32 to vector<32x1xf32>
    %157 = arith.addf %155, %156 : vector<32x1xf32>
    %158 = math.rsqrt %157 : vector<32x1xf32>
    %159 = vector.broadcast %158 : vector<32x1xf32> to vector<32x128xf32>
    %160 = arith.mulf %150, %159 : vector<32x128xf32>
    %161 = vector.broadcast %142 : vector<1x128xf32> to vector<32x128xf32>
    %162 = arith.mulf %160, %161 : vector<32x128xf32>
    %163 = vector.broadcast %144 : vector<1x128xf32> to vector<32x128xf32>
    %164 = arith.addf %162, %163 : vector<32x128xf32>
    %165 = arith.truncf %164 : vector<32x128xf32> to vector<32x128xbf16>
    %c1 = arith.constant 1 : index
    %c0_77 = arith.constant 0 : index
    %c0_78 = arith.constant 0 : index
    %166 = vector.load %arg5[%c1, %c0_77, %c0_78] : memref<2x128x384xbf16, #tpu.memory_space<vmem>>, vector<1x128x384xbf16>
    %167 = vector.shape_cast %166 : vector<1x128x384xbf16> to vector<128x384xbf16>
    %cst_79 = arith.constant dense<0.000000e+00> : vector<32x384xf32>
    %168 = tpu.matmul %165, %167, %cst_79 {dimension_numbers = #tpu.dot_dimension_numbers<[1], [0], [0], [1], [0, 0, 1, 1], [], []>} : vector<32x128xbf16>, vector<128x384xbf16>, vector<32x384xf32> -> vector<32x384xf32>
    %c1_80 = arith.constant 1 : index
    %c0_81 = arith.constant 0 : index
    %c0_82 = arith.constant 0 : index
    %169 = vector.load %arg6[%c1_80, %c0_81, %c0_82] : memref<2x1x384xf32, #tpu.memory_space<vmem>>, vector<1x1x384xf32>
    %170 = vector.shape_cast %169 : vector<1x1x384xf32> to vector<1x384xf32>
    %171 = vector.broadcast %170 : vector<1x384xf32> to vector<32x384xf32>
    %172 = arith.addf %168, %171 : vector<32x384xf32>
    %c1_83 = arith.constant 1 : index
    %c0_84 = arith.constant 0 : index
    %c0_85 = arith.constant 0 : index
    %173 = vector.load %arg8[%c1_83, %c0_84, %c0_85] : memref<2x1x128xf32, #tpu.memory_space<vmem>>, vector<1x1x128xf32>
    %174 = vector.shape_cast %173 : vector<1x1x128xf32> to vector<1x128xf32>
    %175 = vector.extract_strided_slice %172 {offsets = [0, 0], sizes = [32, 64], strides = [1, 1]} : vector<32x384xf32> to vector<32x64xf32>
    %176 = arith.truncf %175 : vector<32x64xf32> to vector<32x64xbf16>
    %177 = vector.extract_strided_slice %172 {offsets = [0, 128], sizes = [32, 64], strides = [1, 1]} : vector<32x384xf32> to vector<32x64xf32>
    %178 = arith.truncf %177 : vector<32x64xf32> to vector<32x64xbf16>
    %179 = vector.extract_strided_slice %172 {offsets = [0, 256], sizes = [32, 64], strides = [1, 1]} : vector<32x384xf32> to vector<32x64xf32>
    %180 = arith.truncf %179 : vector<32x64xf32> to vector<32x64xbf16>
    %cst_86 = arith.constant dense<0.000000e+00> : vector<32x32xf32>
    %181 = tpu.matmul %176, %178, %cst_86 {dimension_numbers = #tpu.dot_dimension_numbers<[1], [1], [0], [0], [0, 0, 1, 0], [], []>} : vector<32x64xbf16>, vector<32x64xbf16>, vector<32x32xf32> -> vector<32x32xf32>
    %182 = arith.addf %181, %1 : vector<32x32xf32>
    %cst_87 = arith.constant dense<0xFF800000> : vector<32xf32>
    %183 = vector.multi_reduction <maximumf>, %182, %cst_87 [1] : vector<32x32xf32> to vector<32xf32>
    %184 = vector.shape_cast %183 : vector<32xf32> to vector<32x1xf32>
    %185 = vector.broadcast %184 : vector<32x1xf32> to vector<32x32xf32>
    %186 = arith.subf %182, %185 : vector<32x32xf32>
    %187 = math.exp %186 : vector<32x32xf32>
    %cst_88 = arith.constant dense<0.000000e+00> : vector<32xf32>
    %188 = vector.multi_reduction <add>, %187, %cst_88 [1] : vector<32x32xf32> to vector<32xf32>
    %189 = vector.shape_cast %188 : vector<32xf32> to vector<32x1xf32>
    %190 = tpu.reciprocal %189 {approx = true} : vector<32x1xf32> -> vector<32x1xf32>
    %191 = vector.broadcast %190 : vector<32x1xf32> to vector<32x32xf32>
    %192 = arith.mulf %187, %191 : vector<32x32xf32>
    %193 = arith.truncf %192 : vector<32x32xf32> to vector<32x32xbf16>
    %cst_89 = arith.constant dense<0.000000e+00> : vector<32x64xf32>
    %194 = tpu.matmul %193, %180, %cst_89 {dimension_numbers = #tpu.dot_dimension_numbers<[1], [0], [0], [1], [0, 0, 1, 1], [], []>} : vector<32x32xbf16>, vector<32x64xbf16>, vector<32x64xf32> -> vector<32x64xf32>
    %195 = arith.truncf %194 : vector<32x64xf32> to vector<32x64xbf16>
    %c1_90 = arith.constant 1 : index
    %c0_91 = arith.constant 0 : index
    %c0_92 = arith.constant 0 : index
    %196 = vector.load %arg7[%c1_90, %c0_91, %c0_92] : memref<2x128x128xbf16, #tpu.memory_space<vmem>>, vector<1x64x128xbf16>
    %197 = vector.shape_cast %196 : vector<1x64x128xbf16> to vector<64x128xbf16>
    %cst_93 = arith.constant dense<0.000000e+00> : vector<32x128xf32>
    %198 = tpu.matmul %195, %197, %cst_93 {dimension_numbers = #tpu.dot_dimension_numbers<[1], [0], [0], [1], [0, 0, 1, 1], [], []>} : vector<32x64xbf16>, vector<64x128xbf16>, vector<32x128xf32> -> vector<32x128xf32>
    %199 = vector.broadcast %174 : vector<1x128xf32> to vector<32x128xf32>
    %200 = arith.addf %199, %198 : vector<32x128xf32>
    %201 = vector.extract_strided_slice %172 {offsets = [0, 64], sizes = [32, 64], strides = [1, 1]} : vector<32x384xf32> to vector<32x64xf32>
    %202 = arith.truncf %201 : vector<32x64xf32> to vector<32x64xbf16>
    %203 = vector.extract_strided_slice %172 {offsets = [0, 192], sizes = [32, 64], strides = [1, 1]} : vector<32x384xf32> to vector<32x64xf32>
    %204 = arith.truncf %203 : vector<32x64xf32> to vector<32x64xbf16>
    %205 = vector.extract_strided_slice %172 {offsets = [0, 320], sizes = [32, 64], strides = [1, 1]} : vector<32x384xf32> to vector<32x64xf32>
    %206 = arith.truncf %205 : vector<32x64xf32> to vector<32x64xbf16>
    %cst_94 = arith.constant dense<0.000000e+00> : vector<32x32xf32>
    %207 = tpu.matmul %202, %204, %cst_94 {dimension_numbers = #tpu.dot_dimension_numbers<[1], [1], [0], [0], [0, 0, 1, 0], [], []>} : vector<32x64xbf16>, vector<32x64xbf16>, vector<32x32xf32> -> vector<32x32xf32>
    %208 = arith.addf %207, %1 : vector<32x32xf32>
    %cst_95 = arith.constant dense<0xFF800000> : vector<32xf32>
    %209 = vector.multi_reduction <maximumf>, %208, %cst_95 [1] : vector<32x32xf32> to vector<32xf32>
    %210 = vector.shape_cast %209 : vector<32xf32> to vector<32x1xf32>
    %211 = vector.broadcast %210 : vector<32x1xf32> to vector<32x32xf32>
    %212 = arith.subf %208, %211 : vector<32x32xf32>
    %213 = math.exp %212 : vector<32x32xf32>
    %cst_96 = arith.constant dense<0.000000e+00> : vector<32xf32>
    %214 = vector.multi_reduction <add>, %213, %cst_96 [1] : vector<32x32xf32> to vector<32xf32>
    %215 = vector.shape_cast %214 : vector<32xf32> to vector<32x1xf32>
    %216 = tpu.reciprocal %215 {approx = true} : vector<32x1xf32> -> vector<32x1xf32>
    %217 = vector.broadcast %216 : vector<32x1xf32> to vector<32x32xf32>
    %218 = arith.mulf %213, %217 : vector<32x32xf32>
    %219 = arith.truncf %218 : vector<32x32xf32> to vector<32x32xbf16>
    %cst_97 = arith.constant dense<0.000000e+00> : vector<32x64xf32>
    %220 = tpu.matmul %219, %206, %cst_97 {dimension_numbers = #tpu.dot_dimension_numbers<[1], [0], [0], [1], [0, 0, 1, 1], [], []>} : vector<32x32xbf16>, vector<32x64xbf16>, vector<32x64xf32> -> vector<32x64xf32>
    %221 = arith.truncf %220 : vector<32x64xf32> to vector<32x64xbf16>
    %c1_98 = arith.constant 1 : index
    %c64_99 = arith.constant 64 : index
    %c0_100 = arith.constant 0 : index
    %222 = vector.load %arg7[%c1_98, %c64_99, %c0_100] : memref<2x128x128xbf16, #tpu.memory_space<vmem>>, vector<1x64x128xbf16>
    %223 = vector.shape_cast %222 : vector<1x64x128xbf16> to vector<64x128xbf16>
    %cst_101 = arith.constant dense<0.000000e+00> : vector<32x128xf32>
    %224 = tpu.matmul %221, %223, %cst_101 {dimension_numbers = #tpu.dot_dimension_numbers<[1], [0], [0], [1], [0, 0, 1, 1], [], []>} : vector<32x64xbf16>, vector<64x128xbf16>, vector<32x128xf32> -> vector<32x128xf32>
    %225 = arith.addf %200, %224 : vector<32x128xf32>
    %226 = arith.addf %225, %164 : vector<32x128xf32>
    %c1_102 = arith.constant 1 : index
    %c0_103 = arith.constant 0 : index
    %c0_104 = arith.constant 0 : index
    %227 = vector.load %arg9[%c1_102, %c0_103, %c0_104] : memref<2x1x128xf32, #tpu.memory_space<vmem>>, vector<1x1x128xf32>
    %228 = vector.shape_cast %227 : vector<1x1x128xf32> to vector<1x128xf32>
    %c1_105 = arith.constant 1 : index
    %c0_106 = arith.constant 0 : index
    %c0_107 = arith.constant 0 : index
    %229 = vector.load %arg10[%c1_105, %c0_106, %c0_107] : memref<2x1x128xf32, #tpu.memory_space<vmem>>, vector<1x1x128xf32>
    %230 = vector.shape_cast %229 : vector<1x1x128xf32> to vector<1x128xf32>
    %cst_108 = arith.constant dense<0.000000e+00> : vector<32xf32>
    %231 = vector.multi_reduction <add>, %226, %cst_108 [1] : vector<32x128xf32> to vector<32xf32>
    %232 = vector.shape_cast %231 : vector<32xf32> to vector<32x1xf32>
    %cst_109 = arith.constant 1.280000e+02 : f32
    %233 = vector.broadcast %cst_109 : f32 to vector<32x1xf32>
    %234 = arith.divf %232, %233 : vector<32x1xf32>
    %235 = vector.broadcast %234 : vector<32x1xf32> to vector<32x128xf32>
    %236 = arith.subf %226, %235 : vector<32x128xf32>
    %237 = arith.mulf %236, %236 : vector<32x128xf32>
    %cst_110 = arith.constant dense<0.000000e+00> : vector<32xf32>
    %238 = vector.multi_reduction <add>, %237, %cst_110 [1] : vector<32x128xf32> to vector<32xf32>
    %239 = vector.shape_cast %238 : vector<32xf32> to vector<32x1xf32>
    %cst_111 = arith.constant 1.280000e+02 : f32
    %240 = vector.broadcast %cst_111 : f32 to vector<32x1xf32>
    %241 = arith.divf %239, %240 : vector<32x1xf32>
    %cst_112 = arith.constant 9.99999996E-13 : f32
    %242 = vector.broadcast %cst_112 : f32 to vector<32x1xf32>
    %243 = arith.addf %241, %242 : vector<32x1xf32>
    %244 = math.rsqrt %243 : vector<32x1xf32>
    %245 = vector.broadcast %244 : vector<32x1xf32> to vector<32x128xf32>
    %246 = arith.mulf %236, %245 : vector<32x128xf32>
    %247 = vector.broadcast %228 : vector<1x128xf32> to vector<32x128xf32>
    %248 = arith.mulf %246, %247 : vector<32x128xf32>
    %249 = vector.broadcast %230 : vector<1x128xf32> to vector<32x128xf32>
    %250 = arith.addf %248, %249 : vector<32x128xf32>
    %251 = arith.truncf %250 : vector<32x128xf32> to vector<32x128xbf16>
    %c1_113 = arith.constant 1 : index
    %c0_114 = arith.constant 0 : index
    %c0_115 = arith.constant 0 : index
    %252 = vector.load %arg11[%c1_113, %c0_114, %c0_115] : memref<2x128x256xbf16, #tpu.memory_space<vmem>>, vector<1x128x256xbf16>
    %253 = vector.shape_cast %252 : vector<1x128x256xbf16> to vector<128x256xbf16>
    %cst_116 = arith.constant dense<0.000000e+00> : vector<32x256xf32>
    %254 = tpu.matmul %251, %253, %cst_116 {dimension_numbers = #tpu.dot_dimension_numbers<[1], [0], [0], [1], [0, 0, 1, 1], [], []>} : vector<32x128xbf16>, vector<128x256xbf16>, vector<32x256xf32> -> vector<32x256xf32>
    %c1_117 = arith.constant 1 : index
    %c0_118 = arith.constant 0 : index
    %c0_119 = arith.constant 0 : index
    %255 = vector.load %arg12[%c1_117, %c0_118, %c0_119] : memref<2x1x256xf32, #tpu.memory_space<vmem>>, vector<1x1x256xf32>
    %256 = vector.shape_cast %255 : vector<1x1x256xf32> to vector<1x256xf32>
    %257 = vector.broadcast %256 : vector<1x256xf32> to vector<32x256xf32>
    %258 = arith.addf %254, %257 : vector<32x256xf32>
    %cst_120 = arith.constant 5.000000e-01 : f32
    %259 = vector.broadcast %cst_120 : f32 to vector<32x256xf32>
    %260 = arith.mulf %259, %258 : vector<32x256xf32>
    %cst_121 = arith.constant 4.471500e-02 : f32
    %261 = vector.broadcast %cst_121 : f32 to vector<32x256xf32>
    %262 = arith.mulf %261, %258 : vector<32x256xf32>
    %263 = arith.mulf %262, %258 : vector<32x256xf32>
    %264 = arith.mulf %263, %258 : vector<32x256xf32>
    %265 = arith.addf %258, %264 : vector<32x256xf32>
    %cst_122 = arith.constant 0.797884583 : f32
    %266 = vector.broadcast %cst_122 : f32 to vector<32x256xf32>
    %267 = arith.mulf %266, %265 : vector<32x256xf32>
    %268 = math.tanh %267 : vector<32x256xf32>
    %cst_123 = arith.constant 1.000000e+00 : f32
    %269 = vector.broadcast %cst_123 : f32 to vector<32x256xf32>
    %270 = arith.addf %269, %268 : vector<32x256xf32>
    %271 = arith.mulf %260, %270 : vector<32x256xf32>
    %272 = arith.truncf %271 : vector<32x256xf32> to vector<32x256xbf16>
    %c1_124 = arith.constant 1 : index
    %c0_125 = arith.constant 0 : index
    %c0_126 = arith.constant 0 : index
    %273 = vector.load %arg13[%c1_124, %c0_125, %c0_126] : memref<2x256x128xbf16, #tpu.memory_space<vmem>>, vector<1x256x128xbf16>
    %274 = vector.shape_cast %273 : vector<1x256x128xbf16> to vector<256x128xbf16>
    %cst_127 = arith.constant dense<0.000000e+00> : vector<32x128xf32>
    %275 = tpu.matmul %272, %274, %cst_127 {dimension_numbers = #tpu.dot_dimension_numbers<[1], [0], [0], [1], [0, 0, 1, 1], [], []>} : vector<32x256xbf16>, vector<256x128xbf16>, vector<32x128xf32> -> vector<32x128xf32>
    %c1_128 = arith.constant 1 : index
    %c0_129 = arith.constant 0 : index
    %c0_130 = arith.constant 0 : index
    %276 = vector.load %arg14[%c1_128, %c0_129, %c0_130] : memref<2x1x128xf32, #tpu.memory_space<vmem>>, vector<1x1x128xf32>
    %277 = vector.shape_cast %276 : vector<1x1x128xf32> to vector<1x128xf32>
    %278 = vector.broadcast %277 : vector<1x128xf32> to vector<32x128xf32>
    %279 = arith.addf %275, %278 : vector<32x128xf32>
    %280 = arith.addf %279, %250 : vector<32x128xf32>
    %c1_131 = arith.constant 1 : index
    %c0_132 = arith.constant 0 : index
    %c0_133 = arith.constant 0 : index
    %281 = vector.load %arg15[%c1_131, %c0_132, %c0_133] : memref<2x1x128xf32, #tpu.memory_space<vmem>>, vector<1x1x128xf32>
    %282 = vector.shape_cast %281 : vector<1x1x128xf32> to vector<1x128xf32>
    %c1_134 = arith.constant 1 : index
    %c0_135 = arith.constant 0 : index
    %c0_136 = arith.constant 0 : index
    %283 = vector.load %arg16[%c1_134, %c0_135, %c0_136] : memref<2x1x128xf32, #tpu.memory_space<vmem>>, vector<1x1x128xf32>
    %284 = vector.shape_cast %283 : vector<1x1x128xf32> to vector<1x128xf32>
    %cst_137 = arith.constant dense<0.000000e+00> : vector<32xf32>
    %285 = vector.multi_reduction <add>, %280, %cst_137 [1] : vector<32x128xf32> to vector<32xf32>
    %286 = vector.shape_cast %285 : vector<32xf32> to vector<32x1xf32>
    %cst_138 = arith.constant 1.280000e+02 : f32
    %287 = vector.broadcast %cst_138 : f32 to vector<32x1xf32>
    %288 = arith.divf %286, %287 : vector<32x1xf32>
    %289 = vector.broadcast %288 : vector<32x1xf32> to vector<32x128xf32>
    %290 = arith.subf %280, %289 : vector<32x128xf32>
    %291 = arith.mulf %290, %290 : vector<32x128xf32>
    %cst_139 = arith.constant dense<0.000000e+00> : vector<32xf32>
    %292 = vector.multi_reduction <add>, %291, %cst_139 [1] : vector<32x128xf32> to vector<32xf32>
    %293 = vector.shape_cast %292 : vector<32xf32> to vector<32x1xf32>
    %cst_140 = arith.constant 1.280000e+02 : f32
    %294 = vector.broadcast %cst_140 : f32 to vector<32x1xf32>
    %295 = arith.divf %293, %294 : vector<32x1xf32>
    %cst_141 = arith.constant 9.99999996E-13 : f32
    %296 = vector.broadcast %cst_141 : f32 to vector<32x1xf32>
    %297 = arith.addf %295, %296 : vector<32x1xf32>
    %298 = math.rsqrt %297 : vector<32x1xf32>
    %299 = vector.broadcast %298 : vector<32x1xf32> to vector<32x128xf32>
    %300 = arith.mulf %290, %299 : vector<32x128xf32>
    %301 = vector.broadcast %282 : vector<1x128xf32> to vector<32x128xf32>
    %302 = arith.mulf %300, %301 : vector<32x128xf32>
    %303 = vector.broadcast %284 : vector<1x128xf32> to vector<32x128xf32>
    %304 = arith.addf %302, %303 : vector<32x128xf32>
    %305 = arith.truncf %304 : vector<32x128xf32> to vector<32x128xbf16>
    %c0_142 = arith.constant 0 : index
    %c0_143 = arith.constant 0 : index
    %306 = vector.load %arg17[%c0_142, %c0_143] : memref<128x128xbf16, #tpu.memory_space<vmem>>, vector<128x128xbf16>
    %cst_144 = arith.constant dense<0.000000e+00> : vector<32x128xf32>
    %307 = tpu.matmul %305, %306, %cst_144 {dimension_numbers = #tpu.dot_dimension_numbers<[1], [0], [0], [1], [0, 0, 1, 1], [], []>} : vector<32x128xbf16>, vector<128x128xbf16>, vector<32x128xf32> -> vector<32x128xf32>
    %c0_145 = arith.constant 0 : index
    %c0_146 = arith.constant 0 : index
    %308 = vector.load %arg18[%c0_145, %c0_146] : memref<1x128xf32, #tpu.memory_space<vmem>>, vector<1x128xf32>
    %309 = vector.broadcast %308 : vector<1x128xf32> to vector<32x128xf32>
    %310 = arith.addf %307, %309 : vector<32x128xf32>
    %311 = math.tanh %310 : vector<32x128xf32>
    %c0_147 = arith.constant 0 : index
    %c0_148 = arith.constant 0 : index
    %312 = vector.load %arg19[%c0_147, %c0_148] : memref<1x128xf32, #tpu.memory_space<vmem>>, vector<1x128xf32>
    %313 = vector.broadcast %312 : vector<1x128xf32> to vector<32x128xf32>
    %314 = arith.mulf %311, %313 : vector<32x128xf32>
    %cst_149 = arith.constant dense<0.000000e+00> : vector<32xf32>
    %315 = vector.multi_reduction <add>, %314, %cst_149 [1] : vector<32x128xf32> to vector<32xf32>
    %316 = vector.shape_cast %315 : vector<32xf32> to vector<32x1xf32>
    %c0_150 = arith.constant 0 : index
    %c0_151 = arith.constant 0 : index
    %317 = vector.load %arg20[%c0_150, %c0_151] : memref<1x1xf32, #tpu.memory_space<vmem>>, vector<1x1xf32>
    %318 = vector.broadcast %317 : vector<1x1xf32> to vector<32x1xf32>
    %319 = arith.addf %316, %318 : vector<32x1xf32>
    %c0_152 = arith.constant 0 : index
    %c0_153 = arith.constant 0 : index
    %320 = vector.load %arg21[%c0_152, %c0_153] : memref<32x1xf32, #tpu.memory_space<vmem>>, vector<32x1xf32>
    tpu.vector_store %arg21[%c0_152, %c0_153], %319 {strides = array<i32>} : memref<32x1xf32, #tpu.memory_space<vmem>>, vector<32x1xf32>,
    return
  }
  func.func @transform_0(%arg0: i32) -> (i32, i32) {
    %c0_i32 = arith.constant 0 : i32
    %c0_i32_0 = arith.constant 0 : i32
    return %arg0, %c0_i32 : i32, i32
  }
  func.func @transform_1(%arg0: i32) -> (i32, i32, i32) {
    %c0_i32 = arith.constant 0 : i32
    %c0_i32_0 = arith.constant 0 : i32
    %c0_i32_1 = arith.constant 0 : i32
    return %arg0, %c0_i32, %c0_i32_0 : i32, i32, i32
  }
  func.func @transform_2(%arg0: i32) -> (i32, i32) {
    %c0_i32 = arith.constant 0 : i32
    %c0_i32_0 = arith.constant 0 : i32
    %c0_i32_1 = arith.constant 0 : i32
    return %c0_i32, %c0_i32_0 : i32, i32
  }
  func.func @transform_3(%arg0: i32) -> (i32, i32) {
    %c0_i32 = arith.constant 0 : i32
    %c0_i32_0 = arith.constant 0 : i32
    %c0_i32_1 = arith.constant 0 : i32
    return %c0_i32, %c0_i32_0 : i32, i32
  }
  func.func @transform_4(%arg0: i32) -> (i32, i32, i32) {
    %c0_i32 = arith.constant 0 : i32
    %c0_i32_0 = arith.constant 0 : i32
    %c0_i32_1 = arith.constant 0 : i32
    %c0_i32_2 = arith.constant 0 : i32
    return %c0_i32, %c0_i32_0, %c0_i32_1 : i32, i32, i32
  }
  func.func @transform_5(%arg0: i32) -> (i32, i32, i32) {
    %c0_i32 = arith.constant 0 : i32
    %c0_i32_0 = arith.constant 0 : i32
    %c0_i32_1 = arith.constant 0 : i32
    %c0_i32_2 = arith.constant 0 : i32
    return %c0_i32, %c0_i32_0, %c0_i32_1 : i32, i32, i32
  }
  func.func @transform_6(%arg0: i32) -> (i32, i32, i32) {
    %c0_i32 = arith.constant 0 : i32
    %c0_i32_0 = arith.constant 0 : i32
    %c0_i32_1 = arith.constant 0 : i32
    %c0_i32_2 = arith.constant 0 : i32
    return %c0_i32, %c0_i32_0, %c0_i32_1 : i32, i32, i32
  }
  func.func @transform_7(%arg0: i32) -> (i32, i32, i32) {
    %c0_i32 = arith.constant 0 : i32
    %c0_i32_0 = arith.constant 0 : i32
    %c0_i32_1 = arith.constant 0 : i32
    %c0_i32_2 = arith.constant 0 : i32
    return %c0_i32, %c0_i32_0, %c0_i32_1 : i32, i32, i32
  }
  func.func @transform_8(%arg0: i32) -> (i32, i32, i32) {
    %c0_i32 = arith.constant 0 : i32
    %c0_i32_0 = arith.constant 0 : i32
    %c0_i32_1 = arith.constant 0 : i32
    %c0_i32_2 = arith.constant 0 : i32
    return %c0_i32, %c0_i32_0, %c0_i32_1 : i32, i32, i32
  }
  func.func @transform_9(%arg0: i32) -> (i32, i32, i32) {
    %c0_i32 = arith.constant 0 : i32
    %c0_i32_0 = arith.constant 0 : i32
    %c0_i32_1 = arith.constant 0 : i32
    %c0_i32_2 = arith.constant 0 : i32
    return %c0_i32, %c0_i32_0, %c0_i32_1 : i32, i32, i32
  }
  func.func @transform_10(%arg0: i32) -> (i32, i32, i32) {
    %c0_i32 = arith.constant 0 : i32
    %c0_i32_0 = arith.constant 0 : i32
    %c0_i32_1 = arith.constant 0 : i32
    %c0_i32_2 = arith.constant 0 : i32
    return %c0_i32, %c0_i32_0, %c0_i32_1 : i32, i32, i32
  }
  func.func @transform_11(%arg0: i32) -> (i32, i32, i32) {
    %c0_i32 = arith.constant 0 : i32
    %c0_i32_0 = arith.constant 0 : i32
    %c0_i32_1 = arith.constant 0 : i32
    %c0_i32_2 = arith.constant 0 : i32
    return %c0_i32, %c0_i32_0, %c0_i32_1 : i32, i32, i32
  }
  func.func @transform_12(%arg0: i32) -> (i32, i32, i32) {
    %c0_i32 = arith.constant 0 : i32
    %c0_i32_0 = arith.constant 0 : i32
    %c0_i32_1 = arith.constant 0 : i32
    %c0_i32_2 = arith.constant 0 : i32
    return %c0_i32, %c0_i32_0, %c0_i32_1 : i32, i32, i32
  }
  func.func @transform_13(%arg0: i32) -> (i32, i32, i32) {
    %c0_i32 = arith.constant 0 : i32
    %c0_i32_0 = arith.constant 0 : i32
    %c0_i32_1 = arith.constant 0 : i32
    %c0_i32_2 = arith.constant 0 : i32
    return %c0_i32, %c0_i32_0, %c0_i32_1 : i32, i32, i32
  }
  func.func @transform_14(%arg0: i32) -> (i32, i32, i32) {
    %c0_i32 = arith.constant 0 : i32
    %c0_i32_0 = arith.constant 0 : i32
    %c0_i32_1 = arith.constant 0 : i32
    %c0_i32_2 = arith.constant 0 : i32
    return %c0_i32, %c0_i32_0, %c0_i32_1 : i32, i32, i32
  }
  func.func @transform_15(%arg0: i32) -> (i32, i32, i32) {
    %c0_i32 = arith.constant 0 : i32
    %c0_i32_0 = arith.constant 0 : i32
    %c0_i32_1 = arith.constant 0 : i32
    %c0_i32_2 = arith.constant 0 : i32
    return %c0_i32, %c0_i32_0, %c0_i32_1 : i32, i32, i32
  }
  func.func @transform_16(%arg0: i32) -> (i32, i32) {
    %c0_i32 = arith.constant 0 : i32
    %c0_i32_0 = arith.constant 0 : i32
    %c0_i32_1 = arith.constant 0 : i32
    return %c0_i32, %c0_i32_0 : i32, i32
  }
  func.func @transform_17(%arg0: i32) -> (i32, i32) {
    %c0_i32 = arith.constant 0 : i32
    %c0_i32_0 = arith.constant 0 : i32
    %c0_i32_1 = arith.constant 0 : i32
    return %c0_i32, %c0_i32_0 : i32, i32
  }
  func.func @transform_18(%arg0: i32) -> (i32, i32) {
    %c0_i32 = arith.constant 0 : i32
    %c0_i32_0 = arith.constant 0 : i32
    %c0_i32_1 = arith.constant 0 : i32
    return %c0_i32, %c0_i32_0 : i32, i32
  }
  func.func @transform_19(%arg0: i32) -> (i32, i32) {
    %c0_i32 = arith.constant 0 : i32
    %c0_i32_0 = arith.constant 0 : i32
    %c0_i32_1 = arith.constant 0 : i32
    return %c0_i32, %c0_i32_0 : i32, i32
  }
  func.func @transform_20(%arg0: i32) -> (i32, i32) {
    %c0_i32 = arith.constant 0 : i32
    %c0_i32_0 = arith.constant 0 : i32
    return %arg0, %c0_i32 : i32, i32
  }
}

</mosaic_0001>

<llo_original>
// kernel: squeeze.1
$region0: #{squeeze.1}
  %s0 = inlined_call_operand.vmem [shape: f32[4], index: 0, kind: input, shape index: {}]
  %s1 = inlined_call_operand.hbm [shape: f32[2,2], index: 1, kind: output, shape index: {}]
  $region1: #{squeeze.1} parent=0
    #allocation0 [shape = 'u8[1024]{0}', space=vmem, size = 0x400, scoped, tag = 'operand span for operand 1']
    #allocation1 [shape = 's32[1]{0}', space=sflag, size = 0x4, scoped, tag = 'scoped memory for squeeze.1']
    #allocation2 [shape = 'u8[4096]{0}', space=vmem, size = 0x1000, scoped, tag = 'scoped mem for output reshape']
    #allocation3 [shape = 'u8[4096]{0}', space=vmem, size = 0x1000, scoped, tag = 'scoped mem for input reshape']
    %2 = vsyncpa [#allocation1], 0
    %s4 = sshll.u32 1, 1
    %s5 = ssub.s32 %s4, 1
    %v6 = vld [vmem:[%s0] sm:%s5]
    %7 = vst [vmem:[#allocation3] sm:%s5] %v6
    %v8 = vld [vmem:[#allocation3] sm:$0x1]
    %vm9 = vcmask 15360
    %10 = vst.msk [vmem:[#allocation2] sm:$0x1] %vm9, %v8
    %v11 = vld [vmem:[#allocation3] sm:$0x1]
    %12 = vrot.lane.b32.xlu0 %v11, 126
    %v13 = vpop.permute.xlu0 %12
    %vm14 = vcmask 15360
    %s15 = scalar_lea.vmem [#allocation2], 1
    %16 = vst.msk [vmem:[%s15] sm:$0x1] %vm14, %v13
    %s18 = sshll.u32 1, 2
    %s19 = ssub.s32 %s18, 1
    %v21 = vld [vmem:[#allocation2] sm:%s19]
    %s22 = sshll.u32 1, 2
    %s23 = ssub.s32 %s22, 1
    %24 = vst [vmem:[#allocation0] sm:%s23] %v21
    %s26 = ssub.s32 32, 32
    %27 = vsyncadd [#allocation1], %s26
    %s29 = sshll.u32 [#allocation0], 4
    %s30 = int_to_ptr.vmem [resolvable:$true] %s29
    %32 = dma.vmem_to_hbm [thread:$0]  %s30, 32, %s1, [#allocation1]
    %33 = dma.done [#allocation1], 32
    %34 = vsyncpa [#allocation1], 1

// kernel: bert_pair_pro_forward.1
$region0: #{bert_pair_pro_forward.1}
  #allocation0 [shape = 'u32[]', space=smem, size = 0x4, offset = 0x4, fixed_abs, tag = 'smem constant byte address 0x4 - core index']
  #allocation1 [shape = 'u32[144,128]{1,0:T(1,128)}', space=vmem, size = 0x12000, scoped, tag = 'internal scratch']
  #allocation2 [shape = 'f32[1,1]{1,0:T(1,128)S(1)}', space=vmem, size = 0x200, scoped, tag = 'scoped memory for bert_pair_pro_forward.1']
  %s0 = inlined_call_operand.vmem [shape: f32[64,128], index: 0, kind: input, shape index: {}]
  %s1 = inlined_call_operand.vmem [shape: f32[2,32,32], index: 1, kind: input, shape index: {}]
  %s2 = inlined_call_operand.vmem [shape: f32[1,128], index: 2, kind: input, shape index: {}]
  %s3 = inlined_call_operand.vmem [shape: f32[1,128], index: 3, kind: input, shape index: {}]
  %s4 = inlined_call_operand.vmem [shape: bf16[2,128,384], index: 4, kind: input, shape index: {}]
  %s5 = inlined_call_operand.vmem [shape: f32[2,1,384], index: 5, kind: input, shape index: {}]
  %s6 = inlined_call_operand.vmem [shape: bf16[2,128,128], index: 6, kind: input, shape index: {}]
  %s7 = inlined_call_operand.vmem [shape: f32[2,1,128], index: 7, kind: input, shape index: {}]
  %s8 = inlined_call_operand.vmem [shape: f32[2,1,128], index: 8, kind: input, shape index: {}]
  %s9 = inlined_call_operand.vmem [shape: f32[2,1,128], index: 9, kind: input, shape index: {}]
  %s10 = inlined_call_operand.vmem [shape: bf16[2,128,256], index: 10, kind: input, shape index: {}]
  %s11 = inlined_call_operand.vmem [shape: f32[2,1,256], index: 11, kind: input, shape index: {}]
  %s12 = inlined_call_operand.vmem [shape: bf16[2,256,128], index: 12, kind: input, shape index: {}]
  %s13 = inlined_call_operand.vmem [shape: f32[2,1,128], index: 13, kind: input, shape index: {}]
  %s14 = inlined_call_operand.vmem [shape: f32[2,1,128], index: 14, kind: input, shape index: {}]
  %s15 = inlined_call_operand.vmem [shape: f32[2,1,128], index: 15, kind: input, shape index: {}]
  %s16 = inlined_call_operand.vmem [shape: bf16[128,128], index: 16, kind: input, shape index: {}]
  %s17 = inlined_call_operand.vmem [shape: f32[1,128], index: 17, kind: input, shape index: {}]
  %s18 = inlined_call_operand.vmem [shape: f32[1,128], index: 18, kind: input, shape index: {}]
  %s19 = inlined_call_operand.<no memory space> [shape: f32[1,1], index: 19, kind: input, shape index: {}]
  %s20 = inlined_call_operand.vmem [shape: f32[64,1], index: 20, kind: output, shape index: {}]
  %s21 = sld [smem:[#allocation0]]
  $region113: #{bert_pair_pro_forward.1} parent=0
    _
  %s23 = ssub.s32 1, %s21
  %s24 = scalar_select 0, %s23, %s21
  %v25 = vstv %s19
  %26 = vst [vmem:[#allocation2] sm:$0x1] %v25
  loop: start=0, step=1, limit=4
  $region2: #{bert_pair_pro_forward.1} parent=0 // loop_pre_header
    _
  $region3: #{bert_pair_pro_forward.1} parent=0 // loop_header
    %s28 = sphi 0, %s32
    %p29 = scmp.ge.s32.totalorder %s28, 4
    %s38 = sphi 0, %s40
    %s41 = sphi 0, %s38
    %s42 = sphi 0, %s41
    %s58 = sphi 0, %s42
    %s64 = sphi 0, %s66
    %s67 = sphi 0, %s64
    %s68 = sphi 0, %s67
    %s84 = sphi 0, %s68
    %s88 = sphi 0, %s88
    %s90 = sphi 0, %s88
    %s91 = sphi 0, %s90
    %s105 = sphi 0, %s91
    %s109 = sphi 0, %s109
    %s111 = sphi 0, %s109
    %s112 = sphi 0, %s111
    %s126 = sphi 0, %s112
    %s130 = sphi 0, %s130
    %s132 = sphi 0, %s130
    %s133 = sphi 0, %s132
    %s147 = sphi 0, %s133
    %s151 = sphi 0, %s151
    %s153 = sphi 0, %s151
    %s154 = sphi 0, %s153
    %s168 = sphi 0, %s154
    %s172 = sphi 0, %s172
    %s174 = sphi 0, %s172
    %s175 = sphi 0, %s174
    %s189 = sphi 0, %s175
    %s193 = sphi 0, %s193
    %s195 = sphi 0, %s193
    %s196 = sphi 0, %s195
    %s210 = sphi 0, %s196
    %s214 = sphi 0, %s214
    %s216 = sphi 0, %s214
    %s217 = sphi 0, %s216
    %s231 = sphi 0, %s217
    %s235 = sphi 0, %s235
    %s237 = sphi 0, %s235
    %s238 = sphi 0, %s237
    %s252 = sphi 0, %s238
    %s256 = sphi 0, %s256
    %s258 = sphi 0, %s256
    %s259 = sphi 0, %s258
    %s273 = sphi 0, %s259
    %s277 = sphi 0, %s277
    %s279 = sphi 0, %s277
    %s280 = sphi 0, %s279
    %s294 = sphi 0, %s280
    %s298 = sphi 0, %s298
    %s300 = sphi 0, %s298
    %s301 = sphi 0, %s300
    %s315 = sphi 0, %s301
    %s319 = sphi 0, %s319
    %s321 = sphi 0, %s319
    %s322 = sphi 0, %s321
    %s336 = sphi 0, %s322
    %s340 = sphi 0, %s340
    %s342 = sphi 0, %s340
    %s343 = sphi 0, %s342
    %s357 = sphi 0, %s343
    %s361 = sphi 0, %s361
    %s363 = sphi 0, %s361
    %s364 = sphi 0, %s363
    %s378 = sphi 0, %s364
    %s382 = sphi 0, %s382
    %s384 = sphi 0, %s382
    %s385 = sphi 0, %s384
    %s399 = sphi 0, %s385
    %s403 = sphi 0, %s403
    %s405 = sphi 0, %s403
    %s406 = sphi 0, %s405
    %s420 = sphi 0, %s406
    %s424 = sphi 0, %s424
    %s426 = sphi 0, %s424
    %s427 = sphi 0, %s426
    %s441 = sphi 0, %s427
    %s445 = sphi 0, %s445
    %s447 = sphi 0, %s445
    %s448 = sphi 0, %s447
    %s462 = sphi 0, %s448
    %s468 = sphi 0, %s470
    %s471 = sphi 0, %s468
    %s472 = sphi 0, %s471
    %s488 = sphi 0, %s472
  $region4: #{bert_pair_pro_forward.1} parent=0 // loop_header_branch
    %31 = sbr.rel (%p29) target = $region8
  $region5: #{bert_pair_pro_forward.1} parent=0 // loop_body
    %s33 = ssub.s32 %s28, 1
    %s34 = ssub.s32 %s28, 2
    %s35 = sadd.s32 %s28, 1
    %s36 = ssub.s32 %s28, %s35
    %p37 = scmp.eq.s32.totalorder %s36, 0
    %s39 = sadd.s32 %s38, 1
    %s40 = scalar_select %p37, %s38, %s39
    %p43 = pneg %p37
    %p44 = scmp.eq.s32.totalorder %s28, 1
    %p45 = por %p43, %p44
    %p46 = scmp.ne.s32.totalorder %s38, %s41
    %p47 = scmp.eq.s32.totalorder %s28, 0
    %p48 = por %p46, %p47
    %p49 = scmp.ne.s32.totalorder %s38, %s41
    %p50 = scmp.eq.s32.totalorder %s33, 1
    %p51 = por %p49, %p50
    %p52 = scmp.ne.s32.totalorder %s41, %s42
    %p53 = scmp.eq.s32.totalorder %s33, 0
    %p54 = por %p52, %p53
    %p55 = scmp.ne.s32.totalorder %s41, %s42
    %p56 = scmp.eq.s32.totalorder %s34, 1
    %p57 = por %p55, %p56
    %p59 = scmp.ne.s32.totalorder %s42, %s58
    %p60 = scmp.eq.s32.totalorder %s34, 0
    %p61 = por %p59, %p60
    %s62 = ssub.s32 %s28, %s35
    %p63 = scmp.eq.s32.totalorder %s62, 0
    %s65 = sadd.s32 %s64, 1
    %s66 = scalar_select %p63, %s64, %s65
    %p69 = pneg %p63
    %p70 = scmp.eq.s32.totalorder %s28, 1
    %p71 = por %p69, %p70
    %p72 = scmp.ne.s32.totalorder %s64, %s67
    %p73 = scmp.eq.s32.totalorder %s28, 0
    %p74 = por %p72, %p73
    %p75 = scmp.ne.s32.totalorder %s64, %s67
    %p76 = scmp.eq.s32.totalorder %s33, 1
    %p77 = por %p75, %p76
    %p78 = scmp.ne.s32.totalorder %s67, %s68
    %p79 = scmp.eq.s32.totalorder %s33, 0
    %p80 = por %p78, %p79
    %p81 = scmp.ne.s32.totalorder %s67, %s68
    %p82 = scmp.eq.s32.totalorder %s34, 1
    %p83 = por %p81, %p82
    %p85 = scmp.ne.s32.totalorder %s68, %s84
    %p86 = scmp.eq.s32.totalorder %s34, 0
    %p87 = por %p85, %p86
    %s89 = sadd.s32 %s88, 1
    %p92 = scmp.eq.s32.totalorder %s28, 1
    %p93 = scmp.ne.s32.totalorder %s88, %s90
    %p94 = scmp.eq.s32.totalorder %s28, 0
    %p95 = por %p93, %p94
    %p96 = scmp.ne.s32.totalorder %s88, %s90
    %p97 = scmp.eq.s32.totalorder %s33, 1
    %p98 = por %p96, %p97
    %p99 = scmp.ne.s32.totalorder %s90, %s91
    %p100 = scmp.eq.s32.totalorder %s33, 0
    %p101 = por %p99, %p100
    %p102 = scmp.ne.s32.totalorder %s90, %s91
    %p103 = scmp.eq.s32.totalorder %s34, 1
    %p104 = por %p102, %p103
    %p106 = scmp.ne.s32.totalorder %s91, %s105
    %p107 = scmp.eq.s32.totalorder %s34, 0
    %p108 = por %p106, %p107
    %s110 = sadd.s32 %s109, 1
    %p113 = scmp.eq.s32.totalorder %s28, 1
    %p114 = scmp.ne.s32.totalorder %s109, %s111
    %p115 = scmp.eq.s32.totalorder %s28, 0
    %p116 = por %p114, %p115
    %p117 = scmp.ne.s32.totalorder %s109, %s111
    %p118 = scmp.eq.s32.totalorder %s33, 1
    %p119 = por %p117, %p118
    %p120 = scmp.ne.s32.totalorder %s111, %s112
    %p121 = scmp.eq.s32.totalorder %s33, 0
    %p122 = por %p120, %p121
    %p123 = scmp.ne.s32.totalorder %s111, %s112
    %p124 = scmp.eq.s32.totalorder %s34, 1
    %p125 = por %p123, %p124
    %p127 = scmp.ne.s32.totalorder %s112, %s126
    %p128 = scmp.eq.s32.totalorder %s34, 0
    %p129 = por %p127, %p128
    %s131 = sadd.s32 %s130, 1
    %p134 = scmp.eq.s32.totalorder %s28, 1
    %p135 = scmp.ne.s32.totalorder %s130, %s132
    %p136 = scmp.eq.s32.totalorder %s28, 0
    %p137 = por %p135, %p136
    %p138 = scmp.ne.s32.totalorder %s130, %s132
    %p139 = scmp.eq.s32.totalorder %s33, 1
    %p140 = por %p138, %p139
    %p141 = scmp.ne.s32.totalorder %s132, %s133
    %p142 = scmp.eq.s32.totalorder %s33, 0
    %p143 = por %p141, %p142
    %p144 = scmp.ne.s32.totalorder %s132, %s133
    %p145 = scmp.eq.s32.totalorder %s34, 1
    %p146 = por %p144, %p145
    %p148 = scmp.ne.s32.totalorder %s133, %s147
    %p149 = scmp.eq.s32.totalorder %s34, 0
    %p150 = por %p148, %p149
    %s152 = sadd.s32 %s151, 1
    %p155 = scmp.eq.s32.totalorder %s28, 1
    %p156 = scmp.ne.s32.totalorder %s151, %s153
    %p157 = scmp.eq.s32.totalorder %s28, 0
    %p158 = por %p156, %p157
    %p159 = scmp.ne.s32.totalorder %s151, %s153
    %p160 = scmp.eq.s32.totalorder %s33, 1
    %p161 = por %p159, %p160
    %p162 = scmp.ne.s32.totalorder %s153, %s154
    %p163 = scmp.eq.s32.totalorder %s33, 0
    %p164 = por %p162, %p163
    %p165 = scmp.ne.s32.totalorder %s153, %s154
    %p166 = scmp.eq.s32.totalorder %s34, 1
    %p167 = por %p165, %p166
    %p169 = scmp.ne.s32.totalorder %s154, %s168
    %p170 = scmp.eq.s32.totalorder %s34, 0
    %p171 = por %p169, %p170
    %s173 = sadd.s32 %s172, 1
    %p176 = scmp.eq.s32.totalorder %s28, 1
    %p177 = scmp.ne.s32.totalorder %s172, %s174
    %p178 = scmp.eq.s32.totalorder %s28, 0
    %p179 = por %p177, %p178
    %p180 = scmp.ne.s32.totalorder %s172, %s174
    %p181 = scmp.eq.s32.totalorder %s33, 1
    %p182 = por %p180, %p181
    %p183 = scmp.ne.s32.totalorder %s174, %s175
    %p184 = scmp.eq.s32.totalorder %s33, 0
    %p185 = por %p183, %p184
    %p186 = scmp.ne.s32.totalorder %s174, %s175
    %p187 = scmp.eq.s32.totalorder %s34, 1
    %p188 = por %p186, %p187
    %p190 = scmp.ne.s32.totalorder %s175, %s189
    %p191 = scmp.eq.s32.totalorder %s34, 0
    %p192 = por %p190, %p191
    %s194 = sadd.s32 %s193, 1
    %p197 = scmp.eq.s32.totalorder %s28, 1
    %p198 = scmp.ne.s32.totalorder %s193, %s195
    %p199 = scmp.eq.s32.totalorder %s28, 0
    %p200 = por %p198, %p199
    %p201 = scmp.ne.s32.totalorder %s193, %s195
    %p202 = scmp.eq.s32.totalorder %s33, 1
    %p203 = por %p201, %p202
    %p204 = scmp.ne.s32.totalorder %s195, %s196
    %p205 = scmp.eq.s32.totalorder %s33, 0
    %p206 = por %p204, %p205
    %p207 = scmp.ne.s32.totalorder %s195, %s196
    %p208 = scmp.eq.s32.totalorder %s34, 1
    %p209 = por %p207, %p208
    %p211 = scmp.ne.s32.totalorder %s196, %s210
    %p212 = scmp.eq.s32.totalorder %s34, 0
    %p213 = por %p211, %p212
    %s215 = sadd.s32 %s214, 1
    %p218 = scmp.eq.s32.totalorder %s28, 1
    %p219 = scmp.ne.s32.totalorder %s214, %s216
    %p220 = scmp.eq.s32.totalorder %s28, 0
    %p221 = por %p219, %p220
    %p222 = scmp.ne.s32.totalorder %s214, %s216
    %p223 = scmp.eq.s32.totalorder %s33, 1
    %p224 = por %p222, %p223
    %p225 = scmp.ne.s32.totalorder %s216, %s217
    %p226 = scmp.eq.s32.totalorder %s33, 0
    %p227 = por %p225, %p226
    %p228 = scmp.ne.s32.totalorder %s216, %s217
    %p229 = scmp.eq.s32.totalorder %s34, 1
    %p230 = por %p228, %p229
    %p232 = scmp.ne.s32.totalorder %s217, %s231
    %p233 = scmp.eq.s32.totalorder %s34, 0
    %p234 = por %p232, %p233
    %s236 = sadd.s32 %s235, 1
    %p239 = scmp.eq.s32.totalorder %s28, 1
    %p240 = scmp.ne.s32.totalorder %s235, %s237
    %p241 = scmp.eq.s32.totalorder %s28, 0
    %p242 = por %p240, %p241
    %p243 = scmp.ne.s32.totalorder %s235, %s237
    %p244 = scmp.eq.s32.totalorder %s33, 1
    %p245 = por %p243, %p244
    %p246 = scmp.ne.s32.totalorder %s237, %s238
    %p247 = scmp.eq.s32.totalorder %s33, 0
    %p248 = por %p246, %p247
    %p249 = scmp.ne.s32.totalorder %s237, %s238
    %p250 = scmp.eq.s32.totalorder %s34, 1
    %p251 = por %p249, %p250
    %p253 = scmp.ne.s32.totalorder %s238, %s252
    %p254 = scmp.eq.s32.totalorder %s34, 0
    %p255 = por %p253, %p254
    %s257 = sadd.s32 %s256, 1
    %p260 = scmp.eq.s32.totalorder %s28, 1
    %p261 = scmp.ne.s32.totalorder %s256, %s258
    %p262 = scmp.eq.s32.totalorder %s28, 0
    %p263 = por %p261, %p262
    %p264 = scmp.ne.s32.totalorder %s256, %s258
    %p265 = scmp.eq.s32.totalorder %s33, 1
    %p266 = por %p264, %p265
    %p267 = scmp.ne.s32.totalorder %s258, %s259
    %p268 = scmp.eq.s32.totalorder %s33, 0
    %p269 = por %p267, %p268
    %p270 = scmp.ne.s32.totalorder %s258, %s259
    %p271 = scmp.eq.s32.totalorder %s34, 1
    %p272 = por %p270, %p271
    %p274 = scmp.ne.s32.totalorder %s259, %s273
    %p275 = scmp.eq.s32.totalorder %s34, 0
    %p276 = por %p274, %p275
    %s278 = sadd.s32 %s277, 1
    %p281 = scmp.eq.s32.totalorder %s28, 1
    %p282 = scmp.ne.s32.totalorder %s277, %s279
    %p283 = scmp.eq.s32.totalorder %s28, 0
    %p284 = por %p282, %p283
    %p285 = scmp.ne.s32.totalorder %s277, %s279
    %p286 = scmp.eq.s32.totalorder %s33, 1
    %p287 = por %p285, %p286
    %p288 = scmp.ne.s32.totalorder %s279, %s280
    %p289 = scmp.eq.s32.totalorder %s33, 0
    %p290 = por %p288, %p289
    %p291 = scmp.ne.s32.totalorder %s279, %s280
    %p292 = scmp.eq.s32.totalorder %s34, 1
    %p293 = por %p291, %p292
    %p295 = scmp.ne.s32.totalorder %s280, %s294
    %p296 = scmp.eq.s32.totalorder %s34, 0
    %p297 = por %p295, %p296
    %s299 = sadd.s32 %s298, 1
    %p302 = scmp.eq.s32.totalorder %s28, 1
    %p303 = scmp.ne.s32.totalorder %s298, %s300
    %p304 = scmp.eq.s32.totalorder %s28, 0
    %p305 = por %p303, %p304
    %p306 = scmp.ne.s32.totalorder %s298, %s300
    %p307 = scmp.eq.s32.totalorder %s33, 1
    %p308 = por %p306, %p307
    %p309 = scmp.ne.s32.totalorder %s300, %s301
    %p310 = scmp.eq.s32.totalorder %s33, 0
    %p311 = por %p309, %p310
    %p312 = scmp.ne.s32.totalorder %s300, %s301
    %p313 = scmp.eq.s32.totalorder %s34, 1
    %p314 = por %p312, %p313
    %p316 = scmp.ne.s32.totalorder %s301, %s315
    %p317 = scmp.eq.s32.totalorder %s34, 0
    %p318 = por %p316, %p317
    %s320 = sadd.s32 %s319, 1
    %p323 = scmp.eq.s32.totalorder %s28, 1
    %p324 = scmp.ne.s32.totalorder %s319, %s321
    %p325 = scmp.eq.s32.totalorder %s28, 0
    %p326 = por %p324, %p325
    %p327 = scmp.ne.s32.totalorder %s319, %s321
    %p328 = scmp.eq.s32.totalorder %s33, 1
    %p329 = por %p327, %p328
    %p330 = scmp.ne.s32.totalorder %s321, %s322
    %p331 = scmp.eq.s32.totalorder %s33, 0
    %p332 = por %p330, %p331
    %p333 = scmp.ne.s32.totalorder %s321, %s322
    %p334 = scmp.eq.s32.totalorder %s34, 1
    %p335 = por %p333, %p334
    %p337 = scmp.ne.s32.totalorder %s322, %s336
    %p338 = scmp.eq.s32.totalorder %s34, 0
    %p339 = por %p337, %p338
    %s341 = sadd.s32 %s340, 1
    %p344 = scmp.eq.s32.totalorder %s28, 1
    %p345 = scmp.ne.s32.totalorder %s340, %s342
    %p346 = scmp.eq.s32.totalorder %s28, 0
    %p347 = por %p345, %p346
    %p348 = scmp.ne.s32.totalorder %s340, %s342
    %p349 = scmp.eq.s32.totalorder %s33, 1
    %p350 = por %p348, %p349
    %p351 = scmp.ne.s32.totalorder %s342, %s343
    %p352 = scmp.eq.s32.totalorder %s33, 0
    %p353 = por %p351, %p352
    %p354 = scmp.ne.s32.totalorder %s342, %s343
    %p355 = scmp.eq.s32.totalorder %s34, 1
    %p356 = por %p354, %p355
    %p358 = scmp.ne.s32.totalorder %s343, %s357
    %p359 = scmp.eq.s32.totalorder %s34, 0
    %p360 = por %p358, %p359
    %s362 = sadd.s32 %s361, 1
    %p365 = scmp.eq.s32.totalorder %s28, 1
    %p366 = scmp.ne.s32.totalorder %s361, %s363
    %p367 = scmp.eq.s32.totalorder %s28, 0
    %p368 = por %p366, %p367
    %p369 = scmp.ne.s32.totalorder %s361, %s363
    %p370 = scmp.eq.s32.totalorder %s33, 1
    %p371 = por %p369, %p370
    %p372 = scmp.ne.s32.totalorder %s363, %s364
    %p373 = scmp.eq.s32.totalorder %s33, 0
    %p374 = por %p372, %p373
    %p375 = scmp.ne.s32.totalorder %s363, %s364
    %p376 = scmp.eq.s32.totalorder %s34, 1
    %p377 = por %p375, %p376
    %p379 = scmp.ne.s32.totalorder %s364, %s378
    %p380 = scmp.eq.s32.totalorder %s34, 0
    %p381 = por %p379, %p380
    %s383 = sadd.s32 %s382, 1
    %p386 = scmp.eq.s32.totalorder %s28, 1
    %p387 = scmp.ne.s32.totalorder %s382, %s384
    %p388 = scmp.eq.s32.totalorder %s28, 0
    %p389 = por %p387, %p388
    %p390 = scmp.ne.s32.totalorder %s382, %s384
    %p391 = scmp.eq.s32.totalorder %s33, 1
    %p392 = por %p390, %p391
    %p393 = scmp.ne.s32.totalorder %s384, %s385
    %p394 = scmp.eq.s32.totalorder %s33, 0
    %p395 = por %p393, %p394
    %p396 = scmp.ne.s32.totalorder %s384, %s385
    %p397 = scmp.eq.s32.totalorder %s34, 1
    %p398 = por %p396, %p397
    %p400 = scmp.ne.s32.totalorder %s385, %s399
    %p401 = scmp.eq.s32.totalorder %s34, 0
    %p402 = por %p400, %p401
    %s404 = sadd.s32 %s403, 1
    %p407 = scmp.eq.s32.totalorder %s28, 1
    %p408 = scmp.ne.s32.totalorder %s403, %s405
    %p409 = scmp.eq.s32.totalorder %s28, 0
    %p410 = por %p408, %p409
    %p411 = scmp.ne.s32.totalorder %s403, %s405
    %p412 = scmp.eq.s32.totalorder %s33, 1
    %p413 = por %p411, %p412
    %p414 = scmp.ne.s32.totalorder %s405, %s406
    %p415 = scmp.eq.s32.totalorder %s33, 0
    %p416 = por %p414, %p415
    %p417 = scmp.ne.s32.totalorder %s405, %s406
    %p418 = scmp.eq.s32.totalorder %s34, 1
    %p419 = por %p417, %p418
    %p421 = scmp.ne.s32.totalorder %s406, %s420
    %p422 = scmp.eq.s32.totalorder %s34, 0
    %p423 = por %p421, %p422
    %s425 = sadd.s32 %s424, 1
    %p428 = scmp.eq.s32.totalorder %s28, 1
    %p429 = scmp.ne.s32.totalorder %s424, %s426
    %p430 = scmp.eq.s32.totalorder %s28, 0
    %p431 = por %p429, %p430
    %p432 = scmp.ne.s32.totalorder %s424, %s426
    %p433 = scmp.eq.s32.totalorder %s33, 1
    %p434 = por %p432, %p433
    %p435 = scmp.ne.s32.totalorder %s426, %s427
    %p436 = scmp.eq.s32.totalorder %s33, 0
    %p437 = por %p435, %p436
    %p438 = scmp.ne.s32.totalorder %s426, %s427
    %p439 = scmp.eq.s32.totalorder %s34, 1
    %p440 = por %p438, %p439
    %p442 = scmp.ne.s32.totalorder %s427, %s441
    %p443 = scmp.eq.s32.totalorder %s34, 0
    %p444 = por %p442, %p443
    %s446 = sadd.s32 %s445, 1
    %p449 = scmp.eq.s32.totalorder %s28, 1
    %p450 = scmp.ne.s32.totalorder %s445, %s447
    %p451 = scmp.eq.s32.totalorder %s28, 0
    %p452 = por %p450, %p451
    %p453 = scmp.ne.s32.totalorder %s445, %s447
    %p454 = scmp.eq.s32.totalorder %s33, 1
    %p455 = por %p453, %p454
    %p456 = scmp.ne.s32.totalorder %s447, %s448
    %p457 = scmp.eq.s32.totalorder %s33, 0
    %p458 = por %p456, %p457
    %p459 = scmp.ne.s32.totalorder %s447, %s448
    %p460 = scmp.eq.s32.totalorder %s34, 1
    %p461 = por %p459, %p460
    %p463 = scmp.ne.s32.totalorder %s448, %s462
    %p464 = scmp.eq.s32.totalorder %s34, 0
    %p465 = por %p463, %p464
    %s466 = ssub.s32 %s28, %s35
    %p467 = scmp.eq.s32.totalorder %s466, 0
    %s469 = sadd.s32 %s468, 1
    %s470 = scalar_select %p467, %s468, %s469
    %p473 = pneg %p467
    %p474 = scmp.eq.s32.totalorder %s28, 1
    %p475 = por %p473, %p474
    %p476 = scmp.ne.s32.totalorder %s468, %s471
    %p477 = scmp.eq.s32.totalorder %s28, 0
    %p478 = por %p476, %p477
    %p479 = scmp.ne.s32.totalorder %s468, %s471
    %p480 = scmp.eq.s32.totalorder %s33, 1
    %p481 = por %p479, %p480
    %p482 = scmp.ne.s32.totalorder %s471, %s472
    %p483 = scmp.eq.s32.totalorder %s33, 0
    %p484 = por %p482, %p483
    %p485 = scmp.ne.s32.totalorder %s471, %s472
    %p486 = scmp.eq.s32.totalorder %s34, 1
    %p487 = por %p485, %p486
    %p489 = scmp.ne.s32.totalorder %s472, %s488
    %p490 = scmp.eq.s32.totalorder %s34, 0
    %p491 = por %p489, %p490
    %p492 = scmp.le.s32.totalorder 1, %s28
    %p493 = scmp.lt.s32.totalorder %s28, 3
    %p494 = pnand %p492, %p493
    %p495 = pneg %p494
    // Predicated region
    $region9: #{bert_pair_pro_forward.1} parent=5 // pred_check
      _
    $region10: #{bert_pair_pro_forward.1} parent=5 // pred_check_branch
      %497 = sbr.rel (%p494) target = $region12
    $region11: #{bert_pair_pro_forward.1} parent=5 // pred_region
      %s498 = ssub.s32 %s28, 1
      // Predicated region
      $region13: #{bert_pair_pro_forward.1} parent=11 // pred_check
        %p499 = pneg %p101
      $region14: #{bert_pair_pro_forward.1} parent=11 // pred_check_branch
        %501 = sbr.rel (%p499) target = $region16
      $region15: #{bert_pair_pro_forward.1} parent=11 // pred_region
        _
      $region16: #{bert_pair_pro_forward.1} parent=11 // pred_fallthru
        _
      // Predicated region
      $region17: #{bert_pair_pro_forward.1} parent=11 // pred_check
        %p502 = pneg %p122
      $region18: #{bert_pair_pro_forward.1} parent=11 // pred_check_branch
        %504 = sbr.rel (%p502) target = $region20
      $region19: #{bert_pair_pro_forward.1} parent=11 // pred_region
        _
      $region20: #{bert_pair_pro_forward.1} parent=11 // pred_fallthru
        _
      // Predicated region
      $region21: #{bert_pair_pro_forward.1} parent=11 // pred_check
        %p505 = pneg %p143
      $region22: #{bert_pair_pro_forward.1} parent=11 // pred_check_branch
        %507 = sbr.rel (%p505) target = $region24
      $region23: #{bert_pair_pro_forward.1} parent=11 // pred_region
        _
      $region24: #{bert_pair_pro_forward.1} parent=11 // pred_fallthru
        _
      // Predicated region
      $region25: #{bert_pair_pro_forward.1} parent=11 // pred_check
        %p508 = pneg %p164
      $region26: #{bert_pair_pro_forward.1} parent=11 // pred_check_branch
        %510 = sbr.rel (%p508) target = $region28
      $region27: #{bert_pair_pro_forward.1} parent=11 // pred_region
        _
      $region28: #{bert_pair_pro_forward.1} parent=11 // pred_fallthru
        _
      // Predicated region
      $region29: #{bert_pair_pro_forward.1} parent=11 // pred_check
        %p511 = pneg %p185
      $region30: #{bert_pair_pro_forward.1} parent=11 // pred_check_branch
        %513 = sbr.rel (%p511) target = $region32
      $region31: #{bert_pair_pro_forward.1} parent=11 // pred_region
        _
      $region32: #{bert_pair_pro_forward.1} parent=11 // pred_fallthru
        _
      // Predicated region
      $region33: #{bert_pair_pro_forward.1} parent=11 // pred_check
        %p514 = pneg %p206
      $region34: #{bert_pair_pro_forward.1} parent=11 // pred_check_branch
        %516 = sbr.rel (%p514) target = $region36
      $region35: #{bert_pair_pro_forward.1} parent=11 // pred_region
        _
      $region36: #{bert_pair_pro_forward.1} parent=11 // pred_fallthru
        _
      // Predicated region
      $region37: #{bert_pair_pro_forward.1} parent=11 // pred_check
        %p517 = pneg %p227
      $region38: #{bert_pair_pro_forward.1} parent=11 // pred_check_branch
        %519 = sbr.rel (%p517) target = $region40
      $region39: #{bert_pair_pro_forward.1} parent=11 // pred_region
        _
      $region40: #{bert_pair_pro_forward.1} parent=11 // pred_fallthru
        _
      // Predicated region
      $region41: #{bert_pair_pro_forward.1} parent=11 // pred_check
        %p520 = pneg %p248
      $region42: #{bert_pair_pro_forward.1} parent=11 // pred_check_branch
        %522 = sbr.rel (%p520) target = $region44
      $region43: #{bert_pair_pro_forward.1} parent=11 // pred_region
        _
      $region44: #{bert_pair_pro_forward.1} parent=11 // pred_fallthru
        _
      // Predicated region
      $region45: #{bert_pair_pro_forward.1} parent=11 // pred_check
        %p523 = pneg %p269
      $region46: #{bert_pair_pro_forward.1} parent=11 // pred_check_branch
        %525 = sbr.rel (%p523) target = $region48
      $region47: #{bert_pair_pro_forward.1} parent=11 // pred_region
        _
      $region48: #{bert_pair_pro_forward.1} parent=11 // pred_fallthru
        _
      // Predicated region
      $region49: #{bert_pair_pro_forward.1} parent=11 // pred_check
        %p526 = pneg %p290
      $region50: #{bert_pair_pro_forward.1} parent=11 // pred_check_branch
        %528 = sbr.rel (%p526) target = $region52
      $region51: #{bert_pair_pro_forward.1} parent=11 // pred_region
        _
      $region52: #{bert_pair_pro_forward.1} parent=11 // pred_fallthru
        _
      // Predicated region
      $region53: #{bert_pair_pro_forward.1} parent=11 // pred_check
        %p529 = pneg %p311
      $region54: #{bert_pair_pro_forward.1} parent=11 // pred_check_branch
        %531 = sbr.rel (%p529) target = $region56
      $region55: #{bert_pair_pro_forward.1} parent=11 // pred_region
        _
      $region56: #{bert_pair_pro_forward.1} parent=11 // pred_fallthru
        _
      // Predicated region
      $region57: #{bert_pair_pro_forward.1} parent=11 // pred_check
        %p532 = pneg %p332
      $region58: #{bert_pair_pro_forward.1} parent=11 // pred_check_branch
        %534 = sbr.rel (%p532) target = $region60
      $region59: #{bert_pair_pro_forward.1} parent=11 // pred_region
        _
      $region60: #{bert_pair_pro_forward.1} parent=11 // pred_fallthru
        _
      // Predicated region
      $region61: #{bert_pair_pro_forward.1} parent=11 // pred_check
        %p535 = pneg %p353
      $region62: #{bert_pair_pro_forward.1} parent=11 // pred_check_branch
        %537 = sbr.rel (%p535) target = $region64
      $region63: #{bert_pair_pro_forward.1} parent=11 // pred_region
        _
      $region64: #{bert_pair_pro_forward.1} parent=11 // pred_fallthru
        _
      // Predicated region
      $region65: #{bert_pair_pro_forward.1} parent=11 // pred_check
        %p538 = pneg %p374
      $region66: #{bert_pair_pro_forward.1} parent=11 // pred_check_branch
        %540 = sbr.rel (%p538) target = $region68
      $region67: #{bert_pair_pro_forward.1} parent=11 // pred_region
        _
      $region68: #{bert_pair_pro_forward.1} parent=11 // pred_fallthru
        _
      // Predicated region
      $region69: #{bert_pair_pro_forward.1} parent=11 // pred_check
        %p541 = pneg %p395
      $region70: #{bert_pair_pro_forward.1} parent=11 // pred_check_branch
        %543 = sbr.rel (%p541) target = $region72
      $region71: #{bert_pair_pro_forward.1} parent=11 // pred_region
        _
      $region72: #{bert_pair_pro_forward.1} parent=11 // pred_fallthru
        _
      // Predicated region
      $region73: #{bert_pair_pro_forward.1} parent=11 // pred_check
        %p544 = pneg %p416
      $region74: #{bert_pair_pro_forward.1} parent=11 // pred_check_branch
        %546 = sbr.rel (%p544) target = $region76
      $region75: #{bert_pair_pro_forward.1} parent=11 // pred_region
        _
      $region76: #{bert_pair_pro_forward.1} parent=11 // pred_fallthru
        _
      // Predicated region
      $region77: #{bert_pair_pro_forward.1} parent=11 // pred_check
        %p547 = pneg %p437
      $region78: #{bert_pair_pro_forward.1} parent=11 // pred_check_branch
        %549 = sbr.rel (%p547) target = $region80
      $region79: #{bert_pair_pro_forward.1} parent=11 // pred_region
        _
      $region80: #{bert_pair_pro_forward.1} parent=11 // pred_fallthru
        _
      // Predicated region
      $region81: #{bert_pair_pro_forward.1} parent=11 // pred_check
        %p550 = pneg %p458
      $region82: #{bert_pair_pro_forward.1} parent=11 // pred_check_branch
        %552 = sbr.rel (%p550) target = $region84
      $region83: #{bert_pair_pro_forward.1} parent=11 // pred_region
        _
      $region84: #{bert_pair_pro_forward.1} parent=11 // pred_fallthru
        _
    $region12: #{bert_pair_pro_forward.1} parent=5 // pred_fallthru
      _
    %p553 = scmp.lt.s32.totalorder %s28, 2
    // Predicated region
    $region85: #{bert_pair_pro_forward.1} parent=5 // pred_check
      %p554 = pneg %p553
    $region86: #{bert_pair_pro_forward.1} parent=5 // pred_check_branch
      %556 = sbr.rel (%p554) target = $region88
    $region87: #{bert_pair_pro_forward.1} parent=5 // pred_region
      // Predicated region
      $region89: #{bert_pair_pro_forward.1} parent=87 // pred_check
        %p557 = pneg %p48
      $region90: #{bert_pair_pro_forward.1} parent=87 // pred_check_branch
        %559 = sbr.rel (%p557) target = $region92
      $region91: #{bert_pair_pro_forward.1} parent=87 // pred_region
        %s560 = smul.u32 4, %s28
        %p561 = scmp.lt.s32.totalorder %s560, 7
        %s562 = scalar_select %p561, %s560, 7
        %s563 = smul.addr %s562, 8
        %s564 = scalar_lea.vmem %s0, %s563
        %s565 = smul.u32 4, %s28
      $region92: #{bert_pair_pro_forward.1} parent=87 // pred_fallthru
        _
      // Predicated region
      $region93: #{bert_pair_pro_forward.1} parent=87 // pred_check
        %p566 = pneg %p74
      $region94: #{bert_pair_pro_forward.1} parent=87 // pred_check_branch
        %568 = sbr.rel (%p566) target = $region96
      $region95: #{bert_pair_pro_forward.1} parent=87 // pred_region
        %p569 = scmp.lt.s32.totalorder %s28, 1
        %s570 = scalar_select %p569, %s28, 1
        %s571 = smul.addr %s570, 4
        %s572 = smul.addr %s571, 8
        %s573 = scalar_lea.vmem %s1, %s572
      $region96: #{bert_pair_pro_forward.1} parent=87 // pred_fallthru
        _
    $region88: #{bert_pair_pro_forward.1} parent=5 // pred_fallthru
      _
    %p574 = scmp.le.s32.totalorder 1, %s28
    %p575 = scmp.lt.s32.totalorder %s28, 3
    %p576 = pnand %p574, %p575
    %p577 = pneg %p576
    // Predicated region
    $region97: #{bert_pair_pro_forward.1} parent=5 // pred_check
      _
    $region98: #{bert_pair_pro_forward.1} parent=5 // pred_check_branch
      %579 = sbr.rel (%p576) target = $region100
    $region99: #{bert_pair_pro_forward.1} parent=5 // pred_region
      %s580 = ssub.s32 %s28, 1
      %s581 = smul.u32 4, %s33
      %p582 = scmp.lt.s32.totalorder %s581, 7
      %s583 = scalar_select %p582, %s581, 7
      %s584 = smul.addr %s583, 8
      %s585 = scalar_lea.vmem %s0, %s584
      %p586 = pneg %p54
      %p587 = pneg %p51
      %p588 = scmp.lt.s32.totalorder %s33, 1
      %s589 = scalar_select %p588, %s33, 1
      %s590 = smul.addr %s589, 4
      %s591 = smul.addr %s590, 8
      %s592 = scalar_lea.vmem %s1, %s591
      %p593 = pneg %p80
      %p594 = pneg %p77
      %p595 = pneg %p101
      %p596 = pneg %p98
      %p597 = pneg %p122
      %p598 = pneg %p119
      %p599 = pneg %p143
      %p600 = pneg %p140
      %p601 = pneg %p164
      %p602 = pneg %p161
      %p603 = pneg %p185
      %p604 = pneg %p182
      %p605 = pneg %p206
      %p606 = pneg %p203
      %p607 = pneg %p227
      %p608 = pneg %p224
      %p609 = pneg %p248
      %p610 = pneg %p245
      %p611 = pneg %p269
      %p612 = pneg %p266
      %p613 = pneg %p290
      %p614 = pneg %p287
      %p615 = pneg %p311
      %p616 = pneg %p308
      %p617 = pneg %p332
      %p618 = pneg %p329
      %p619 = pneg %p353
      %p620 = pneg %p350
      %p621 = pneg %p374
      %p622 = pneg %p371
      %p623 = pneg %p395
      %p624 = pneg %p392
      %p625 = pneg %p416
      %p626 = pneg %p413
      %p627 = pneg %p437
      %p628 = pneg %p434
      %p629 = pneg %p458
      %p630 = pneg %p455
      %p631 = pneg %p484
      %p632 = pneg %p481
      %s633 = smul.u32 4, %s33
      %p634 = scmp.lt.s32.totalorder %s633, 7
      %s635 = scalar_select %p634, %s633, 7
      %s636 = smul.addr %s635, 8
      %s637 = scalar_lea.vmem %s20, %s636
      %s638 = smul.u32 4, %s33
      %p639 = scmp.lt.s32.totalorder %s638, 7
      %s640 = scalar_select %p639, %s638, 7
      %s641 = smul.addr %s640, 8
      %s642 = scalar_lea.vmem %s0, %s641
      %s643 = smul.u32 4, %s33
      %p644 = scmp.lt.s32.totalorder %s33, 1
      %s645 = scalar_select %p644, %s33, 1
      %s646 = smul.addr %s645, 4
      %s647 = smul.addr %s646, 8
      %s648 = scalar_lea.vmem %s1, %s647
      %s649 = smul.u32 4, %s33
      %p650 = scmp.lt.s32.totalorder %s649, 7
      %s651 = scalar_select %p650, %s649, 7
      %s652 = smul.addr %s651, 8
      %s653 = scalar_lea.vmem %s20, %s652
      %s654 = smul.u32 4, %s33
      %v656 = vld [vmem:[%s648] sm:$0xff]
      %v657 = vld [vmem:[%s648 + $0x8] sm:$0xff]
      %v658 = vld [vmem:[%s648 + $0x10] sm:$0xff]
      %v659 = vld [vmem:[%s648 + $0x18] sm:$0xff]
      %v660 = vld [vmem:[%s642] sm:$0xff]
      %v661 = vld [vmem:[%s642 + $0x8] sm:$0xff]
      %v662 = vld [vmem:[%s642 + $0x10] sm:$0xff]
      %v663 = vld [vmem:[%s642 + $0x18] sm:$0xff]
      %v664 = vld [vmem:[%s2] sm:$0x1]
      %v665 = vld [vmem:[%s3] sm:$0x1]
      %666 = vadd.xlane.f32.xlu0 %v660
      %v667 = vpop.xlane.xlu0 %666
      %668 = vadd.xlane.f32.xlu0 %v661
      %v669 = vpop.xlane.xlu0 %668
      %670 = vadd.xlane.f32.xlu0 %v662
      %v671 = vpop.xlane.xlu0 %670
      %672 = vadd.xlane.f32.xlu0 %v663
      %v673 = vpop.xlane.xlu0 %672
      %v674 = vrcp.pop 128.0
      %v675 = vmul.f32 %v667, %v674
      %v676 = vmul.f32 %v669, %v674
      %v677 = vmul.f32 %v671, %v674
      %v678 = vmul.f32 %v673, %v674
      %v679 = vsub.f32 %v660, %v675
      %v680 = vsub.f32 %v661, %v676
      %v681 = vsub.f32 %v662, %v677
      %v682 = vsub.f32 %v663, %v678
      %v683 = vmul.f32 %v679, %v679
      %v684 = vmul.f32 %v680, %v680
      %v685 = vmul.f32 %v681, %v681
      %v686 = vmul.f32 %v682, %v682
      %687 = vadd.xlane.f32.xlu0 %v683
      %v688 = vpop.xlane.xlu0 %687
      %689 = vadd.xlane.f32.xlu0 %v684
      %v690 = vpop.xlane.xlu0 %689
      %691 = vadd.xlane.f32.xlu0 %v685
      %v692 = vpop.xlane.xlu0 %691
      %693 = vadd.xlane.f32.xlu0 %v686
      %v694 = vpop.xlane.xlu0 %693
      %v695 = vmul.f32 %v688, %v674
      %v696 = vmul.f32 %v690, %v674
      %v697 = vmul.f32 %v692, %v674
      %v698 = vmul.f32 %v694, %v674
      %v699 = vadd.f32 %v695, 1e-12
      %v700 = vadd.f32 %v696, 1e-12
      %v701 = vadd.f32 %v697, 1e-12
      %v702 = vadd.f32 %v698, 1e-12
      %v703 = vrsqrt.pop %v699
      %v704 = vrsqrt.pop %v700
      %v705 = vrsqrt.pop %v701
      %v706 = vrsqrt.pop %v702
      %v707 = vmul.f32 %v679, %v703
      %v708 = vmul.f32 %v680, %v704
      %v709 = vmul.f32 %v681, %v705
      %v710 = vmul.f32 %v682, %v706
      %v712 = vlaneseq
      %v713 = vshrl.u32 %v712, 7
      %v714 = vsub.s32 0, %v713
      %v715 = vrot.slane %v664, %v714
      %v717 = vmul.f32 %v707, %v715
      %v718 = vmul.f32 %v708, %v715
      %v719 = vmul.f32 %v709, %v715
      %v720 = vmul.f32 %v710, %v715
      %v722 = vlaneseq
      %v723 = vshrl.u32 %v722, 7
      %v724 = vsub.s32 0, %v723
      %v725 = vrot.slane %v665, %v724
      %v727 = vadd.f32 %v717, %v725
      %v728 = vadd.f32 %v718, %v725
      %v729 = vadd.f32 %v719, %v725
      %v730 = vadd.f32 %v720, %v725
      %v731 = vpack.c.bf16 %v728, %v727
      %v732 = vpack.c.bf16 %v730, %v729
      %v733 = vld [vmem:[%s4] sm:$0xff]
      %v734 = vld [vmem:[%s4 + $0x8] sm:$0xf]
      %v735 = vld [vmem:[%s4 + $0xc] sm:$0xff]
      %v736 = vld [vmem:[%s4 + $0x14] sm:$0xf]
      %v737 = vld [vmem:[%s4 + $0x18] sm:$0xff]
      %v738 = vld [vmem:[%s4 + $0x20] sm:$0xf]
      %v739 = vld [vmem:[%s4 + $0x24] sm:$0xff]
      %v740 = vld [vmem:[%s4 + $0x2c] sm:$0xf]
      %v741 = vld [vmem:[%s4 + $0x30] sm:$0xff]
      %v742 = vld [vmem:[%s4 + $0x38] sm:$0xf]
      %v743 = vld [vmem:[%s4 + $0x3c] sm:$0xff]
      %v744 = vld [vmem:[%s4 + $0x44] sm:$0xf]
      %v745 = vld [vmem:[%s4 + $0x48] sm:$0xff]
      %v746 = vld [vmem:[%s4 + $0x50] sm:$0xf]
      %v747 = vld [vmem:[%s4 + $0x54] sm:$0xff]
      %v748 = vld [vmem:[%s4 + $0x5c] sm:$0xf]
      %v749 = vld [vmem:[%s4 + $0x60] sm:$0xff]
      %v750 = vld [vmem:[%s4 + $0x68] sm:$0xf]
      %v751 = vld [vmem:[%s4 + $0x6c] sm:$0xff]
      %v752 = vld [vmem:[%s4 + $0x74] sm:$0xf]
      %v753 = vld [vmem:[%s4 + $0x78] sm:$0xff]
      %v754 = vld [vmem:[%s4 + $0x80] sm:$0xf]
      %v755 = vld [vmem:[%s4 + $0x84] sm:$0xff]
      %v756 = vld [vmem:[%s4 + $0x8c] sm:$0xf]
      %v757 = vld [vmem:[%s4 + $0x90] sm:$0xff]
      %v758 = vld [vmem:[%s4 + $0x98] sm:$0xf]
      %v759 = vld [vmem:[%s4 + $0x9c] sm:$0xff]
      %v760 = vld [vmem:[%s4 + $0xa4] sm:$0xf]
      %v761 = vld [vmem:[%s4 + $0xa8] sm:$0xff]
      %v762 = vld [vmem:[%s4 + $0xb0] sm:$0xf]
      %v763 = vld [vmem:[%s4 + $0xb4] sm:$0xff]
      %v764 = vld [vmem:[%s4 + $0xbc] sm:$0xf]
      %v765 = vld [vmem:[%s5] sm:$0x7]
      %v767 = vlaneseq
      %v768 = vshrl.u32 %v767, 7
      %v769 = vsub.s32 0, %v768
      %v770 = vrot.slane %v765, %v769
      %v771 = vlaneseq
      %v772 = vshrl.u32 %v771, 7
      %v773 = vsub.s32 1, %v772
      %v774 = vrot.slane %v765, %v773
      %v775 = vlaneseq
      %v776 = vshrl.u32 %v775, 7
      %v777 = vsub.s32 2, %v776
      %v778 = vrot.slane %v765, %v777
      %v814 = vunpack.c.l.b16 %v733
      %v815 = vunpack.c.h.b16 %v733
      %v816 = vunpack.c.l.b16 %v734
      %v817 = vunpack.c.l.b16 %v735
      %v818 = vunpack.c.h.b16 %v735
      %v819 = vunpack.c.l.b16 %v736
      %v820 = vunpack.c.l.b16 %v737
      %v821 = vunpack.c.h.b16 %v737
      %v822 = vunpack.c.l.b16 %v738
      %v823 = vunpack.c.l.b16 %v739
      %v824 = vunpack.c.h.b16 %v739
      %v825 = vunpack.c.l.b16 %v740
      %v826 = vunpack.c.l.b16 %v741
      %v827 = vunpack.c.h.b16 %v741
      %v828 = vunpack.c.l.b16 %v742
      %v829 = vunpack.c.l.b16 %v743
      %v830 = vunpack.c.h.b16 %v743
      %v831 = vunpack.c.l.b16 %v744
      %v832 = vunpack.c.l.b16 %v745
      %v833 = vunpack.c.h.b16 %v745
      %v834 = vunpack.c.l.b16 %v746
      %v835 = vunpack.c.l.b16 %v747
      %v836 = vunpack.c.h.b16 %v747
      %v837 = vunpack.c.l.b16 %v748
      %v838 = vunpack.c.l.b16 %v749
      %v839 = vunpack.c.h.b16 %v749
      %v840 = vunpack.c.l.b16 %v750
      %v841 = vunpack.c.l.b16 %v751
      %v842 = vunpack.c.h.b16 %v751
      %v843 = vunpack.c.l.b16 %v752
      %v844 = vunpack.c.l.b16 %v753
      %v845 = vunpack.c.h.b16 %v753
      %v846 = vunpack.c.l.b16 %v754
      %v847 = vunpack.c.l.b16 %v755
      %v848 = vunpack.c.h.b16 %v755
      %v849 = vunpack.c.l.b16 %v756
      %v850 = vunpack.c.l.b16 %v757
      %v851 = vunpack.c.h.b16 %v757
      %v852 = vunpack.c.l.b16 %v758
      %v853 = vunpack.c.l.b16 %v759
      %v854 = vunpack.c.h.b16 %v759
      %v855 = vunpack.c.l.b16 %v760
      %v856 = vunpack.c.l.b16 %v761
      %v857 = vunpack.c.h.b16 %v761
      %v858 = vunpack.c.l.b16 %v762
      %v859 = vunpack.c.l.b16 %v763
      %v860 = vunpack.c.h.b16 %v763
      %v861 = vunpack.c.l.b16 %v764
      %v862 = vpack.c.b16 %v817, %v814
      %v863 = vpack.c.b16 %v818, %v815
      %v864 = vpack.c.b16 %v819, %v816
      %v865 = vpack.c.b16 %v823, %v820
      %v866 = vpack.c.b16 %v824, %v821
      %v867 = vpack.c.b16 %v825, %v822
      %v868 = vpack.c.b16 %v829, %v826
      %v869 = vpack.c.b16 %v830, %v827
      %v870 = vpack.c.b16 %v831, %v828
      %v871 = vpack.c.b16 %v835, %v832
      %v872 = vpack.c.b16 %v836, %v833
      %v873 = vpack.c.b16 %v837, %v834
      %v874 = vpack.c.b16 %v841, %v838
      %v875 = vpack.c.b16 %v842, %v839
      %v876 = vpack.c.b16 %v843, %v840
      %v877 = vpack.c.b16 %v847, %v844
      %v878 = vpack.c.b16 %v848, %v845
      %v879 = vpack.c.b16 %v849, %v846
      %v880 = vpack.c.b16 %v853, %v850
      %v881 = vpack.c.b16 %v854, %v851
      %v882 = vpack.c.b16 %v855, %v852
      %v883 = vpack.c.b16 %v859, %v856
      %v884 = vpack.c.b16 %v860, %v857
      %v885 = vpack.c.b16 %v861, %v858
      %910 = vmatprep.subr.bf16.mxu0 %v884
      %911 = vmatpush1.bf16.msra.mxu0 %v883
      %912 = vmatprep.subr.bf16.mxu0 %v881
      %913 = vmatpush1.bf16.msra.mxu0 %v880
      %914 = vmatprep.subr.bf16.mxu0 %v878
      %915 = vmatpush1.bf16.msra.mxu0 %v877
      %916 = vmatprep.subr.bf16.mxu0 %v875
      %917 = vmatpush1.bf16.msra.mxu0 %v874
      %918 = vmatprep.subr.bf16.mxu0 %v872
      %919 = vmatpush1.bf16.msra.mxu0 %v871
      %920 = vmatprep.subr.bf16.mxu0 %v869
      %921 = vmatpush1.bf16.msra.mxu0 %v868
      %922 = vmatprep.subr.bf16.mxu0 %v866
      %923 = vmatpush1.bf16.msra.mxu0 %v865
      %924 = vmatprep.subr.bf16.mxu0 %v863
      %925 = vmatpush1.bf16.msra.mxu0 %v862
      %926 = vmatprep.subr.bf16.mxu0 0
      %927 = vmatpush2.bf16.msra.mxu0 0
      %928 = vmatprep.subr.bf16.mxu0 0
      %929 = vmatpush2.bf16.msra.mxu0 0
      %930 = vmatprep.subr.bf16.mxu0 0
      %931 = vmatpush2.bf16.msra.mxu0 0
      %932 = vmatprep.subr.bf16.mxu0 0
      %933 = vmatpush2.bf16.msra.mxu0 0
      %934 = vmatprep.subr.bf16.mxu0 0
      %935 = vmatpush2.bf16.msra.mxu0 0
      %936 = vmatprep.subr.bf16.mxu0 0
      %937 = vmatpush2.bf16.msra.mxu0 0
      %938 = vmatprep.subr.bf16.mxu0 0
      %939 = vmatpush2.bf16.msra.mxu0 0
      %940 = vmatprep.subr.bf16.mxu0 0
      %941 = vmatpush2.bf16.msra.mxu0 0
      %942 = vmatprep.mubr.bf16.mxu0 0
      %943 = vmatmul.mubr.bf16.gmra.mxu0 %v731
      %v944 = vpop.f32.mrf.mxu0
      %v945 = vadd.f32 %v770, %v944
      %v946 = vpop.f32.mrf.mxu0
      %v947 = vadd.f32 %v774, %v946
      %v948 = vpop.f32.mrf.mxu0
      %v949 = vadd.f32 %v770, %v948
      %v950 = vpop.f32.mrf.mxu0
      %v951 = vadd.f32 %v774, %v950
      %952 = vmatprep.mubr.bf16.mxu0 0
      %953 = vmatmul.mubr.bf16.gmra.mxu0 %v732
      %v954 = vpop.f32.mrf.mxu0
      %v955 = vadd.f32 %v770, %v954
      %v956 = vpop.f32.mrf.mxu0
      %v957 = vadd.f32 %v774, %v956
      %v958 = vpop.f32.mrf.mxu0
      %v959 = vadd.f32 %v770, %v958
      %v960 = vpop.f32.mrf.mxu0
      %v961 = vadd.f32 %v774, %v960
      %962 = vdwg.mxu0
      %963 = vmatprep.subr.bf16.mxu0 0
      %964 = vmatpush1.bf16.msra.mxu0 %v885
      %965 = vmatprep.subr.bf16.mxu0 0
      %966 = vmatpush1.bf16.msra.mxu0 %v882
      %967 = vmatprep.subr.bf16.mxu0 0
      %968 = vmatpush1.bf16.msra.mxu0 %v879
      %969 = vmatprep.subr.bf16.mxu0 0
      %970 = vmatpush1.bf16.msra.mxu0 %v876
      %971 = vmatprep.subr.bf16.mxu0 0
      %972 = vmatpush1.bf16.msra.mxu0 %v873
      %973 = vmatprep.subr.bf16.mxu0 0
      %974 = vmatpush1.bf16.msra.mxu0 %v870
      %975 = vmatprep.subr.bf16.mxu0 0
      %976 = vmatpush1.bf16.msra.mxu0 %v867
      %977 = vmatprep.subr.bf16.mxu0 0
      %978 = vmatpush1.bf16.msra.mxu0 %v864
      %979 = vmatprep.subr.bf16.mxu0 0
      %980 = vmatpush2.bf16.msra.mxu0 0
      %981 = vmatprep.subr.bf16.mxu0 0
      %982 = vmatpush2.bf16.msra.mxu0 0
      %983 = vmatprep.subr.bf16.mxu0 0
      %984 = vmatpush2.bf16.msra.mxu0 0
      %985 = vmatprep.subr.bf16.mxu0 0
      %986 = vmatpush2.bf16.msra.mxu0 0
      %987 = vmatprep.subr.bf16.mxu0 0
      %988 = vmatpush2.bf16.msra.mxu0 0
      %989 = vmatprep.subr.bf16.mxu0 0
      %990 = vmatpush2.bf16.msra.mxu0 0
      %991 = vmatprep.subr.bf16.mxu0 0
      %992 = vmatpush2.bf16.msra.mxu0 0
      %993 = vmatprep.subr.bf16.mxu0 0
      %994 = vmatpush2.bf16.msra.mxu0 0
      %995 = vmatprep.mubr.bf16.mxu0 0
      %996 = vmatmul.mubr.bf16.gmra.mxu0 %v731
      %v997 = vpop.f32.mrf.mxu0
      %v998 = vadd.f32 %v778, %v997
      %v999 = vpop.f32.mrf.mxu0
      %v1000 = vpop.f32.mrf.mxu0
      %v1001 = vadd.f32 %v778, %v1000
      %v1002 = vpop.f32.mrf.mxu0
      %1003 = vmatprep.mubr.bf16.mxu0 0
      %1004 = vmatmul.mubr.bf16.gmra.mxu0 %v732
      %v1005 = vpop.f32.mrf.mxu0
      %v1006 = vadd.f32 %v778, %v1005
      %v1007 = vpop.f32.mrf.mxu0
      %v1008 = vpop.f32.mrf.mxu0
      %v1009 = vadd.f32 %v778, %v1008
      %v1010 = vpop.f32.mrf.mxu0
      %1011 = vdwg.mxu0
      %v1012 = vld [vmem:[%s7] sm:$0x1]
      %v1013 = vpack.c.bf16 %v949, %v945
      %v1014 = vpack.c.bf16 %v959, %v955
      %v1015 = vpack.c.bf16 %v951, %v947
      %v1016 = vpack.c.bf16 %v961, %v957
      %v1017 = vpack.c.bf16 %v1001, %v998
      %v1018 = vpack.c.bf16 %v1009, %v1006
      %vm1019 = vcmask 523264
      %v1021 = vsel %vm1019, %v1013, 0
      %v1024 = vsel %vm1019, %v1014, 0
      %v1027 = vsel %vm1019, %v1015, 0
      %v1030 = vsel %vm1019, %v1016, 0
      %1032 = vmatprep.subr.bf16.mxu0 0
      %1033 = vmatpush1.bf16.xpose.msra.mxu0 0
      %1034 = vmatprep.subr.bf16.mxu0 0
      %1035 = vmatpush1.bf16.xpose.msra.mxu0 0
      %1036 = vmatprep.subr.bf16.mxu0 0
      %1037 = vmatpush1.bf16.xpose.msra.mxu0 0
      %1038 = vmatprep.subr.bf16.mxu0 0
      %1039 = vmatpush1.bf16.xpose.msra.mxu0 0
      %1040 = vmatprep.subr.bf16.mxu0 0
      %1041 = vmatpush1.bf16.xpose.msra.mxu0 0
      %1042 = vmatprep.subr.bf16.mxu0 0
      %1043 = vmatpush1.bf16.xpose.msra.mxu0 0
      %1044 = vmatprep.subr.bf16.mxu0 0
      %1045 = vmatpush1.bf16.xpose.msra.mxu0 %v1030
      %1046 = vmatprep.subr.bf16.mxu0 0
      %1047 = vmatpush1.bf16.xpose.msra.mxu0 %v1027
      %1048 = vmatprep.subr.bf16.mxu0 0
      %1049 = vmatpush2.bf16.xpose.msra.mxu0 0
      %1050 = vmatprep.subr.bf16.mxu0 0
      %1051 = vmatpush2.bf16.xpose.msra.mxu0 0
      %1052 = vmatprep.subr.bf16.mxu0 0
      %1053 = vmatpush2.bf16.xpose.msra.mxu0 0
      %1054 = vmatprep.subr.bf16.mxu0 0
      %1055 = vmatpush2.bf16.xpose.msra.mxu0 0
      %1056 = vmatprep.subr.bf16.mxu0 0
      %1057 = vmatpush2.bf16.xpose.msra.mxu0 0
      %1058 = vmatprep.subr.bf16.mxu0 0
      %1059 = vmatpush2.bf16.xpose.msra.mxu0 0
      %1060 = vmatprep.subr.bf16.mxu0 0
      %1061 = vmatpush2.bf16.xpose.msra.mxu0 0
      %1062 = vmatprep.subr.bf16.mxu0 0
      %1063 = vmatpush2.bf16.xpose.msra.mxu0 0
      %1064 = vmatprep.mubr.bf16.mxu0 0
      %1065 = vmatmul.mubr.bf16.gmra.mxu0 %v1021
      %v1066 = vpop.f32.mrf.mxu0
      %v1067 = vadd.f32 %v656, %v1066
      %v1068 = vpop.f32.mrf.mxu0
      %v1069 = vpop.f32.mrf.mxu0
      %v1070 = vadd.f32 %v657, %v1069
      %v1071 = vpop.f32.mrf.mxu0
      %1072 = vmatprep.mubr.bf16.mxu0 0
      %1073 = vmatmul.mubr.bf16.gmra.mxu0 %v1024
      %v1074 = vpop.f32.mrf.mxu0
      %v1075 = vadd.f32 %v658, %v1074
      %v1076 = vpop.f32.mrf.mxu0
      %v1077 = vpop.f32.mrf.mxu0
      %v1078 = vadd.f32 %v659, %v1077
      %v1079 = vpop.f32.mrf.mxu0
      %1080 = vdwg.mxu0
      %vm1081 = vcmask 261120
      %v1082 = vsel %vm1081, %v1067, -inf
      %1083 = vmax.xlane.f32.xlu0 %v1082
      %v1084 = vpop.xlane.xlu0 %1083
      %v1085 = vsel %vm1081, %v1070, -inf
      %1086 = vmax.xlane.f32.xlu0 %v1085
      %v1087 = vpop.xlane.xlu0 %1086
      %v1088 = vsel %vm1081, %v1075, -inf
      %1089 = vmax.xlane.f32.xlu0 %v1088
      %v1090 = vpop.xlane.xlu0 %1089
      %v1091 = vsel %vm1081, %v1078, -inf
      %1092 = vmax.xlane.f32.xlu0 %v1091
      %v1093 = vpop.xlane.xlu0 %1092
      %v1094 = vsub.f32 %v1067, %v1084
      %v1095 = vsub.f32 %v1070, %v1087
      %v1096 = vsub.f32 %v1075, %v1090
      %v1097 = vsub.f32 %v1078, %v1093
      %v1098 = vmul.f32 %v1094, 1.442695
      %v1099 = vpow.pop %v1098
      %v1100 = vmul.f32 %v1095, 1.442695
      %v1101 = vpow.pop %v1100
      %v1102 = vmul.f32 %v1096, 1.442695
      %v1103 = vpow.pop %v1102
      %v1104 = vmul.f32 %v1097, 1.442695
      %v1105 = vpow.pop %v1104
      %v1106 = vsel %vm1081, %v1099, 0.0
      %1107 = vadd.xlane.f32.xlu0 %v1106
      %v1108 = vpop.xlane.xlu0 %1107
      %v1109 = vsel %vm1081, %v1101, 0.0
      %1110 = vadd.xlane.f32.xlu0 %v1109
      %v1111 = vpop.xlane.xlu0 %1110
      %v1112 = vsel %vm1081, %v1103, 0.0
      %1113 = vadd.xlane.f32.xlu0 %v1112
      %v1114 = vpop.xlane.xlu0 %1113
      %v1115 = vsel %vm1081, %v1105, 0.0
      %1116 = vadd.xlane.f32.xlu0 %v1115
      %v1117 = vpop.xlane.xlu0 %1116
      %v1118 = vrcp.pop %v1108
      %v1119 = vrcp.pop %v1111
      %v1120 = vrcp.pop %v1114
      %v1121 = vrcp.pop %v1117
      %v1122 = vmul.f32 %v1099, %v1118
      %v1123 = vmul.f32 %v1101, %v1119
      %v1124 = vmul.f32 %v1103, %v1120
      %v1125 = vmul.f32 %v1105, %v1121
      %v1126 = vpack.c.bf16 %v1123, %v1122
      %v1127 = vpack.c.bf16 %v1125, %v1124
      %v1129 = vsel %vm1081, %v1126, 0
      %v1132 = vsel %vm1081, %v1127, 0
      %1134 = vmatprep.subr.bf16.mxu0 0
      %1135 = vmatpush1.bf16.msra.mxu0 0
      %1136 = vmatprep.subr.bf16.mxu0 0
      %1137 = vmatpush1.bf16.msra.mxu0 0
      %1138 = vmatprep.subr.bf16.mxu0 0
      %1139 = vmatpush1.bf16.msra.mxu0 0
      %1140 = vmatprep.subr.bf16.mxu0 0
      %1141 = vmatpush1.bf16.msra.mxu0 0
      %1142 = vmatprep.subr.bf16.mxu0 0
      %1143 = vmatpush1.bf16.msra.mxu0 0
      %1144 = vmatprep.subr.bf16.mxu0 0
      %1145 = vmatpush1.bf16.msra.mxu0 0
      %1146 = vmatprep.subr.bf16.mxu0 0
      %1147 = vmatpush1.bf16.msra.mxu0 %v1018
      %1148 = vmatprep.subr.bf16.mxu0 0
      %1149 = vmatpush1.bf16.msra.mxu0 %v1017
      %1150 = vmatprep.subr.bf16.mxu0 0
      %1151 = vmatpush2.bf16.msra.mxu0 0
      %1152 = vmatprep.subr.bf16.mxu0 0
      %1153 = vmatpush2.bf16.msra.mxu0 0
      %1154 = vmatprep.subr.bf16.mxu0 0
      %1155 = vmatpush2.bf16.msra.mxu0 0
      %1156 = vmatprep.subr.bf16.mxu0 0
      %1157 = vmatpush2.bf16.msra.mxu0 0
      %1158 = vmatprep.subr.bf16.mxu0 0
      %1159 = vmatpush2.bf16.msra.mxu0 0
      %1160 = vmatprep.subr.bf16.mxu0 0
      %1161 = vmatpush2.bf16.msra.mxu0 0
      %1162 = vmatprep.subr.bf16.mxu0 0
      %1163 = vmatpush2.bf16.msra.mxu0 0
      %1164 = vmatprep.subr.bf16.mxu0 0
      %1165 = vmatpush2.bf16.msra.mxu0 0
      %1166 = vmatprep.mubr.bf16.mxu0 0
      %1167 = vmatmul.mubr.bf16.gmra.mxu0 %v1129
      %v1168 = vpop.f32.mrf.mxu0
      %v1169 = vadd.f32 0.0, %v1168
      %v1170 = vpop.f32.mrf.mxu0
      %v1171 = vpop.f32.mrf.mxu0
      %v1172 = vadd.f32 0.0, %v1171
      %v1173 = vpop.f32.mrf.mxu0
      %1174 = vmatprep.mubr.bf16.mxu0 0
      %1175 = vmatmul.mubr.bf16.gmra.mxu0 %v1132
      %v1176 = vpop.f32.mrf.mxu0
      %v1177 = vadd.f32 0.0, %v1176
      %v1178 = vpop.f32.mrf.mxu0
      %v1179 = vpop.f32.mrf.mxu0
      %v1180 = vadd.f32 0.0, %v1179
      %v1181 = vpop.f32.mrf.mxu0
      %1182 = vdwg.mxu0
      %v1183 = vpack.c.bf16 %v1172, %v1169
      %v1184 = vpack.c.bf16 %v1180, %v1177
      %v1185 = vld [vmem:[%s6] sm:$0xf]
      %v1186 = vld [vmem:[%s6 + $0x4] sm:$0xf]
      %v1187 = vld [vmem:[%s6 + $0x8] sm:$0xf]
      %v1188 = vld [vmem:[%s6 + $0xc] sm:$0xf]
      %v1189 = vld [vmem:[%s6 + $0x10] sm:$0xf]
      %v1190 = vld [vmem:[%s6 + $0x14] sm:$0xf]
      %v1191 = vld [vmem:[%s6 + $0x18] sm:$0xf]
      %v1192 = vld [vmem:[%s6 + $0x1c] sm:$0xf]
      %v1201 = vunpack.c.l.b16 %v1185
      %v1202 = vunpack.c.l.b16 %v1186
      %v1203 = vunpack.c.l.b16 %v1187
      %v1204 = vunpack.c.l.b16 %v1188
      %v1205 = vunpack.c.l.b16 %v1189
      %v1206 = vunpack.c.l.b16 %v1190
      %v1207 = vunpack.c.l.b16 %v1191
      %v1208 = vunpack.c.l.b16 %v1192
      %v1209 = vpack.c.b16 %v1202, %v1201
      %v1210 = vpack.c.b16 %v1204, %v1203
      %v1211 = vpack.c.b16 %v1206, %v1205
      %v1212 = vpack.c.b16 %v1208, %v1207
      %v1218 = vsel %vm1019, %v1183, 0
      %v1221 = vsel %vm1019, %v1184, 0
      %1223 = vmatprep.subr.bf16.mxu0 0
      %1224 = vmatpush1.bf16.msra.mxu0 0
      %1225 = vmatprep.subr.bf16.mxu0 0
      %1226 = vmatpush1.bf16.msra.mxu0 0
      %1227 = vmatprep.subr.bf16.mxu0 0
      %1228 = vmatpush1.bf16.msra.mxu0 0
      %1229 = vmatprep.subr.bf16.mxu0 0
      %1230 = vmatpush1.bf16.msra.mxu0 0
      %1231 = vmatprep.subr.bf16.mxu0 0
      %1232 = vmatpush1.bf16.msra.mxu0 %v1212
      %1233 = vmatprep.subr.bf16.mxu0 0
      %1234 = vmatpush1.bf16.msra.mxu0 %v1211
      %1235 = vmatprep.subr.bf16.mxu0 0
      %1236 = vmatpush1.bf16.msra.mxu0 %v1210
      %1237 = vmatprep.subr.bf16.mxu0 0
      %1238 = vmatpush1.bf16.msra.mxu0 %v1209
      %1239 = vmatprep.subr.bf16.mxu0 0
      %1240 = vmatpush2.bf16.msra.mxu0 0
      %1241 = vmatprep.subr.bf16.mxu0 0
      %1242 = vmatpush2.bf16.msra.mxu0 0
      %1243 = vmatprep.subr.bf16.mxu0 0
      %1244 = vmatpush2.bf16.msra.mxu0 0
      %1245 = vmatprep.subr.bf16.mxu0 0
      %1246 = vmatpush2.bf16.msra.mxu0 0
      %1247 = vmatprep.subr.bf16.mxu0 0
      %1248 = vmatpush2.bf16.msra.mxu0 0
      %1249 = vmatprep.subr.bf16.mxu0 0
      %1250 = vmatpush2.bf16.msra.mxu0 0
      %1251 = vmatprep.subr.bf16.mxu0 0
      %1252 = vmatpush2.bf16.msra.mxu0 0
      %1253 = vmatprep.subr.bf16.mxu0 0
      %1254 = vmatpush2.bf16.msra.mxu0 0
      %1255 = vmatprep.mubr.bf16.mxu0 0
      %1256 = vmatmul.mubr.bf16.gmra.mxu0 %v1218
      %v1257 = vpop.f32.mrf.mxu0
      %v1258 = vadd.f32 0.0, %v1257
      %v1259 = vpop.f32.mrf.mxu0
      %v1260 = vpop.f32.mrf.mxu0
      %v1261 = vadd.f32 0.0, %v1260
      %v1262 = vpop.f32.mrf.mxu0
      %1263 = vmatprep.mubr.bf16.mxu0 0
      %1264 = vmatmul.mubr.bf16.gmra.mxu0 %v1221
      %v1265 = vpop.f32.mrf.mxu0
      %v1266 = vadd.f32 0.0, %v1265
      %v1267 = vpop.f32.mrf.mxu0
      %v1268 = vpop.f32.mrf.mxu0
      %v1269 = vadd.f32 0.0, %v1268
      %v1270 = vpop.f32.mrf.mxu0
      %1271 = vdwg.mxu0
      %v1273 = vlaneseq
      %v1274 = vshrl.u32 %v1273, 7
      %v1275 = vsub.s32 0, %v1274
      %v1276 = vrot.slane %v1012, %v1275
      %v1278 = vadd.f32 %v1276, %v1258
      %v1279 = vadd.f32 %v1276, %v1261
      %v1280 = vadd.f32 %v1276, %v1266
      %v1281 = vadd.f32 %v1276, %v1269
      %1284 = vrot.lane.b32.xlu0 %v1013, 64
      %v1285 = vpop.permute.xlu0 %1284
      %1286 = vrot.lane.b32.xlu0 %v1014, 64
      %v1287 = vpop.permute.xlu0 %1286
      %1290 = vrot.lane.b32.xlu0 %v1015, 64
      %v1291 = vpop.permute.xlu0 %1290
      %1292 = vrot.lane.b32.xlu0 %v1016, 64
      %v1293 = vpop.permute.xlu0 %1292
      %v1295 = vsel %vm1019, %v1285, 0
      %v1298 = vsel %vm1019, %v1287, 0
      %v1301 = vsel %vm1019, %v1291, 0
      %v1304 = vsel %vm1019, %v1293, 0
      %1306 = vmatprep.subr.bf16.mxu0 0
      %1307 = vmatpush1.bf16.xpose.msra.mxu0 0
      %1308 = vmatprep.subr.bf16.mxu0 0
      %1309 = vmatpush1.bf16.xpose.msra.mxu0 0
      %1310 = vmatprep.subr.bf16.mxu0 0
      %1311 = vmatpush1.bf16.xpose.msra.mxu0 0
      %1312 = vmatprep.subr.bf16.mxu0 0
      %1313 = vmatpush1.bf16.xpose.msra.mxu0 0
      %1314 = vmatprep.subr.bf16.mxu0 0
      %1315 = vmatpush1.bf16.xpose.msra.mxu0 0
      %1316 = vmatprep.subr.bf16.mxu0 0
      %1317 = vmatpush1.bf16.xpose.msra.mxu0 0
      %1318 = vmatprep.subr.bf16.mxu0 0
      %1319 = vmatpush1.bf16.xpose.msra.mxu0 %v1304
      %1320 = vmatprep.subr.bf16.mxu0 0
      %1321 = vmatpush1.bf16.xpose.msra.mxu0 %v1301
      %1322 = vmatprep.subr.bf16.mxu0 0
      %1323 = vmatpush2.bf16.xpose.msra.mxu0 0
      %1324 = vmatprep.subr.bf16.mxu0 0
      %1325 = vmatpush2.bf16.xpose.msra.mxu0 0
      %1326 = vmatprep.subr.bf16.mxu0 0
      %1327 = vmatpush2.bf16.xpose.msra.mxu0 0
      %1328 = vmatprep.subr.bf16.mxu0 0
      %1329 = vmatpush2.bf16.xpose.msra.mxu0 0
      %1330 = vmatprep.subr.bf16.mxu0 0
      %1331 = vmatpush2.bf16.xpose.msra.mxu0 0
      %1332 = vmatprep.subr.bf16.mxu0 0
      %1333 = vmatpush2.bf16.xpose.msra.mxu0 0
      %1334 = vmatprep.subr.bf16.mxu0 0
      %1335 = vmatpush2.bf16.xpose.msra.mxu0 0
      %1336 = vmatprep.subr.bf16.mxu0 0
      %1337 = vmatpush2.bf16.xpose.msra.mxu0 0
      %1338 = vmatprep.mubr.bf16.mxu0 0
      %1339 = vmatmul.mubr.bf16.gmra.mxu0 %v1295
      %v1340 = vpop.f32.mrf.mxu0
      %v1341 = vadd.f32 %v656, %v1340
      %v1342 = vpop.f32.mrf.mxu0
      %v1343 = vpop.f32.mrf.mxu0
      %v1344 = vadd.f32 %v657, %v1343
      %v1345 = vpop.f32.mrf.mxu0
      %1346 = vmatprep.mubr.bf16.mxu0 0
      %1347 = vmatmul.mubr.bf16.gmra.mxu0 %v1298
      %v1348 = vpop.f32.mrf.mxu0
      %v1349 = vadd.f32 %v658, %v1348
      %v1350 = vpop.f32.mrf.mxu0
      %v1351 = vpop.f32.mrf.mxu0
      %v1352 = vadd.f32 %v659, %v1351
      %v1353 = vpop.f32.mrf.mxu0
      %1354 = vdwg.mxu0
      %v1355 = vsel %vm1081, %v1341, -inf
      %1356 = vmax.xlane.f32.xlu0 %v1355
      %v1357 = vpop.xlane.xlu0 %1356
      %v1358 = vsel %vm1081, %v1344, -inf
      %1359 = vmax.xlane.f32.xlu0 %v1358
      %v1360 = vpop.xlane.xlu0 %1359
      %v1361 = vsel %vm1081, %v1349, -inf
      %1362 = vmax.xlane.f32.xlu0 %v1361
      %v1363 = vpop.xlane.xlu0 %1362
      %v1364 = vsel %vm1081, %v1352, -inf
      %1365 = vmax.xlane.f32.xlu0 %v1364
      %v1366 = vpop.xlane.xlu0 %1365
      %v1367 = vsub.f32 %v1341, %v1357
      %v1368 = vsub.f32 %v1344, %v1360
      %v1369 = vsub.f32 %v1349, %v1363
      %v1370 = vsub.f32 %v1352, %v1366
      %v1371 = vmul.f32 %v1367, 1.442695
      %v1372 = vpow.pop %v1371
      %v1373 = vmul.f32 %v1368, 1.442695
      %v1374 = vpow.pop %v1373
      %v1375 = vmul.f32 %v1369, 1.442695
      %v1376 = vpow.pop %v1375
      %v1377 = vmul.f32 %v1370, 1.442695
      %v1378 = vpow.pop %v1377
      %v1379 = vsel %vm1081, %v1372, 0.0
      %1380 = vadd.xlane.f32.xlu0 %v1379
      %v1381 = vpop.xlane.xlu0 %1380
      %v1382 = vsel %vm1081, %v1374, 0.0
      %1383 = vadd.xlane.f32.xlu0 %v1382
      %v1384 = vpop.xlane.xlu0 %1383
      %v1385 = vsel %vm1081, %v1376, 0.0
      %1386 = vadd.xlane.f32.xlu0 %v1385
      %v1387 = vpop.xlane.xlu0 %1386
      %v1388 = vsel %vm1081, %v1378, 0.0
      %1389 = vadd.xlane.f32.xlu0 %v1388
      %v1390 = vpop.xlane.xlu0 %1389
      %v1391 = vrcp.pop %v1381
      %v1392 = vrcp.pop %v1384
      %v1393 = vrcp.pop %v1387
      %v1394 = vrcp.pop %v1390
      %v1395 = vmul.f32 %v1372, %v1391
      %v1396 = vmul.f32 %v1374, %v1392
      %v1397 = vmul.f32 %v1376, %v1393
      %v1398 = vmul.f32 %v1378, %v1394
      %v1399 = vpack.c.bf16 %v1396, %v1395
      %v1400 = vpack.c.bf16 %v1398, %v1397
      %1403 = vrot.lane.b32.xlu0 %v1017, 64
      %v1404 = vpop.permute.xlu0 %1403
      %1405 = vrot.lane.b32.xlu0 %v1018, 64
      %v1406 = vpop.permute.xlu0 %1405
      %v1410 = vsel %vm1081, %v1399, 0
      %v1413 = vsel %vm1081, %v1400, 0
      %1415 = vmatprep.subr.bf16.mxu0 0
      %1416 = vmatpush1.bf16.msra.mxu0 0
      %1417 = vmatprep.subr.bf16.mxu0 0
      %1418 = vmatpush1.bf16.msra.mxu0 0
      %1419 = vmatprep.subr.bf16.mxu0 0
      %1420 = vmatpush1.bf16.msra.mxu0 0
      %1421 = vmatprep.subr.bf16.mxu0 0
      %1422 = vmatpush1.bf16.msra.mxu0 0
      %1423 = vmatprep.subr.bf16.mxu0 0
      %1424 = vmatpush1.bf16.msra.mxu0 0
      %1425 = vmatprep.subr.bf16.mxu0 0
      %1426 = vmatpush1.bf16.msra.mxu0 0
      %1427 = vmatprep.subr.bf16.mxu0 0
      %1428 = vmatpush1.bf16.msra.mxu0 %v1406
      %1429 = vmatprep.subr.bf16.mxu0 0
      %1430 = vmatpush1.bf16.msra.mxu0 %v1404
      %1431 = vmatprep.subr.bf16.mxu0 0
      %1432 = vmatpush2.bf16.msra.mxu0 0
      %1433 = vmatprep.subr.bf16.mxu0 0
      %1434 = vmatpush2.bf16.msra.mxu0 0
      %1435 = vmatprep.subr.bf16.mxu0 0
      %1436 = vmatpush2.bf16.msra.mxu0 0
      %1437 = vmatprep.subr.bf16.mxu0 0
      %1438 = vmatpush2.bf16.msra.mxu0 0
      %1439 = vmatprep.subr.bf16.mxu0 0
      %1440 = vmatpush2.bf16.msra.mxu0 0
      %1441 = vmatprep.subr.bf16.mxu0 0
      %1442 = vmatpush2.bf16.msra.mxu0 0
      %1443 = vmatprep.subr.bf16.mxu0 0
      %1444 = vmatpush2.bf16.msra.mxu0 0
      %1445 = vmatprep.subr.bf16.mxu0 0
      %1446 = vmatpush2.bf16.msra.mxu0 0
      %1447 = vmatprep.mubr.bf16.mxu0 0
      %1448 = vmatmul.mubr.bf16.gmra.mxu0 %v1410
      %v1449 = vpop.f32.mrf.mxu0
      %v1450 = vadd.f32 0.0, %v1449
      %v1451 = vpop.f32.mrf.mxu0
      %v1452 = vpop.f32.mrf.mxu0
      %v1453 = vadd.f32 0.0, %v1452
      %v1454 = vpop.f32.mrf.mxu0
      %1455 = vmatprep.mubr.bf16.mxu0 0
      %1456 = vmatmul.mubr.bf16.gmra.mxu0 %v1413
      %v1457 = vpop.f32.mrf.mxu0
      %v1458 = vadd.f32 0.0, %v1457
      %v1459 = vpop.f32.mrf.mxu0
      %v1460 = vpop.f32.mrf.mxu0
      %v1461 = vadd.f32 0.0, %v1460
      %v1462 = vpop.f32.mrf.mxu0
      %1463 = vdwg.mxu0
      %v1464 = vpack.c.bf16 %v1453, %v1450
      %v1465 = vpack.c.bf16 %v1461, %v1458
      %v1466 = vld [vmem:[%s6 + $0x20] sm:$0xf]
      %v1467 = vld [vmem:[%s6 + $0x24] sm:$0xf]
      %v1468 = vld [vmem:[%s6 + $0x28] sm:$0xf]
      %v1469 = vld [vmem:[%s6 + $0x2c] sm:$0xf]
      %v1470 = vld [vmem:[%s6 + $0x30] sm:$0xf]
      %v1471 = vld [vmem:[%s6 + $0x34] sm:$0xf]
      %v1472 = vld [vmem:[%s6 + $0x38] sm:$0xf]
      %v1473 = vld [vmem:[%s6 + $0x3c] sm:$0xf]
      %v1482 = vunpack.c.l.b16 %v1466
      %v1483 = vunpack.c.l.b16 %v1467
      %v1484 = vunpack.c.l.b16 %v1468
      %v1485 = vunpack.c.l.b16 %v1469
      %v1486 = vunpack.c.l.b16 %v1470
      %v1487 = vunpack.c.l.b16 %v1471
      %v1488 = vunpack.c.l.b16 %v1472
      %v1489 = vunpack.c.l.b16 %v1473
      %v1490 = vpack.c.b16 %v1483, %v1482
      %v1491 = vpack.c.b16 %v1485, %v1484
      %v1492 = vpack.c.b16 %v1487, %v1486
      %v1493 = vpack.c.b16 %v1489, %v1488
      %v1499 = vsel %vm1019, %v1464, 0
      %v1502 = vsel %vm1019, %v1465, 0
      %1504 = vmatprep.subr.bf16.mxu0 0
      %1505 = vmatpush1.bf16.msra.mxu0 0
      %1506 = vmatprep.subr.bf16.mxu0 0
      %1507 = vmatpush1.bf16.msra.mxu0 0
      %1508 = vmatprep.subr.bf16.mxu0 0
      %1509 = vmatpush1.bf16.msra.mxu0 0
      %1510 = vmatprep.subr.bf16.mxu0 0
      %1511 = vmatpush1.bf16.msra.mxu0 0
      %1512 = vmatprep.subr.bf16.mxu0 0
      %1513 = vmatpush1.bf16.msra.mxu0 %v1493
      %1514 = vmatprep.subr.bf16.mxu0 0
      %1515 = vmatpush1.bf16.msra.mxu0 %v1492
      %1516 = vmatprep.subr.bf16.mxu0 0
      %1517 = vmatpush1.bf16.msra.mxu0 %v1491
      %1518 = vmatprep.subr.bf16.mxu0 0
      %1519 = vmatpush1.bf16.msra.mxu0 %v1490
      %1520 = vmatprep.subr.bf16.mxu0 0
      %1521 = vmatpush2.bf16.msra.mxu0 0
      %1522 = vmatprep.subr.bf16.mxu0 0
      %1523 = vmatpush2.bf16.msra.mxu0 0
      %1524 = vmatprep.subr.bf16.mxu0 0
      %1525 = vmatpush2.bf16.msra.mxu0 0
      %1526 = vmatprep.subr.bf16.mxu0 0
      %1527 = vmatpush2.bf16.msra.mxu0 0
      %1528 = vmatprep.subr.bf16.mxu0 0
      %1529 = vmatpush2.bf16.msra.mxu0 0
      %1530 = vmatprep.subr.bf16.mxu0 0
      %1531 = vmatpush2.bf16.msra.mxu0 0
      %1532 = vmatprep.subr.bf16.mxu0 0
      %1533 = vmatpush2.bf16.msra.mxu0 0
      %1534 = vmatprep.subr.bf16.mxu0 0
      %1535 = vmatpush2.bf16.msra.mxu0 0
      %1536 = vmatprep.mubr.bf16.mxu0 0
      %1537 = vmatmul.mubr.bf16.gmra.mxu0 %v1499
      %v1538 = vpop.f32.mrf.mxu0
      %v1539 = vadd.f32 0.0, %v1538
      %v1540 = vpop.f32.mrf.mxu0
      %v1541 = vpop.f32.mrf.mxu0
      %v1542 = vadd.f32 0.0, %v1541
      %v1543 = vpop.f32.mrf.mxu0
      %1544 = vmatprep.mubr.bf16.mxu0 0
      %1545 = vmatmul.mubr.bf16.gmra.mxu0 %v1502
      %v1546 = vpop.f32.mrf.mxu0
      %v1547 = vadd.f32 0.0, %v1546
      %v1548 = vpop.f32.mrf.mxu0
      %v1549 = vpop.f32.mrf.mxu0
      %v1550 = vadd.f32 0.0, %v1549
      %v1551 = vpop.f32.mrf.mxu0
      %1552 = vdwg.mxu0
      %v1553 = vadd.f32 %v1278, %v1539
      %v1554 = vadd.f32 %v1279, %v1542
      %v1555 = vadd.f32 %v1280, %v1547
      %v1556 = vadd.f32 %v1281, %v1550
      %v1557 = vadd.f32 %v1553, %v727
      %v1558 = vadd.f32 %v1554, %v728
      %v1559 = vadd.f32 %v1555, %v729
      %v1560 = vadd.f32 %v1556, %v730
      %v1561 = vld [vmem:[%s8] sm:$0x1]
      %v1562 = vld [vmem:[%s9] sm:$0x1]
      %1563 = vadd.xlane.f32.xlu0 %v1557
      %v1564 = vpop.xlane.xlu0 %1563
      %1565 = vadd.xlane.f32.xlu0 %v1558
      %v1566 = vpop.xlane.xlu0 %1565
      %1567 = vadd.xlane.f32.xlu0 %v1559
      %v1568 = vpop.xlane.xlu0 %1567
      %1569 = vadd.xlane.f32.xlu0 %v1560
      %v1570 = vpop.xlane.xlu0 %1569
      %v1571 = vmul.f32 %v1564, %v674
      %v1572 = vmul.f32 %v1566, %v674
      %v1573 = vmul.f32 %v1568, %v674
      %v1574 = vmul.f32 %v1570, %v674
      %v1575 = vsub.f32 %v1557, %v1571
      %v1576 = vsub.f32 %v1558, %v1572
      %v1577 = vsub.f32 %v1559, %v1573
      %v1578 = vsub.f32 %v1560, %v1574
      %v1579 = vmul.f32 %v1575, %v1575
      %v1580 = vmul.f32 %v1576, %v1576
      %v1581 = vmul.f32 %v1577, %v1577
      %v1582 = vmul.f32 %v1578, %v1578
      %1583 = vadd.xlane.f32.xlu0 %v1579
      %v1584 = vpop.xlane.xlu0 %1583
      %1585 = vadd.xlane.f32.xlu0 %v1580
      %v1586 = vpop.xlane.xlu0 %1585
      %1587 = vadd.xlane.f32.xlu0 %v1581
      %v1588 = vpop.xlane.xlu0 %1587
      %1589 = vadd.xlane.f32.xlu0 %v1582
      %v1590 = vpop.xlane.xlu0 %1589
      %v1591 = vmul.f32 %v1584, %v674
      %v1592 = vmul.f32 %v1586, %v674
      %v1593 = vmul.f32 %v1588, %v674
      %v1594 = vmul.f32 %v1590, %v674
      %v1595 = vadd.f32 %v1591, 1e-12
      %v1596 = vadd.f32 %v1592, 1e-12
      %v1597 = vadd.f32 %v1593, 1e-12
      %v1598 = vadd.f32 %v1594, 1e-12
      %v1599 = vrsqrt.pop %v1595
      %v1600 = vrsqrt.pop %v1596
      %v1601 = vrsqrt.pop %v1597
      %v1602 = vrsqrt.pop %v1598
      %v1603 = vmul.f32 %v1575, %v1599
      %v1604 = vmul.f32 %v1576, %v1600
      %v1605 = vmul.f32 %v1577, %v1601
      %v1606 = vmul.f32 %v1578, %v1602
      %v1608 = vlaneseq
      %v1609 = vshrl.u32 %v1608, 7
      %v1610 = vsub.s32 0, %v1609
      %v1611 = vrot.slane %v1561, %v1610
      %v1613 = vmul.f32 %v1603, %v1611
      %v1614 = vmul.f32 %v1604, %v1611
      %v1615 = vmul.f32 %v1605, %v1611
      %v1616 = vmul.f32 %v1606, %v1611
      %v1618 = vlaneseq
      %v1619 = vshrl.u32 %v1618, 7
      %v1620 = vsub.s32 0, %v1619
      %v1621 = vrot.slane %v1562, %v1620
      %v1623 = vadd.f32 %v1613, %v1621
      %v1624 = vadd.f32 %v1614, %v1621
      %v1625 = vadd.f32 %v1615, %v1621
      %v1626 = vadd.f32 %v1616, %v1621
      %v1627 = vpack.c.bf16 %v1624, %v1623
      %v1628 = vpack.c.bf16 %v1626, %v1625
      %v1629 = vld [vmem:[%s10] sm:$0xff]
      %v1630 = vld [vmem:[%s10 + $0x8] sm:$0xff]
      %v1631 = vld [vmem:[%s10 + $0x10] sm:$0xff]
      %v1632 = vld [vmem:[%s10 + $0x18] sm:$0xff]
      %v1633 = vld [vmem:[%s10 + $0x20] sm:$0xff]
      %v1634 = vld [vmem:[%s10 + $0x28] sm:$0xff]
      %v1635 = vld [vmem:[%s10 + $0x30] sm:$0xff]
      %v1636 = vld [vmem:[%s10 + $0x38] sm:$0xff]
      %v1637 = vld [vmem:[%s10 + $0x40] sm:$0xff]
      %v1638 = vld [vmem:[%s10 + $0x48] sm:$0xff]
      %v1639 = vld [vmem:[%s10 + $0x50] sm:$0xff]
      %v1640 = vld [vmem:[%s10 + $0x58] sm:$0xff]
      %v1641 = vld [vmem:[%s10 + $0x60] sm:$0xff]
      %v1642 = vld [vmem:[%s10 + $0x68] sm:$0xff]
      %v1643 = vld [vmem:[%s10 + $0x70] sm:$0xff]
      %v1644 = vld [vmem:[%s10 + $0x78] sm:$0xff]
      %v1645 = vld [vmem:[%s11] sm:$0x3]
      %v1647 = vlaneseq
      %v1648 = vshrl.u32 %v1647, 7
      %v1649 = vsub.s32 0, %v1648
      %v1650 = vrot.slane %v1645, %v1649
      %v1651 = vlaneseq
      %v1652 = vshrl.u32 %v1651, 7
      %v1653 = vsub.s32 1, %v1652
      %v1654 = vrot.slane %v1645, %v1653
      %v1673 = vunpack.c.l.b16 %v1629
      %v1674 = vunpack.c.h.b16 %v1629
      %v1675 = vunpack.c.l.b16 %v1630
      %v1676 = vunpack.c.h.b16 %v1630
      %v1677 = vunpack.c.l.b16 %v1631
      %v1678 = vunpack.c.h.b16 %v1631
      %v1679 = vunpack.c.l.b16 %v1632
      %v1680 = vunpack.c.h.b16 %v1632
      %v1681 = vunpack.c.l.b16 %v1633
      %v1682 = vunpack.c.h.b16 %v1633
      %v1683 = vunpack.c.l.b16 %v1634
      %v1684 = vunpack.c.h.b16 %v1634
      %v1685 = vunpack.c.l.b16 %v1635
      %v1686 = vunpack.c.h.b16 %v1635
      %v1687 = vunpack.c.l.b16 %v1636
      %v1688 = vunpack.c.h.b16 %v1636
      %v1689 = vunpack.c.l.b16 %v1637
      %v1690 = vunpack.c.h.b16 %v1637
      %v1691 = vunpack.c.l.b16 %v1638
      %v1692 = vunpack.c.h.b16 %v1638
      %v1693 = vunpack.c.l.b16 %v1639
      %v1694 = vunpack.c.h.b16 %v1639
      %v1695 = vunpack.c.l.b16 %v1640
      %v1696 = vunpack.c.h.b16 %v1640
      %v1697 = vunpack.c.l.b16 %v1641
      %v1698 = vunpack.c.h.b16 %v1641
      %v1699 = vunpack.c.l.b16 %v1642
      %v1700 = vunpack.c.h.b16 %v1642
      %v1701 = vunpack.c.l.b16 %v1643
      %v1702 = vunpack.c.h.b16 %v1643
      %v1703 = vunpack.c.l.b16 %v1644
      %v1704 = vunpack.c.h.b16 %v1644
      %v1705 = vpack.c.b16 %v1675, %v1673
      %v1706 = vpack.c.b16 %v1676, %v1674
      %v1707 = vpack.c.b16 %v1679, %v1677
      %v1708 = vpack.c.b16 %v1680, %v1678
      %v1709 = vpack.c.b16 %v1683, %v1681
      %v1710 = vpack.c.b16 %v1684, %v1682
      %v1711 = vpack.c.b16 %v1687, %v1685
      %v1712 = vpack.c.b16 %v1688, %v1686
      %v1713 = vpack.c.b16 %v1691, %v1689
      %v1714 = vpack.c.b16 %v1692, %v1690
      %v1715 = vpack.c.b16 %v1695, %v1693
      %v1716 = vpack.c.b16 %v1696, %v1694
      %v1717 = vpack.c.b16 %v1699, %v1697
      %v1718 = vpack.c.b16 %v1700, %v1698
      %v1719 = vpack.c.b16 %v1703, %v1701
      %v1720 = vpack.c.b16 %v1704, %v1702
      %1737 = vmatprep.subr.bf16.mxu0 %v1720
      %1738 = vmatpush1.bf16.msra.mxu0 %v1719
      %1739 = vmatprep.subr.bf16.mxu0 %v1718
      %1740 = vmatpush1.bf16.msra.mxu0 %v1717
      %1741 = vmatprep.subr.bf16.mxu0 %v1716
      %1742 = vmatpush1.bf16.msra.mxu0 %v1715
      %1743 = vmatprep.subr.bf16.mxu0 %v1714
      %1744 = vmatpush1.bf16.msra.mxu0 %v1713
      %1745 = vmatprep.subr.bf16.mxu0 %v1712
      %1746 = vmatpush1.bf16.msra.mxu0 %v1711
      %1747 = vmatprep.subr.bf16.mxu0 %v1710
      %1748 = vmatpush1.bf16.msra.mxu0 %v1709
      %1749 = vmatprep.subr.bf16.mxu0 %v1708
      %1750 = vmatpush1.bf16.msra.mxu0 %v1707
      %1751 = vmatprep.subr.bf16.mxu0 %v1706
      %1752 = vmatpush1.bf16.msra.mxu0 %v1705
      %1753 = vmatprep.subr.bf16.mxu0 0
      %1754 = vmatpush2.bf16.msra.mxu0 0
      %1755 = vmatprep.subr.bf16.mxu0 0
      %1756 = vmatpush2.bf16.msra.mxu0 0
      %1757 = vmatprep.subr.bf16.mxu0 0
      %1758 = vmatpush2.bf16.msra.mxu0 0
      %1759 = vmatprep.subr.bf16.mxu0 0
      %1760 = vmatpush2.bf16.msra.mxu0 0
      %1761 = vmatprep.subr.bf16.mxu0 0
      %1762 = vmatpush2.bf16.msra.mxu0 0
      %1763 = vmatprep.subr.bf16.mxu0 0
      %1764 = vmatpush2.bf16.msra.mxu0 0
      %1765 = vmatprep.subr.bf16.mxu0 0
      %1766 = vmatpush2.bf16.msra.mxu0 0
      %1767 = vmatprep.subr.bf16.mxu0 0
      %1768 = vmatpush2.bf16.msra.mxu0 0
      %1769 = vmatprep.mubr.bf16.mxu0 0
      %1770 = vmatmul.mubr.bf16.gmra.mxu0 %v1627
      %v1771 = vpop.f32.mrf.mxu0
      %v1772 = vadd.f32 %v1650, %v1771
      %v1773 = vpop.f32.mrf.mxu0
      %v1774 = vadd.f32 %v1654, %v1773
      %v1775 = vpop.f32.mrf.mxu0
      %v1776 = vadd.f32 %v1650, %v1775
      %v1777 = vpop.f32.mrf.mxu0
      %v1778 = vadd.f32 %v1654, %v1777
      %1779 = vmatprep.mubr.bf16.mxu0 0
      %1780 = vmatmul.mubr.bf16.gmra.mxu0 %v1628
      %v1781 = vpop.f32.mrf.mxu0
      %v1782 = vadd.f32 %v1650, %v1781
      %v1783 = vpop.f32.mrf.mxu0
      %v1784 = vadd.f32 %v1654, %v1783
      %v1785 = vpop.f32.mrf.mxu0
      %v1786 = vadd.f32 %v1650, %v1785
      %v1787 = vpop.f32.mrf.mxu0
      %v1788 = vadd.f32 %v1654, %v1787
      %1789 = vdwg.mxu0
      %v1790 = vmul.f32 %v1772, 0.5
      %v1791 = vmul.f32 %v1774, 0.5
      %v1792 = vmul.f32 %v1776, 0.5
      %v1793 = vmul.f32 %v1778, 0.5
      %v1794 = vmul.f32 %v1782, 0.5
      %v1795 = vmul.f32 %v1784, 0.5
      %v1796 = vmul.f32 %v1786, 0.5
      %v1797 = vmul.f32 %v1788, 0.5
      %v1798 = vmul.f32 %v1772, 0.044715
      %v1799 = vmul.f32 %v1774, 0.044715
      %v1800 = vmul.f32 %v1776, 0.044715
      %v1801 = vmul.f32 %v1778, 0.044715
      %v1802 = vmul.f32 %v1782, 0.044715
      %v1803 = vmul.f32 %v1784, 0.044715
      %v1804 = vmul.f32 %v1786, 0.044715
      %v1805 = vmul.f32 %v1788, 0.044715
      %v1806 = vmul.f32 %v1798, %v1772
      %v1807 = vmul.f32 %v1799, %v1774
      %v1808 = vmul.f32 %v1800, %v1776
      %v1809 = vmul.f32 %v1801, %v1778
      %v1810 = vmul.f32 %v1802, %v1782
      %v1811 = vmul.f32 %v1803, %v1784
      %v1812 = vmul.f32 %v1804, %v1786
      %v1813 = vmul.f32 %v1805, %v1788
      %v1814 = vmul.f32 %v1806, %v1772
      %v1815 = vmul.f32 %v1807, %v1774
      %v1816 = vmul.f32 %v1808, %v1776
      %v1817 = vmul.f32 %v1809, %v1778
      %v1818 = vmul.f32 %v1810, %v1782
      %v1819 = vmul.f32 %v1811, %v1784
      %v1820 = vmul.f32 %v1812, %v1786
      %v1821 = vmul.f32 %v1813, %v1788
      %v1822 = vadd.f32 %v1772, %v1814
      %v1823 = vadd.f32 %v1774, %v1815
      %v1824 = vadd.f32 %v1776, %v1816
      %v1825 = vadd.f32 %v1778, %v1817
      %v1826 = vadd.f32 %v1782, %v1818
      %v1827 = vadd.f32 %v1784, %v1819
      %v1828 = vadd.f32 %v1786, %v1820
      %v1829 = vadd.f32 %v1788, %v1821
      %v1830 = vmul.f32 %v1822, 0.7978846
      %v1831 = vmul.f32 %v1823, 0.7978846
      %v1832 = vmul.f32 %v1824, 0.7978846
      %v1833 = vmul.f32 %v1825, 0.7978846
      %v1834 = vmul.f32 %v1826, 0.7978846
      %v1835 = vmul.f32 %v1827, 0.7978846
      %v1836 = vmul.f32 %v1828, 0.7978846
      %v1837 = vmul.f32 %v1829, 0.7978846
      %v1838 = vtanh.pop %v1830
      %v1839 = vtanh.pop %v1831
      %v1840 = vtanh.pop %v1832
      %v1841 = vtanh.pop %v1833
      %v1842 = vtanh.pop %v1834
      %v1843 = vtanh.pop %v1835
      %v1844 = vtanh.pop %v1836
      %v1845 = vtanh.pop %v1837
      %v1846 = vadd.f32 %v1838, 1.0
      %v1847 = vadd.f32 %v1839, 1.0
      %v1848 = vadd.f32 %v1840, 1.0
      %v1849 = vadd.f32 %v1841, 1.0
      %v1850 = vadd.f32 %v1842, 1.0
      %v1851 = vadd.f32 %v1843, 1.0
      %v1852 = vadd.f32 %v1844, 1.0
      %v1853 = vadd.f32 %v1845, 1.0
      %v1854 = vmul.f32 %v1790, %v1846
      %v1855 = vmul.f32 %v1791, %v1847
      %v1856 = vmul.f32 %v1792, %v1848
      %v1857 = vmul.f32 %v1793, %v1849
      %v1858 = vmul.f32 %v1794, %v1850
      %v1859 = vmul.f32 %v1795, %v1851
      %v1860 = vmul.f32 %v1796, %v1852
      %v1861 = vmul.f32 %v1797, %v1853
      %v1862 = vpack.c.bf16 %v1856, %v1854
      %v1863 = vpack.c.bf16 %v1857, %v1855
      %v1864 = vpack.c.bf16 %v1860, %v1858
      %v1865 = vpack.c.bf16 %v1861, %v1859
      %v1866 = vld [vmem:[%s12] sm:$0xf]
      %v1867 = vld [vmem:[%s12 + $0x4] sm:$0xf]
      %v1868 = vld [vmem:[%s12 + $0x8] sm:$0xf]
      %v1869 = vld [vmem:[%s12 + $0xc] sm:$0xf]
      %v1870 = vld [vmem:[%s12 + $0x10] sm:$0xf]
      %v1871 = vld [vmem:[%s12 + $0x14] sm:$0xf]
      %v1872 = vld [vmem:[%s12 + $0x18] sm:$0xf]
      %v1873 = vld [vmem:[%s12 + $0x1c] sm:$0xf]
      %v1874 = vld [vmem:[%s12 + $0x20] sm:$0xf]
      %v1875 = vld [vmem:[%s12 + $0x24] sm:$0xf]
      %v1876 = vld [vmem:[%s12 + $0x28] sm:$0xf]
      %v1877 = vld [vmem:[%s12 + $0x2c] sm:$0xf]
      %v1878 = vld [vmem:[%s12 + $0x30] sm:$0xf]
      %v1879 = vld [vmem:[%s12 + $0x34] sm:$0xf]
      %v1880 = vld [vmem:[%s12 + $0x38] sm:$0xf]
      %v1881 = vld [vmem:[%s12 + $0x3c] sm:$0xf]
      %v1882 = vld [vmem:[%s12 + $0x40] sm:$0xf]
      %v1883 = vld [vmem:[%s12 + $0x44] sm:$0xf]
      %v1884 = vld [vmem:[%s12 + $0x48] sm:$0xf]
      %v1885 = vld [vmem:[%s12 + $0x4c] sm:$0xf]
      %v1886 = vld [vmem:[%s12 + $0x50] sm:$0xf]
      %v1887 = vld [vmem:[%s12 + $0x54] sm:$0xf]
      %v1888 = vld [vmem:[%s12 + $0x58] sm:$0xf]
      %v1889 = vld [vmem:[%s12 + $0x5c] sm:$0xf]
      %v1890 = vld [vmem:[%s12 + $0x60] sm:$0xf]
      %v1891 = vld [vmem:[%s12 + $0x64] sm:$0xf]
      %v1892 = vld [vmem:[%s12 + $0x68] sm:$0xf]
      %v1893 = vld [vmem:[%s12 + $0x6c] sm:$0xf]
      %v1894 = vld [vmem:[%s12 + $0x70] sm:$0xf]
      %v1895 = vld [vmem:[%s12 + $0x74] sm:$0xf]
      %v1896 = vld [vmem:[%s12 + $0x78] sm:$0xf]
      %v1897 = vld [vmem:[%s12 + $0x7c] sm:$0xf]
      %v1898 = vld [vmem:[%s13] sm:$0x1]
      %v1900 = vlaneseq
      %v1901 = vshrl.u32 %v1900, 7
      %v1902 = vsub.s32 0, %v1901
      %v1903 = vrot.slane %v1898, %v1902
      %v1937 = vunpack.c.l.b16 %v1866
      %v1938 = vunpack.c.l.b16 %v1867
      %v1939 = vunpack.c.l.b16 %v1868
      %v1940 = vunpack.c.l.b16 %v1869
      %v1941 = vunpack.c.l.b16 %v1870
      %v1942 = vunpack.c.l.b16 %v1871
      %v1943 = vunpack.c.l.b16 %v1872
      %v1944 = vunpack.c.l.b16 %v1873
      %v1945 = vunpack.c.l.b16 %v1874
      %v1946 = vunpack.c.l.b16 %v1875
      %v1947 = vunpack.c.l.b16 %v1876
      %v1948 = vunpack.c.l.b16 %v1877
      %v1949 = vunpack.c.l.b16 %v1878
      %v1950 = vunpack.c.l.b16 %v1879
      %v1951 = vunpack.c.l.b16 %v1880
      %v1952 = vunpack.c.l.b16 %v1881
      %v1953 = vunpack.c.l.b16 %v1882
      %v1954 = vunpack.c.l.b16 %v1883
      %v1955 = vunpack.c.l.b16 %v1884
      %v1956 = vunpack.c.l.b16 %v1885
      %v1957 = vunpack.c.l.b16 %v1886
      %v1958 = vunpack.c.l.b16 %v1887
      %v1959 = vunpack.c.l.b16 %v1888
      %v1960 = vunpack.c.l.b16 %v1889
      %v1961 = vunpack.c.l.b16 %v1890
      %v1962 = vunpack.c.l.b16 %v1891
      %v1963 = vunpack.c.l.b16 %v1892
      %v1964 = vunpack.c.l.b16 %v1893
      %v1965 = vunpack.c.l.b16 %v1894
      %v1966 = vunpack.c.l.b16 %v1895
      %v1967 = vunpack.c.l.b16 %v1896
      %v1968 = vunpack.c.l.b16 %v1897
      %v1969 = vpack.c.b16 %v1938, %v1937
      %v1970 = vpack.c.b16 %v1940, %v1939
      %v1971 = vpack.c.b16 %v1942, %v1941
      %v1972 = vpack.c.b16 %v1944, %v1943
      %v1973 = vpack.c.b16 %v1946, %v1945
      %v1974 = vpack.c.b16 %v1948, %v1947
      %v1975 = vpack.c.b16 %v1950, %v1949
      %v1976 = vpack.c.b16 %v1952, %v1951
      %v1977 = vpack.c.b16 %v1954, %v1953
      %v1978 = vpack.c.b16 %v1956, %v1955
      %v1979 = vpack.c.b16 %v1958, %v1957
      %v1980 = vpack.c.b16 %v1960, %v1959
      %v1981 = vpack.c.b16 %v1962, %v1961
      %v1982 = vpack.c.b16 %v1964, %v1963
      %v1983 = vpack.c.b16 %v1966, %v1965
      %v1984 = vpack.c.b16 %v1968, %v1967
      %2001 = vmatprep.subr.bf16.mxu0 0
      %2002 = vmatpush1.bf16.msra.mxu0 %v1976
      %2003 = vmatprep.subr.bf16.mxu0 0
      %2004 = vmatpush1.bf16.msra.mxu0 %v1975
      %2005 = vmatprep.subr.bf16.mxu0 0
      %2006 = vmatpush1.bf16.msra.mxu0 %v1974
      %2007 = vmatprep.subr.bf16.mxu0 0
      %2008 = vmatpush1.bf16.msra.mxu0 %v1973
      %2009 = vmatprep.subr.bf16.mxu0 0
      %2010 = vmatpush1.bf16.msra.mxu0 %v1972
      %2011 = vmatprep.subr.bf16.mxu0 0
      %2012 = vmatpush1.bf16.msra.mxu0 %v1971
      %2013 = vmatprep.subr.bf16.mxu0 0
      %2014 = vmatpush1.bf16.msra.mxu0 %v1970
      %2015 = vmatprep.subr.bf16.mxu0 0
      %2016 = vmatpush1.bf16.msra.mxu0 %v1969
      %2017 = vmatprep.subr.bf16.mxu0 0
      %2018 = vmatpush2.bf16.msra.mxu0 %v1984
      %2019 = vmatprep.subr.bf16.mxu0 0
      %2020 = vmatpush2.bf16.msra.mxu0 %v1983
      %2021 = vmatprep.subr.bf16.mxu0 0
      %2022 = vmatpush2.bf16.msra.mxu0 %v1982
      %2023 = vmatprep.subr.bf16.mxu0 0
      %2024 = vmatpush2.bf16.msra.mxu0 %v1981
      %2025 = vmatprep.subr.bf16.mxu0 0
      %2026 = vmatpush2.bf16.msra.mxu0 %v1980
      %2027 = vmatprep.subr.bf16.mxu0 0
      %2028 = vmatpush2.bf16.msra.mxu0 %v1979
      %2029 = vmatprep.subr.bf16.mxu0 0
      %2030 = vmatpush2.bf16.msra.mxu0 %v1978
      %2031 = vmatprep.subr.bf16.mxu0 0
      %2032 = vmatpush2.bf16.msra.mxu0 %v1977
      %2033 = vmatprep.mubr.bf16.mxu0 %v1863
      %2034 = vmatmul.mubr.bf16.gmra.mxu0 %v1862
      %v2035 = vpop.f32.mrf.mxu0
      %v2036 = vadd.f32 %v1903, %v2035
      %v2037 = vpop.f32.mrf.mxu0
      %v2038 = vpop.f32.mrf.mxu0
      %v2039 = vadd.f32 %v1903, %v2038
      %v2040 = vpop.f32.mrf.mxu0
      %2041 = vmatprep.mubr.bf16.mxu0 %v1865
      %2042 = vmatmul.mubr.bf16.gmra.mxu0 %v1864
      %v2043 = vpop.f32.mrf.mxu0
      %v2044 = vadd.f32 %v1903, %v2043
      %v2045 = vpop.f32.mrf.mxu0
      %v2046 = vpop.f32.mrf.mxu0
      %v2047 = vadd.f32 %v1903, %v2046
      %v2048 = vpop.f32.mrf.mxu0
      %2049 = vdwg.mxu0
      %v2050 = vadd.f32 %v2036, %v1623
      %v2051 = vadd.f32 %v2039, %v1624
      %v2052 = vadd.f32 %v2044, %v1625
      %v2053 = vadd.f32 %v2047, %v1626
      %v2054 = vld [vmem:[%s14] sm:$0x1]
      %v2055 = vld [vmem:[%s15] sm:$0x1]
      %2056 = vadd.xlane.f32.xlu0 %v2050
      %v2057 = vpop.xlane.xlu0 %2056
      %2058 = vadd.xlane.f32.xlu0 %v2051
      %v2059 = vpop.xlane.xlu0 %2058
      %2060 = vadd.xlane.f32.xlu0 %v2052
      %v2061 = vpop.xlane.xlu0 %2060
      %2062 = vadd.xlane.f32.xlu0 %v2053
      %v2063 = vpop.xlane.xlu0 %2062
      %v2064 = vmul.f32 %v2057, %v674
      %v2065 = vmul.f32 %v2059, %v674
      %v2066 = vmul.f32 %v2061, %v674
      %v2067 = vmul.f32 %v2063, %v674
      %v2068 = vsub.f32 %v2050, %v2064
      %v2069 = vsub.f32 %v2051, %v2065
      %v2070 = vsub.f32 %v2052, %v2066
      %v2071 = vsub.f32 %v2053, %v2067
      %v2072 = vmul.f32 %v2068, %v2068
      %v2073 = vmul.f32 %v2069, %v2069
      %v2074 = vmul.f32 %v2070, %v2070
      %v2075 = vmul.f32 %v2071, %v2071
      %2076 = vadd.xlane.f32.xlu0 %v2072
      %v2077 = vpop.xlane.xlu0 %2076
      %2078 = vadd.xlane.f32.xlu0 %v2073
      %v2079 = vpop.xlane.xlu0 %2078
      %2080 = vadd.xlane.f32.xlu0 %v2074
      %v2081 = vpop.xlane.xlu0 %2080
      %2082 = vadd.xlane.f32.xlu0 %v2075
      %v2083 = vpop.xlane.xlu0 %2082
      %v2084 = vmul.f32 %v2077, %v674
      %v2085 = vmul.f32 %v2079, %v674
      %v2086 = vmul.f32 %v2081, %v674
      %v2087 = vmul.f32 %v2083, %v674
      %v2088 = vadd.f32 %v2084, 1e-12
      %v2089 = vadd.f32 %v2085, 1e-12
      %v2090 = vadd.f32 %v2086, 1e-12
      %v2091 = vadd.f32 %v2087, 1e-12
      %v2092 = vrsqrt.pop %v2088
      %v2093 = vrsqrt.pop %v2089
      %v2094 = vrsqrt.pop %v2090
      %v2095 = vrsqrt.pop %v2091
      %v2096 = vmul.f32 %v2068, %v2092
      %v2097 = vmul.f32 %v2069, %v2093
      %v2098 = vmul.f32 %v2070, %v2094
      %v2099 = vmul.f32 %v2071, %v2095
      %v2101 = vlaneseq
      %v2102 = vshrl.u32 %v2101, 7
      %v2103 = vsub.s32 0, %v2102
      %v2104 = vrot.slane %v2054, %v2103
      %v2106 = vmul.f32 %v2096, %v2104
      %v2107 = vmul.f32 %v2097, %v2104
      %v2108 = vmul.f32 %v2098, %v2104
      %v2109 = vmul.f32 %v2099, %v2104
      %v2111 = vlaneseq
      %v2112 = vshrl.u32 %v2111, 7
      %v2113 = vsub.s32 0, %v2112
      %v2114 = vrot.slane %v2055, %v2113
      %v2116 = vadd.f32 %v2106, %v2114
      %v2117 = vadd.f32 %v2107, %v2114
      %v2118 = vadd.f32 %v2108, %v2114
      %v2119 = vadd.f32 %v2109, %v2114
      %v2120 = vpack.c.bf16 %v2117, %v2116
      %v2121 = vpack.c.bf16 %v2119, %v2118
      %s2122 = scalar_lea.vmem %s4, 192
      %v2123 = vld [vmem:[%s2122] sm:$0xff]
      %v2124 = vld [vmem:[%s2122 + $0x8] sm:$0xf]
      %v2125 = vld [vmem:[%s2122 + $0xc] sm:$0xff]
      %v2126 = vld [vmem:[%s2122 + $0x14] sm:$0xf]
      %v2127 = vld [vmem:[%s2122 + $0x18] sm:$0xff]
      %v2128 = vld [vmem:[%s2122 + $0x20] sm:$0xf]
      %v2129 = vld [vmem:[%s2122 + $0x24] sm:$0xff]
      %v2130 = vld [vmem:[%s2122 + $0x2c] sm:$0xf]
      %v2131 = vld [vmem:[%s2122 + $0x30] sm:$0xff]
      %v2132 = vld [vmem:[%s2122 + $0x38] sm:$0xf]
      %v2133 = vld [vmem:[%s2122 + $0x3c] sm:$0xff]
      %v2134 = vld [vmem:[%s2122 + $0x44] sm:$0xf]
      %v2135 = vld [vmem:[%s2122 + $0x48] sm:$0xff]
      %v2136 = vld [vmem:[%s2122 + $0x50] sm:$0xf]
      %v2137 = vld [vmem:[%s2122 + $0x54] sm:$0xff]
      %v2138 = vld [vmem:[%s2122 + $0x5c] sm:$0xf]
      %v2139 = vld [vmem:[%s2122 + $0x60] sm:$0xff]
      %v2140 = vld [vmem:[%s2122 + $0x68] sm:$0xf]
      %v2141 = vld [vmem:[%s2122 + $0x6c] sm:$0xff]
      %v2142 = vld [vmem:[%s2122 + $0x74] sm:$0xf]
      %v2143 = vld [vmem:[%s2122 + $0x78] sm:$0xff]
      %v2144 = vld [vmem:[%s2122 + $0x80] sm:$0xf]
      %v2145 = vld [vmem:[%s2122 + $0x84] sm:$0xff]
      %v2146 = vld [vmem:[%s2122 + $0x8c] sm:$0xf]
      %v2147 = vld [vmem:[%s2122 + $0x90] sm:$0xff]
      %v2148 = vld [vmem:[%s2122 + $0x98] sm:$0xf]
      %v2149 = vld [vmem:[%s2122 + $0x9c] sm:$0xff]
      %v2150 = vld [vmem:[%s2122 + $0xa4] sm:$0xf]
      %v2151 = vld [vmem:[%s2122 + $0xa8] sm:$0xff]
      %v2152 = vld [vmem:[%s2122 + $0xb0] sm:$0xf]
      %v2153 = vld [vmem:[%s2122 + $0xb4] sm:$0xff]
      %v2154 = vld [vmem:[%s2122 + $0xbc] sm:$0xf]
      %s2155 = scalar_lea.vmem %s5, 3
      %v2156 = vld [vmem:[%s2155] sm:$0x7]
      %v2158 = vlaneseq
      %v2159 = vshrl.u32 %v2158, 7
      %v2160 = vsub.s32 0, %v2159
      %v2161 = vrot.slane %v2156, %v2160
      %v2162 = vlaneseq
      %v2163 = vshrl.u32 %v2162, 7
      %v2164 = vsub.s32 1, %v2163
      %v2165 = vrot.slane %v2156, %v2164
      %v2166 = vlaneseq
      %v2167 = vshrl.u32 %v2166, 7
      %v2168 = vsub.s32 2, %v2167
      %v2169 = vrot.slane %v2156, %v2168
      %v2205 = vunpack.c.l.b16 %v2123
      %v2206 = vunpack.c.h.b16 %v2123
      %v2207 = vunpack.c.l.b16 %v2124
      %v2208 = vunpack.c.l.b16 %v2125
      %v2209 = vunpack.c.h.b16 %v2125
      %v2210 = vunpack.c.l.b16 %v2126
      %v2211 = vunpack.c.l.b16 %v2127
      %v2212 = vunpack.c.h.b16 %v2127
      %v2213 = vunpack.c.l.b16 %v2128
      %v2214 = vunpack.c.l.b16 %v2129
      %v2215 = vunpack.c.h.b16 %v2129
      %v2216 = vunpack.c.l.b16 %v2130
      %v2217 = vunpack.c.l.b16 %v2131
      %v2218 = vunpack.c.h.b16 %v2131
      %v2219 = vunpack.c.l.b16 %v2132
      %v2220 = vunpack.c.l.b16 %v2133
      %v2221 = vunpack.c.h.b16 %v2133
      %v2222 = vunpack.c.l.b16 %v2134
      %v2223 = vunpack.c.l.b16 %v2135
      %v2224 = vunpack.c.h.b16 %v2135
      %v2225 = vunpack.c.l.b16 %v2136
      %v2226 = vunpack.c.l.b16 %v2137
      %v2227 = vunpack.c.h.b16 %v2137
      %v2228 = vunpack.c.l.b16 %v2138
      %v2229 = vunpack.c.l.b16 %v2139
      %v2230 = vunpack.c.h.b16 %v2139
      %v2231 = vunpack.c.l.b16 %v2140
      %v2232 = vunpack.c.l.b16 %v2141
      %v2233 = vunpack.c.h.b16 %v2141
      %v2234 = vunpack.c.l.b16 %v2142
      %v2235 = vunpack.c.l.b16 %v2143
      %v2236 = vunpack.c.h.b16 %v2143
      %v2237 = vunpack.c.l.b16 %v2144
      %v2238 = vunpack.c.l.b16 %v2145
      %v2239 = vunpack.c.h.b16 %v2145
      %v2240 = vunpack.c.l.b16 %v2146
      %v2241 = vunpack.c.l.b16 %v2147
      %v2242 = vunpack.c.h.b16 %v2147
      %v2243 = vunpack.c.l.b16 %v2148
      %v2244 = vunpack.c.l.b16 %v2149
      %v2245 = vunpack.c.h.b16 %v2149
      %v2246 = vunpack.c.l.b16 %v2150
      %v2247 = vunpack.c.l.b16 %v2151
      %v2248 = vunpack.c.h.b16 %v2151
      %v2249 = vunpack.c.l.b16 %v2152
      %v2250 = vunpack.c.l.b16 %v2153
      %v2251 = vunpack.c.h.b16 %v2153
      %v2252 = vunpack.c.l.b16 %v2154
      %v2253 = vpack.c.b16 %v2208, %v2205
      %v2254 = vpack.c.b16 %v2209, %v2206
      %v2255 = vpack.c.b16 %v2210, %v2207
      %v2256 = vpack.c.b16 %v2214, %v2211
      %v2257 = vpack.c.b16 %v2215, %v2212
      %v2258 = vpack.c.b16 %v2216, %v2213
      %v2259 = vpack.c.b16 %v2220, %v2217
      %v2260 = vpack.c.b16 %v2221, %v2218
      %v2261 = vpack.c.b16 %v2222, %v2219
      %v2262 = vpack.c.b16 %v2226, %v2223
      %v2263 = vpack.c.b16 %v2227, %v2224
      %v2264 = vpack.c.b16 %v2228, %v2225
      %v2265 = vpack.c.b16 %v2232, %v2229
      %v2266 = vpack.c.b16 %v2233, %v2230
      %v2267 = vpack.c.b16 %v2234, %v2231
      %v2268 = vpack.c.b16 %v2238, %v2235
      %v2269 = vpack.c.b16 %v2239, %v2236
      %v2270 = vpack.c.b16 %v2240, %v2237
      %v2271 = vpack.c.b16 %v2244, %v2241
      %v2272 = vpack.c.b16 %v2245, %v2242
      %v2273 = vpack.c.b16 %v2246, %v2243
      %v2274 = vpack.c.b16 %v2250, %v2247
      %v2275 = vpack.c.b16 %v2251, %v2248
      %v2276 = vpack.c.b16 %v2252, %v2249
      %2301 = vmatprep.subr.bf16.mxu0 %v2275
      %2302 = vmatpush1.bf16.msra.mxu0 %v2274
      %2303 = vmatprep.subr.bf16.mxu0 %v2272
      %2304 = vmatpush1.bf16.msra.mxu0 %v2271
      %2305 = vmatprep.subr.bf16.mxu0 %v2269
      %2306 = vmatpush1.bf16.msra.mxu0 %v2268
      %2307 = vmatprep.subr.bf16.mxu0 %v2266
      %2308 = vmatpush1.bf16.msra.mxu0 %v2265
      %2309 = vmatprep.subr.bf16.mxu0 %v2263
      %2310 = vmatpush1.bf16.msra.mxu0 %v2262
      %2311 = vmatprep.subr.bf16.mxu0 %v2260
      %2312 = vmatpush1.bf16.msra.mxu0 %v2259
      %2313 = vmatprep.subr.bf16.mxu0 %v2257
      %2314 = vmatpush1.bf16.msra.mxu0 %v2256
      %2315 = vmatprep.subr.bf16.mxu0 %v2254
      %2316 = vmatpush1.bf16.msra.mxu0 %v2253
      %2317 = vmatprep.subr.bf16.mxu0 0
      %2318 = vmatpush2.bf16.msra.mxu0 0
      %2319 = vmatprep.subr.bf16.mxu0 0
      %2320 = vmatpush2.bf16.msra.mxu0 0
      %2321 = vmatprep.subr.bf16.mxu0 0
      %2322 = vmatpush2.bf16.msra.mxu0 0
      %2323 = vmatprep.subr.bf16.mxu0 0
      %2324 = vmatpush2.bf16.msra.mxu0 0
      %2325 = vmatprep.subr.bf16.mxu0 0
      %2326 = vmatpush2.bf16.msra.mxu0 0
      %2327 = vmatprep.subr.bf16.mxu0 0
      %2328 = vmatpush2.bf16.msra.mxu0 0
      %2329 = vmatprep.subr.bf16.mxu0 0
      %2330 = vmatpush2.bf16.msra.mxu0 0
      %2331 = vmatprep.subr.bf16.mxu0 0
      %2332 = vmatpush2.bf16.msra.mxu0 0
      %2333 = vmatprep.mubr.bf16.mxu0 0
      %2334 = vmatmul.mubr.bf16.gmra.mxu0 %v2120
      %v2335 = vpop.f32.mrf.mxu0
      %v2336 = vadd.f32 %v2161, %v2335
      %v2337 = vpop.f32.mrf.mxu0
      %v2338 = vadd.f32 %v2165, %v2337
      %v2339 = vpop.f32.mrf.mxu0
      %v2340 = vadd.f32 %v2161, %v2339
      %v2341 = vpop.f32.mrf.mxu0
      %v2342 = vadd.f32 %v2165, %v2341
      %2343 = vmatprep.mubr.bf16.mxu0 0
      %2344 = vmatmul.mubr.bf16.gmra.mxu0 %v2121
      %v2345 = vpop.f32.mrf.mxu0
      %v2346 = vadd.f32 %v2161, %v2345
      %v2347 = vpop.f32.mrf.mxu0
      %v2348 = vadd.f32 %v2165, %v2347
      %v2349 = vpop.f32.mrf.mxu0
      %v2350 = vadd.f32 %v2161, %v2349
      %v2351 = vpop.f32.mrf.mxu0
      %v2352 = vadd.f32 %v2165, %v2351
      %2353 = vdwg.mxu0
      %2354 = vmatprep.subr.bf16.mxu0 0
      %2355 = vmatpush1.bf16.msra.mxu0 %v2276
      %2356 = vmatprep.subr.bf16.mxu0 0
      %2357 = vmatpush1.bf16.msra.mxu0 %v2273
      %2358 = vmatprep.subr.bf16.mxu0 0
      %2359 = vmatpush1.bf16.msra.mxu0 %v2270
      %2360 = vmatprep.subr.bf16.mxu0 0
      %2361 = vmatpush1.bf16.msra.mxu0 %v2267
      %2362 = vmatprep.subr.bf16.mxu0 0
      %2363 = vmatpush1.bf16.msra.mxu0 %v2264
      %2364 = vmatprep.subr.bf16.mxu0 0
      %2365 = vmatpush1.bf16.msra.mxu0 %v2261
      %2366 = vmatprep.subr.bf16.mxu0 0
      %2367 = vmatpush1.bf16.msra.mxu0 %v2258
      %2368 = vmatprep.subr.bf16.mxu0 0
      %2369 = vmatpush1.bf16.msra.mxu0 %v2255
      %2370 = vmatprep.subr.bf16.mxu0 0
      %2371 = vmatpush2.bf16.msra.mxu0 0
      %2372 = vmatprep.subr.bf16.mxu0 0
      %2373 = vmatpush2.bf16.msra.mxu0 0
      %2374 = vmatprep.subr.bf16.mxu0 0
      %2375 = vmatpush2.bf16.msra.mxu0 0
      %2376 = vmatprep.subr.bf16.mxu0 0
      %2377 = vmatpush2.bf16.msra.mxu0 0
      %2378 = vmatprep.subr.bf16.mxu0 0
      %2379 = vmatpush2.bf16.msra.mxu0 0
      %2380 = vmatprep.subr.bf16.mxu0 0
      %2381 = vmatpush2.bf16.msra.mxu0 0
      %2382 = vmatprep.subr.bf16.mxu0 0
      %2383 = vmatpush2.bf16.msra.mxu0 0
      %2384 = vmatprep.subr.bf16.mxu0 0
      %2385 = vmatpush2.bf16.msra.mxu0 0
      %2386 = vmatprep.mubr.bf16.mxu0 0
      %2387 = vmatmul.mubr.bf16.gmra.mxu0 %v2120
      %v2388 = vpop.f32.mrf.mxu0
      %v2389 = vadd.f32 %v2169, %v2388
      %v2390 = vpop.f32.mrf.mxu0
      %v2391 = vpop.f32.mrf.mxu0
      %v2392 = vadd.f32 %v2169, %v2391
      %v2393 = vpop.f32.mrf.mxu0
      %2394 = vmatprep.mubr.bf16.mxu0 0
      %2395 = vmatmul.mubr.bf16.gmra.mxu0 %v2121
      %v2396 = vpop.f32.mrf.mxu0
      %v2397 = vadd.f32 %v2169, %v2396
      %v2398 = vpop.f32.mrf.mxu0
      %v2399 = vpop.f32.mrf.mxu0
      %v2400 = vadd.f32 %v2169, %v2399
      %v2401 = vpop.f32.mrf.mxu0
      %2402 = vdwg.mxu0
      %s2403 = scalar_lea.vmem %s7, 1
      %v2404 = vld [vmem:[%s2403] sm:$0x1]
      %v2405 = vpack.c.bf16 %v2340, %v2336
      %v2406 = vpack.c.bf16 %v2350, %v2346
      %v2407 = vpack.c.bf16 %v2342, %v2338
      %v2408 = vpack.c.bf16 %v2352, %v2348
      %v2409 = vpack.c.bf16 %v2392, %v2389
      %v2410 = vpack.c.bf16 %v2400, %v2397
      %v2412 = vsel %vm1019, %v2405, 0
      %v2415 = vsel %vm1019, %v2406, 0
      %v2418 = vsel %vm1019, %v2407, 0
      %v2421 = vsel %vm1019, %v2408, 0
      %2423 = vmatprep.subr.bf16.mxu0 0
      %2424 = vmatpush1.bf16.xpose.msra.mxu0 0
      %2425 = vmatprep.subr.bf16.mxu0 0
      %2426 = vmatpush1.bf16.xpose.msra.mxu0 0
      %2427 = vmatprep.subr.bf16.mxu0 0
      %2428 = vmatpush1.bf16.xpose.msra.mxu0 0
      %2429 = vmatprep.subr.bf16.mxu0 0
      %2430 = vmatpush1.bf16.xpose.msra.mxu0 0
      %2431 = vmatprep.subr.bf16.mxu0 0
      %2432 = vmatpush1.bf16.xpose.msra.mxu0 0
      %2433 = vmatprep.subr.bf16.mxu0 0
      %2434 = vmatpush1.bf16.xpose.msra.mxu0 0
      %2435 = vmatprep.subr.bf16.mxu0 0
      %2436 = vmatpush1.bf16.xpose.msra.mxu0 %v2421
      %2437 = vmatprep.subr.bf16.mxu0 0
      %2438 = vmatpush1.bf16.xpose.msra.mxu0 %v2418
      %2439 = vmatprep.subr.bf16.mxu0 0
      %2440 = vmatpush2.bf16.xpose.msra.mxu0 0
      %2441 = vmatprep.subr.bf16.mxu0 0
      %2442 = vmatpush2.bf16.xpose.msra.mxu0 0
      %2443 = vmatprep.subr.bf16.mxu0 0
      %2444 = vmatpush2.bf16.xpose.msra.mxu0 0
      %2445 = vmatprep.subr.bf16.mxu0 0
      %2446 = vmatpush2.bf16.xpose.msra.mxu0 0
      %2447 = vmatprep.subr.bf16.mxu0 0
      %2448 = vmatpush2.bf16.xpose.msra.mxu0 0
      %2449 = vmatprep.subr.bf16.mxu0 0
      %2450 = vmatpush2.bf16.xpose.msra.mxu0 0
      %2451 = vmatprep.subr.bf16.mxu0 0
      %2452 = vmatpush2.bf16.xpose.msra.mxu0 0
      %2453 = vmatprep.subr.bf16.mxu0 0
      %2454 = vmatpush2.bf16.xpose.msra.mxu0 0
      %2455 = vmatprep.mubr.bf16.mxu0 0
      %2456 = vmatmul.mubr.bf16.gmra.mxu0 %v2412
      %v2457 = vpop.f32.mrf.mxu0
      %v2458 = vadd.f32 %v656, %v2457
      %v2459 = vpop.f32.mrf.mxu0
      %v2460 = vpop.f32.mrf.mxu0
      %v2461 = vadd.f32 %v657, %v2460
      %v2462 = vpop.f32.mrf.mxu0
      %2463 = vmatprep.mubr.bf16.mxu0 0
      %2464 = vmatmul.mubr.bf16.gmra.mxu0 %v2415
      %v2465 = vpop.f32.mrf.mxu0
      %v2466 = vadd.f32 %v658, %v2465
      %v2467 = vpop.f32.mrf.mxu0
      %v2468 = vpop.f32.mrf.mxu0
      %v2469 = vadd.f32 %v659, %v2468
      %v2470 = vpop.f32.mrf.mxu0
      %2471 = vdwg.mxu0
      %v2472 = vsel %vm1081, %v2458, -inf
      %2473 = vmax.xlane.f32.xlu0 %v2472
      %v2474 = vpop.xlane.xlu0 %2473
      %v2475 = vsel %vm1081, %v2461, -inf
      %2476 = vmax.xlane.f32.xlu0 %v2475
      %v2477 = vpop.xlane.xlu0 %2476
      %v2478 = vsel %vm1081, %v2466, -inf
      %2479 = vmax.xlane.f32.xlu0 %v2478
      %v2480 = vpop.xlane.xlu0 %2479
      %v2481 = vsel %vm1081, %v2469, -inf
      %2482 = vmax.xlane.f32.xlu0 %v2481
      %v2483 = vpop.xlane.xlu0 %2482
      %v2484 = vsub.f32 %v2458, %v2474
      %v2485 = vsub.f32 %v2461, %v2477
      %v2486 = vsub.f32 %v2466, %v2480
      %v2487 = vsub.f32 %v2469, %v2483
      %v2488 = vmul.f32 %v2484, 1.442695
      %v2489 = vpow.pop %v2488
      %v2490 = vmul.f32 %v2485, 1.442695
      %v2491 = vpow.pop %v2490
      %v2492 = vmul.f32 %v2486, 1.442695
      %v2493 = vpow.pop %v2492
      %v2494 = vmul.f32 %v2487, 1.442695
      %v2495 = vpow.pop %v2494
      %v2496 = vsel %vm1081, %v2489, 0.0
      %2497 = vadd.xlane.f32.xlu0 %v2496
      %v2498 = vpop.xlane.xlu0 %2497
      %v2499 = vsel %vm1081, %v2491, 0.0
      %2500 = vadd.xlane.f32.xlu0 %v2499
      %v2501 = vpop.xlane.xlu0 %2500
      %v2502 = vsel %vm1081, %v2493, 0.0
      %2503 = vadd.xlane.f32.xlu0 %v2502
      %v2504 = vpop.xlane.xlu0 %2503
      %v2505 = vsel %vm1081, %v2495, 0.0
      %2506 = vadd.xlane.f32.xlu0 %v2505
      %v2507 = vpop.xlane.xlu0 %2506
      %v2508 = vrcp.pop %v2498
      %v2509 = vrcp.pop %v2501
      %v2510 = vrcp.pop %v2504
      %v2511 = vrcp.pop %v2507
      %v2512 = vmul.f32 %v2489, %v2508
      %v2513 = vmul.f32 %v2491, %v2509
      %v2514 = vmul.f32 %v2493, %v2510
      %v2515 = vmul.f32 %v2495, %v2511
      %v2516 = vpack.c.bf16 %v2513, %v2512
      %v2517 = vpack.c.bf16 %v2515, %v2514
      %v2519 = vsel %vm1081, %v2516, 0
      %v2522 = vsel %vm1081, %v2517, 0
      %2524 = vmatprep.subr.bf16.mxu0 0
      %2525 = vmatpush1.bf16.msra.mxu0 0
      %2526 = vmatprep.subr.bf16.mxu0 0
      %2527 = vmatpush1.bf16.msra.mxu0 0
      %2528 = vmatprep.subr.bf16.mxu0 0
      %2529 = vmatpush1.bf16.msra.mxu0 0
      %2530 = vmatprep.subr.bf16.mxu0 0
      %2531 = vmatpush1.bf16.msra.mxu0 0
      %2532 = vmatprep.subr.bf16.mxu0 0
      %2533 = vmatpush1.bf16.msra.mxu0 0
      %2534 = vmatprep.subr.bf16.mxu0 0
      %2535 = vmatpush1.bf16.msra.mxu0 0
      %2536 = vmatprep.subr.bf16.mxu0 0
      %2537 = vmatpush1.bf16.msra.mxu0 %v2410
      %2538 = vmatprep.subr.bf16.mxu0 0
      %2539 = vmatpush1.bf16.msra.mxu0 %v2409
      %2540 = vmatprep.subr.bf16.mxu0 0
      %2541 = vmatpush2.bf16.msra.mxu0 0
      %2542 = vmatprep.subr.bf16.mxu0 0
      %2543 = vmatpush2.bf16.msra.mxu0 0
      %2544 = vmatprep.subr.bf16.mxu0 0
      %2545 = vmatpush2.bf16.msra.mxu0 0
      %2546 = vmatprep.subr.bf16.mxu0 0
      %2547 = vmatpush2.bf16.msra.mxu0 0
      %2548 = vmatprep.subr.bf16.mxu0 0
      %2549 = vmatpush2.bf16.msra.mxu0 0
      %2550 = vmatprep.subr.bf16.mxu0 0
      %2551 = vmatpush2.bf16.msra.mxu0 0
      %2552 = vmatprep.subr.bf16.mxu0 0
      %2553 = vmatpush2.bf16.msra.mxu0 0
      %2554 = vmatprep.subr.bf16.mxu0 0
      %2555 = vmatpush2.bf16.msra.mxu0 0
      %2556 = vmatprep.mubr.bf16.mxu0 0
      %2557 = vmatmul.mubr.bf16.gmra.mxu0 %v2519
      %v2558 = vpop.f32.mrf.mxu0
      %v2559 = vadd.f32 0.0, %v2558
      %v2560 = vpop.f32.mrf.mxu0
      %v2561 = vpop.f32.mrf.mxu0
      %v2562 = vadd.f32 0.0, %v2561
      %v2563 = vpop.f32.mrf.mxu0
      %2564 = vmatprep.mubr.bf16.mxu0 0
      %2565 = vmatmul.mubr.bf16.gmra.mxu0 %v2522
      %v2566 = vpop.f32.mrf.mxu0
      %v2567 = vadd.f32 0.0, %v2566
      %v2568 = vpop.f32.mrf.mxu0
      %v2569 = vpop.f32.mrf.mxu0
      %v2570 = vadd.f32 0.0, %v2569
      %v2571 = vpop.f32.mrf.mxu0
      %2572 = vdwg.mxu0
      %v2573 = vpack.c.bf16 %v2562, %v2559
      %v2574 = vpack.c.bf16 %v2570, %v2567
      %s2575 = scalar_lea.vmem %s6, 64
      %v2576 = vld [vmem:[%s2575] sm:$0xf]
      %v2577 = vld [vmem:[%s2575 + $0x4] sm:$0xf]
      %v2578 = vld [vmem:[%s2575 + $0x8] sm:$0xf]
      %v2579 = vld [vmem:[%s2575 + $0xc] sm:$0xf]
      %v2580 = vld [vmem:[%s2575 + $0x10] sm:$0xf]
      %v2581 = vld [vmem:[%s2575 + $0x14] sm:$0xf]
      %v2582 = vld [vmem:[%s2575 + $0x18] sm:$0xf]
      %v2583 = vld [vmem:[%s2575 + $0x1c] sm:$0xf]
      %v2592 = vunpack.c.l.b16 %v2576
      %v2593 = vunpack.c.l.b16 %v2577
      %v2594 = vunpack.c.l.b16 %v2578
      %v2595 = vunpack.c.l.b16 %v2579
      %v2596 = vunpack.c.l.b16 %v2580
      %v2597 = vunpack.c.l.b16 %v2581
      %v2598 = vunpack.c.l.b16 %v2582
      %v2599 = vunpack.c.l.b16 %v2583
      %v2600 = vpack.c.b16 %v2593, %v2592
      %v2601 = vpack.c.b16 %v2595, %v2594
      %v2602 = vpack.c.b16 %v2597, %v2596
      %v2603 = vpack.c.b16 %v2599, %v2598
      %v2609 = vsel %vm1019, %v2573, 0
      %v2612 = vsel %vm1019, %v2574, 0
      %2614 = vmatprep.subr.bf16.mxu0 0
      %2615 = vmatpush1.bf16.msra.mxu0 0
      %2616 = vmatprep.subr.bf16.mxu0 0
      %2617 = vmatpush1.bf16.msra.mxu0 0
      %2618 = vmatprep.subr.bf16.mxu0 0
      %2619 = vmatpush1.bf16.msra.mxu0 0
      %2620 = vmatprep.subr.bf16.mxu0 0
      %2621 = vmatpush1.bf16.msra.mxu0 0
      %2622 = vmatprep.subr.bf16.mxu0 0
      %2623 = vmatpush1.bf16.msra.mxu0 %v2603
      %2624 = vmatprep.subr.bf16.mxu0 0
      %2625 = vmatpush1.bf16.msra.mxu0 %v2602
      %2626 = vmatprep.subr.bf16.mxu0 0
      %2627 = vmatpush1.bf16.msra.mxu0 %v2601
      %2628 = vmatprep.subr.bf16.mxu0 0
      %2629 = vmatpush1.bf16.msra.mxu0 %v2600
      %2630 = vmatprep.subr.bf16.mxu0 0
      %2631 = vmatpush2.bf16.msra.mxu0 0
      %2632 = vmatprep.subr.bf16.mxu0 0
      %2633 = vmatpush2.bf16.msra.mxu0 0
      %2634 = vmatprep.subr.bf16.mxu0 0
      %2635 = vmatpush2.bf16.msra.mxu0 0
      %2636 = vmatprep.subr.bf16.mxu0 0
      %2637 = vmatpush2.bf16.msra.mxu0 0
      %2638 = vmatprep.subr.bf16.mxu0 0
      %2639 = vmatpush2.bf16.msra.mxu0 0
      %2640 = vmatprep.subr.bf16.mxu0 0
      %2641 = vmatpush2.bf16.msra.mxu0 0
      %2642 = vmatprep.subr.bf16.mxu0 0
      %2643 = vmatpush2.bf16.msra.mxu0 0
      %2644 = vmatprep.subr.bf16.mxu0 0
      %2645 = vmatpush2.bf16.msra.mxu0 0
      %2646 = vmatprep.mubr.bf16.mxu0 0
      %2647 = vmatmul.mubr.bf16.gmra.mxu0 %v2609
      %v2648 = vpop.f32.mrf.mxu0
      %v2649 = vadd.f32 0.0, %v2648
      %v2650 = vpop.f32.mrf.mxu0
      %v2651 = vpop.f32.mrf.mxu0
      %v2652 = vadd.f32 0.0, %v2651
      %v2653 = vpop.f32.mrf.mxu0
      %2654 = vmatprep.mubr.bf16.mxu0 0
      %2655 = vmatmul.mubr.bf16.gmra.mxu0 %v2612
      %v2656 = vpop.f32.mrf.mxu0
      %v2657 = vadd.f32 0.0, %v2656
      %v2658 = vpop.f32.mrf.mxu0
      %v2659 = vpop.f32.mrf.mxu0
      %v2660 = vadd.f32 0.0, %v2659
      %v2661 = vpop.f32.mrf.mxu0
      %2662 = vdwg.mxu0
      %v2664 = vlaneseq
      %v2665 = vshrl.u32 %v2664, 7
      %v2666 = vsub.s32 0, %v2665
      %v2667 = vrot.slane %v2404, %v2666
      %v2669 = vadd.f32 %v2667, %v2649
      %v2670 = vadd.f32 %v2667, %v2652
      %v2671 = vadd.f32 %v2667, %v2657
      %v2672 = vadd.f32 %v2667, %v2660
      %2675 = vrot.lane.b32.xlu0 %v2405, 64
      %v2676 = vpop.permute.xlu0 %2675
      %2677 = vrot.lane.b32.xlu0 %v2406, 64
      %v2678 = vpop.permute.xlu0 %2677
      %2681 = vrot.lane.b32.xlu0 %v2407, 64
      %v2682 = vpop.permute.xlu0 %2681
      %2683 = vrot.lane.b32.xlu0 %v2408, 64
      %v2684 = vpop.permute.xlu0 %2683
      %v2686 = vsel %vm1019, %v2676, 0
      %v2689 = vsel %vm1019, %v2678, 0
      %v2692 = vsel %vm1019, %v2682, 0
      %v2695 = vsel %vm1019, %v2684, 0
      %2697 = vmatprep.subr.bf16.mxu0 0
      %2698 = vmatpush1.bf16.xpose.msra.mxu0 0
      %2699 = vmatprep.subr.bf16.mxu0 0
      %2700 = vmatpush1.bf16.xpose.msra.mxu0 0
      %2701 = vmatprep.subr.bf16.mxu0 0
      %2702 = vmatpush1.bf16.xpose.msra.mxu0 0
      %2703 = vmatprep.subr.bf16.mxu0 0
      %2704 = vmatpush1.bf16.xpose.msra.mxu0 0
      %2705 = vmatprep.subr.bf16.mxu0 0
      %2706 = vmatpush1.bf16.xpose.msra.mxu0 0
      %2707 = vmatprep.subr.bf16.mxu0 0
      %2708 = vmatpush1.bf16.xpose.msra.mxu0 0
      %2709 = vmatprep.subr.bf16.mxu0 0
      %2710 = vmatpush1.bf16.xpose.msra.mxu0 %v2695
      %2711 = vmatprep.subr.bf16.mxu0 0
      %2712 = vmatpush1.bf16.xpose.msra.mxu0 %v2692
      %2713 = vmatprep.subr.bf16.mxu0 0
      %2714 = vmatpush2.bf16.xpose.msra.mxu0 0
      %2715 = vmatprep.subr.bf16.mxu0 0
      %2716 = vmatpush2.bf16.xpose.msra.mxu0 0
      %2717 = vmatprep.subr.bf16.mxu0 0
      %2718 = vmatpush2.bf16.xpose.msra.mxu0 0
      %2719 = vmatprep.subr.bf16.mxu0 0
      %2720 = vmatpush2.bf16.xpose.msra.mxu0 0
      %2721 = vmatprep.subr.bf16.mxu0 0
      %2722 = vmatpush2.bf16.xpose.msra.mxu0 0
      %2723 = vmatprep.subr.bf16.mxu0 0
      %2724 = vmatpush2.bf16.xpose.msra.mxu0 0
      %2725 = vmatprep.subr.bf16.mxu0 0
      %2726 = vmatpush2.bf16.xpose.msra.mxu0 0
      %2727 = vmatprep.subr.bf16.mxu0 0
      %2728 = vmatpush2.bf16.xpose.msra.mxu0 0
      %2729 = vmatprep.mubr.bf16.mxu0 0
      %2730 = vmatmul.mubr.bf16.gmra.mxu0 %v2686
      %v2731 = vpop.f32.mrf.mxu0
      %v2732 = vadd.f32 %v656, %v2731
      %v2733 = vpop.f32.mrf.mxu0
      %v2734 = vpop.f32.mrf.mxu0
      %v2735 = vadd.f32 %v657, %v2734
      %v2736 = vpop.f32.mrf.mxu0
      %2737 = vmatprep.mubr.bf16.mxu0 0
      %2738 = vmatmul.mubr.bf16.gmra.mxu0 %v2689
      %v2739 = vpop.f32.mrf.mxu0
      %v2740 = vadd.f32 %v658, %v2739
      %v2741 = vpop.f32.mrf.mxu0
      %v2742 = vpop.f32.mrf.mxu0
      %v2743 = vadd.f32 %v659, %v2742
      %v2744 = vpop.f32.mrf.mxu0
      %2745 = vdwg.mxu0
      %v2746 = vsel %vm1081, %v2732, -inf
      %2747 = vmax.xlane.f32.xlu0 %v2746
      %v2748 = vpop.xlane.xlu0 %2747
      %v2749 = vsel %vm1081, %v2735, -inf
      %2750 = vmax.xlane.f32.xlu0 %v2749
      %v2751 = vpop.xlane.xlu0 %2750
      %v2752 = vsel %vm1081, %v2740, -inf
      %2753 = vmax.xlane.f32.xlu0 %v2752
      %v2754 = vpop.xlane.xlu0 %2753
      %v2755 = vsel %vm1081, %v2743, -inf
      %2756 = vmax.xlane.f32.xlu0 %v2755
      %v2757 = vpop.xlane.xlu0 %2756
      %v2758 = vsub.f32 %v2732, %v2748
      %v2759 = vsub.f32 %v2735, %v2751
      %v2760 = vsub.f32 %v2740, %v2754
      %v2761 = vsub.f32 %v2743, %v2757
      %v2762 = vmul.f32 %v2758, 1.442695
      %v2763 = vpow.pop %v2762
      %v2764 = vmul.f32 %v2759, 1.442695
      %v2765 = vpow.pop %v2764
      %v2766 = vmul.f32 %v2760, 1.442695
      %v2767 = vpow.pop %v2766
      %v2768 = vmul.f32 %v2761, 1.442695
      %v2769 = vpow.pop %v2768
      %v2770 = vsel %vm1081, %v2763, 0.0
      %2771 = vadd.xlane.f32.xlu0 %v2770
      %v2772 = vpop.xlane.xlu0 %2771
      %v2773 = vsel %vm1081, %v2765, 0.0
      %2774 = vadd.xlane.f32.xlu0 %v2773
      %v2775 = vpop.xlane.xlu0 %2774
      %v2776 = vsel %vm1081, %v2767, 0.0
      %2777 = vadd.xlane.f32.xlu0 %v2776
      %v2778 = vpop.xlane.xlu0 %2777
      %v2779 = vsel %vm1081, %v2769, 0.0
      %2780 = vadd.xlane.f32.xlu0 %v2779
      %v2781 = vpop.xlane.xlu0 %2780
      %v2782 = vrcp.pop %v2772
      %v2783 = vrcp.pop %v2775
      %v2784 = vrcp.pop %v2778
      %v2785 = vrcp.pop %v2781
      %v2786 = vmul.f32 %v2763, %v2782
      %v2787 = vmul.f32 %v2765, %v2783
      %v2788 = vmul.f32 %v2767, %v2784
      %v2789 = vmul.f32 %v2769, %v2785
      %v2790 = vpack.c.bf16 %v2787, %v2786
      %v2791 = vpack.c.bf16 %v2789, %v2788
      %2794 = vrot.lane.b32.xlu0 %v2409, 64
      %v2795 = vpop.permute.xlu0 %2794
      %2796 = vrot.lane.b32.xlu0 %v2410, 64
      %v2797 = vpop.permute.xlu0 %2796
      %v2801 = vsel %vm1081, %v2790, 0
      %v2804 = vsel %vm1081, %v2791, 0
      %2806 = vmatprep.subr.bf16.mxu0 0
      %2807 = vmatpush1.bf16.msra.mxu0 0
      %2808 = vmatprep.subr.bf16.mxu0 0
      %2809 = vmatpush1.bf16.msra.mxu0 0
      %2810 = vmatprep.subr.bf16.mxu0 0
      %2811 = vmatpush1.bf16.msra.mxu0 0
      %2812 = vmatprep.subr.bf16.mxu0 0
      %2813 = vmatpush1.bf16.msra.mxu0 0
      %2814 = vmatprep.subr.bf16.mxu0 0
      %2815 = vmatpush1.bf16.msra.mxu0 0
      %2816 = vmatprep.subr.bf16.mxu0 0
      %2817 = vmatpush1.bf16.msra.mxu0 0
      %2818 = vmatprep.subr.bf16.mxu0 0
      %2819 = vmatpush1.bf16.msra.mxu0 %v2797
      %2820 = vmatprep.subr.bf16.mxu0 0
      %2821 = vmatpush1.bf16.msra.mxu0 %v2795
      %2822 = vmatprep.subr.bf16.mxu0 0
      %2823 = vmatpush2.bf16.msra.mxu0 0
      %2824 = vmatprep.subr.bf16.mxu0 0
      %2825 = vmatpush2.bf16.msra.mxu0 0
      %2826 = vmatprep.subr.bf16.mxu0 0
      %2827 = vmatpush2.bf16.msra.mxu0 0
      %2828 = vmatprep.subr.bf16.mxu0 0
      %2829 = vmatpush2.bf16.msra.mxu0 0
      %2830 = vmatprep.subr.bf16.mxu0 0
      %2831 = vmatpush2.bf16.msra.mxu0 0
      %2832 = vmatprep.subr.bf16.mxu0 0
      %2833 = vmatpush2.bf16.msra.mxu0 0
      %2834 = vmatprep.subr.bf16.mxu0 0
      %2835 = vmatpush2.bf16.msra.mxu0 0
      %2836 = vmatprep.subr.bf16.mxu0 0
      %2837 = vmatpush2.bf16.msra.mxu0 0
      %2838 = vmatprep.mubr.bf16.mxu0 0
      %2839 = vmatmul.mubr.bf16.gmra.mxu0 %v2801
      %v2840 = vpop.f32.mrf.mxu0
      %v2841 = vadd.f32 0.0, %v2840
      %v2842 = vpop.f32.mrf.mxu0
      %v2843 = vpop.f32.mrf.mxu0
      %v2844 = vadd.f32 0.0, %v2843
      %v2845 = vpop.f32.mrf.mxu0
      %2846 = vmatprep.mubr.bf16.mxu0 0
      %2847 = vmatmul.mubr.bf16.gmra.mxu0 %v2804
      %v2848 = vpop.f32.mrf.mxu0
      %v2849 = vadd.f32 0.0, %v2848
      %v2850 = vpop.f32.mrf.mxu0
      %v2851 = vpop.f32.mrf.mxu0
      %v2852 = vadd.f32 0.0, %v2851
      %v2853 = vpop.f32.mrf.mxu0
      %2854 = vdwg.mxu0
      %v2855 = vpack.c.bf16 %v2844, %v2841
      %v2856 = vpack.c.bf16 %v2852, %v2849
      %v2857 = vld [vmem:[%s2575 + $0x20] sm:$0xf]
      %v2858 = vld [vmem:[%s2575 + $0x24] sm:$0xf]
      %v2859 = vld [vmem:[%s2575 + $0x28] sm:$0xf]
      %v2860 = vld [vmem:[%s2575 + $0x2c] sm:$0xf]
      %v2861 = vld [vmem:[%s2575 + $0x30] sm:$0xf]
      %v2862 = vld [vmem:[%s2575 + $0x34] sm:$0xf]
      %v2863 = vld [vmem:[%s2575 + $0x38] sm:$0xf]
      %v2864 = vld [vmem:[%s2575 + $0x3c] sm:$0xf]
      %v2873 = vunpack.c.l.b16 %v2857
      %v2874 = vunpack.c.l.b16 %v2858
      %v2875 = vunpack.c.l.b16 %v2859
      %v2876 = vunpack.c.l.b16 %v2860
      %v2877 = vunpack.c.l.b16 %v2861
      %v2878 = vunpack.c.l.b16 %v2862
      %v2879 = vunpack.c.l.b16 %v2863
      %v2880 = vunpack.c.l.b16 %v2864
      %v2881 = vpack.c.b16 %v2874, %v2873
      %v2882 = vpack.c.b16 %v2876, %v2875
      %v2883 = vpack.c.b16 %v2878, %v2877
      %v2884 = vpack.c.b16 %v2880, %v2879
      %v2890 = vsel %vm1019, %v2855, 0
      %v2893 = vsel %vm1019, %v2856, 0
      %2895 = vmatprep.subr.bf16.mxu0 0
      %2896 = vmatpush1.bf16.msra.mxu0 0
      %2897 = vmatprep.subr.bf16.mxu0 0
      %2898 = vmatpush1.bf16.msra.mxu0 0
      %2899 = vmatprep.subr.bf16.mxu0 0
      %2900 = vmatpush1.bf16.msra.mxu0 0
      %2901 = vmatprep.subr.bf16.mxu0 0
      %2902 = vmatpush1.bf16.msra.mxu0 0
      %2903 = vmatprep.subr.bf16.mxu0 0
      %2904 = vmatpush1.bf16.msra.mxu0 %v2884
      %2905 = vmatprep.subr.bf16.mxu0 0
      %2906 = vmatpush1.bf16.msra.mxu0 %v2883
      %2907 = vmatprep.subr.bf16.mxu0 0
      %2908 = vmatpush1.bf16.msra.mxu0 %v2882
      %2909 = vmatprep.subr.bf16.mxu0 0
      %2910 = vmatpush1.bf16.msra.mxu0 %v2881
      %2911 = vmatprep.subr.bf16.mxu0 0
      %2912 = vmatpush2.bf16.msra.mxu0 0
      %2913 = vmatprep.subr.bf16.mxu0 0
      %2914 = vmatpush2.bf16.msra.mxu0 0
      %2915 = vmatprep.subr.bf16.mxu0 0
      %2916 = vmatpush2.bf16.msra.mxu0 0
      %2917 = vmatprep.subr.bf16.mxu0 0
      %2918 = vmatpush2.bf16.msra.mxu0 0
      %2919 = vmatprep.subr.bf16.mxu0 0
      %2920 = vmatpush2.bf16.msra.mxu0 0
      %2921 = vmatprep.subr.bf16.mxu0 0
      %2922 = vmatpush2.bf16.msra.mxu0 0
      %2923 = vmatprep.subr.bf16.mxu0 0
      %2924 = vmatpush2.bf16.msra.mxu0 0
      %2925 = vmatprep.subr.bf16.mxu0 0
      %2926 = vmatpush2.bf16.msra.mxu0 0
      %2927 = vmatprep.mubr.bf16.mxu0 0
      %2928 = vmatmul.mubr.bf16.gmra.mxu0 %v2890
      %v2929 = vpop.f32.mrf.mxu0
      %v2930 = vadd.f32 0.0, %v2929
      %v2931 = vpop.f32.mrf.mxu0
      %v2932 = vpop.f32.mrf.mxu0
      %v2933 = vadd.f32 0.0, %v2932
      %v2934 = vpop.f32.mrf.mxu0
      %2935 = vmatprep.mubr.bf16.mxu0 0
      %2936 = vmatmul.mubr.bf16.gmra.mxu0 %v2893
      %v2937 = vpop.f32.mrf.mxu0
      %v2938 = vadd.f32 0.0, %v2937
      %v2939 = vpop.f32.mrf.mxu0
      %v2940 = vpop.f32.mrf.mxu0
      %v2941 = vadd.f32 0.0, %v2940
      %v2942 = vpop.f32.mrf.mxu0
      %2943 = vdwg.mxu0
      %v2944 = vadd.f32 %v2669, %v2930
      %v2945 = vadd.f32 %v2670, %v2933
      %v2946 = vadd.f32 %v2671, %v2938
      %v2947 = vadd.f32 %v2672, %v2941
      %v2948 = vadd.f32 %v2944, %v2116
      %v2949 = vadd.f32 %v2945, %v2117
      %v2950 = vadd.f32 %v2946, %v2118
      %v2951 = vadd.f32 %v2947, %v2119
      %s2952 = scalar_lea.vmem %s8, 1
      %v2953 = vld [vmem:[%s2952] sm:$0x1]
      %s2954 = scalar_lea.vmem %s9, 1
      %v2955 = vld [vmem:[%s2954] sm:$0x1]
      %2956 = vadd.xlane.f32.xlu0 %v2948
      %v2957 = vpop.xlane.xlu0 %2956
      %2958 = vadd.xlane.f32.xlu0 %v2949
      %v2959 = vpop.xlane.xlu0 %2958
      %2960 = vadd.xlane.f32.xlu0 %v2950
      %v2961 = vpop.xlane.xlu0 %2960
      %2962 = vadd.xlane.f32.xlu0 %v2951
      %v2963 = vpop.xlane.xlu0 %2962
      %v2964 = vmul.f32 %v2957, %v674
      %v2965 = vmul.f32 %v2959, %v674
      %v2966 = vmul.f32 %v2961, %v674
      %v2967 = vmul.f32 %v2963, %v674
      %v2968 = vsub.f32 %v2948, %v2964
      %v2969 = vsub.f32 %v2949, %v2965
      %v2970 = vsub.f32 %v2950, %v2966
      %v2971 = vsub.f32 %v2951, %v2967
      %v2972 = vmul.f32 %v2968, %v2968
      %v2973 = vmul.f32 %v2969, %v2969
      %v2974 = vmul.f32 %v2970, %v2970
      %v2975 = vmul.f32 %v2971, %v2971
      %2976 = vadd.xlane.f32.xlu0 %v2972
      %v2977 = vpop.xlane.xlu0 %2976
      %2978 = vadd.xlane.f32.xlu0 %v2973
      %v2979 = vpop.xlane.xlu0 %2978
      %2980 = vadd.xlane.f32.xlu0 %v2974
      %v2981 = vpop.xlane.xlu0 %2980
      %2982 = vadd.xlane.f32.xlu0 %v2975
      %v2983 = vpop.xlane.xlu0 %2982
      %v2984 = vmul.f32 %v2977, %v674
      %v2985 = vmul.f32 %v2979, %v674
      %v2986 = vmul.f32 %v2981, %v674
      %v2987 = vmul.f32 %v2983, %v674
      %v2988 = vadd.f32 %v2984, 1e-12
      %v2989 = vadd.f32 %v2985, 1e-12
      %v2990 = vadd.f32 %v2986, 1e-12
      %v2991 = vadd.f32 %v2987, 1e-12
      %v2992 = vrsqrt.pop %v2988
      %v2993 = vrsqrt.pop %v2989
      %v2994 = vrsqrt.pop %v2990
      %v2995 = vrsqrt.pop %v2991
      %v2996 = vmul.f32 %v2968, %v2992
      %v2997 = vmul.f32 %v2969, %v2993
      %v2998 = vmul.f32 %v2970, %v2994
      %v2999 = vmul.f32 %v2971, %v2995
      %v3001 = vlaneseq
      %v3002 = vshrl.u32 %v3001, 7
      %v3003 = vsub.s32 0, %v3002
      %v3004 = vrot.slane %v2953, %v3003
      %v3006 = vmul.f32 %v2996, %v3004
      %v3007 = vmul.f32 %v2997, %v3004
      %v3008 = vmul.f32 %v2998, %v3004
      %v3009 = vmul.f32 %v2999, %v3004
      %v3011 = vlaneseq
      %v3012 = vshrl.u32 %v3011, 7
      %v3013 = vsub.s32 0, %v3012
      %v3014 = vrot.slane %v2955, %v3013
      %v3016 = vadd.f32 %v3006, %v3014
      %v3017 = vadd.f32 %v3007, %v3014
      %v3018 = vadd.f32 %v3008, %v3014
      %v3019 = vadd.f32 %v3009, %v3014
      %v3020 = vpack.c.bf16 %v3017, %v3016
      %v3021 = vpack.c.bf16 %v3019, %v3018
      %s3022 = scalar_lea.vmem %s10, 128
      %v3023 = vld [vmem:[%s3022] sm:$0xff]
      %v3024 = vld [vmem:[%s3022 + $0x8] sm:$0xff]
      %v3025 = vld [vmem:[%s3022 + $0x10] sm:$0xff]
      %v3026 = vld [vmem:[%s3022 + $0x18] sm:$0xff]
      %v3027 = vld [vmem:[%s3022 + $0x20] sm:$0xff]
      %v3028 = vld [vmem:[%s3022 + $0x28] sm:$0xff]
      %v3029 = vld [vmem:[%s3022 + $0x30] sm:$0xff]
      %v3030 = vld [vmem:[%s3022 + $0x38] sm:$0xff]
      %v3031 = vld [vmem:[%s3022 + $0x40] sm:$0xff]
      %v3032 = vld [vmem:[%s3022 + $0x48] sm:$0xff]
      %v3033 = vld [vmem:[%s3022 + $0x50] sm:$0xff]
      %v3034 = vld [vmem:[%s3022 + $0x58] sm:$0xff]
      %v3035 = vld [vmem:[%s3022 + $0x60] sm:$0xff]
      %v3036 = vld [vmem:[%s3022 + $0x68] sm:$0xff]
      %v3037 = vld [vmem:[%s3022 + $0x70] sm:$0xff]
      %v3038 = vld [vmem:[%s3022 + $0x78] sm:$0xff]
      %s3039 = scalar_lea.vmem %s11, 2
      %v3040 = vld [vmem:[%s3039] sm:$0x3]
      %v3042 = vlaneseq
      %v3043 = vshrl.u32 %v3042, 7
      %v3044 = vsub.s32 0, %v3043
      %v3045 = vrot.slane %v3040, %v3044
      %v3046 = vlaneseq
      %v3047 = vshrl.u32 %v3046, 7
      %v3048 = vsub.s32 1, %v3047
      %v3049 = vrot.slane %v3040, %v3048
      %v3068 = vunpack.c.l.b16 %v3023
      %v3069 = vunpack.c.h.b16 %v3023
      %v3070 = vunpack.c.l.b16 %v3024
      %v3071 = vunpack.c.h.b16 %v3024
      %v3072 = vunpack.c.l.b16 %v3025
      %v3073 = vunpack.c.h.b16 %v3025
      %v3074 = vunpack.c.l.b16 %v3026
      %v3075 = vunpack.c.h.b16 %v3026
      %v3076 = vunpack.c.l.b16 %v3027
      %v3077 = vunpack.c.h.b16 %v3027
      %v3078 = vunpack.c.l.b16 %v3028
      %v3079 = vunpack.c.h.b16 %v3028
      %v3080 = vunpack.c.l.b16 %v3029
      %v3081 = vunpack.c.h.b16 %v3029
      %v3082 = vunpack.c.l.b16 %v3030
      %v3083 = vunpack.c.h.b16 %v3030
      %v3084 = vunpack.c.l.b16 %v3031
      %v3085 = vunpack.c.h.b16 %v3031
      %v3086 = vunpack.c.l.b16 %v3032
      %v3087 = vunpack.c.h.b16 %v3032
      %v3088 = vunpack.c.l.b16 %v3033
      %v3089 = vunpack.c.h.b16 %v3033
      %v3090 = vunpack.c.l.b16 %v3034
      %v3091 = vunpack.c.h.b16 %v3034
      %v3092 = vunpack.c.l.b16 %v3035
      %v3093 = vunpack.c.h.b16 %v3035
      %v3094 = vunpack.c.l.b16 %v3036
      %v3095 = vunpack.c.h.b16 %v3036
      %v3096 = vunpack.c.l.b16 %v3037
      %v3097 = vunpack.c.h.b16 %v3037
      %v3098 = vunpack.c.l.b16 %v3038
      %v3099 = vunpack.c.h.b16 %v3038
      %v3100 = vpack.c.b16 %v3070, %v3068
      %v3101 = vpack.c.b16 %v3071, %v3069
      %v3102 = vpack.c.b16 %v3074, %v3072
      %v3103 = vpack.c.b16 %v3075, %v3073
      %v3104 = vpack.c.b16 %v3078, %v3076
      %v3105 = vpack.c.b16 %v3079, %v3077
      %v3106 = vpack.c.b16 %v3082, %v3080
      %v3107 = vpack.c.b16 %v3083, %v3081
      %v3108 = vpack.c.b16 %v3086, %v3084
      %v3109 = vpack.c.b16 %v3087, %v3085
      %v3110 = vpack.c.b16 %v3090, %v3088
      %v3111 = vpack.c.b16 %v3091, %v3089
      %v3112 = vpack.c.b16 %v3094, %v3092
      %v3113 = vpack.c.b16 %v3095, %v3093
      %v3114 = vpack.c.b16 %v3098, %v3096
      %v3115 = vpack.c.b16 %v3099, %v3097
      %3132 = vmatprep.subr.bf16.mxu0 %v3115
      %3133 = vmatpush1.bf16.msra.mxu0 %v3114
      %3134 = vmatprep.subr.bf16.mxu0 %v3113
      %3135 = vmatpush1.bf16.msra.mxu0 %v3112
      %3136 = vmatprep.subr.bf16.mxu0 %v3111
      %3137 = vmatpush1.bf16.msra.mxu0 %v3110
      %3138 = vmatprep.subr.bf16.mxu0 %v3109
      %3139 = vmatpush1.bf16.msra.mxu0 %v3108
      %3140 = vmatprep.subr.bf16.mxu0 %v3107
      %3141 = vmatpush1.bf16.msra.mxu0 %v3106
      %3142 = vmatprep.subr.bf16.mxu0 %v3105
      %3143 = vmatpush1.bf16.msra.mxu0 %v3104
      %3144 = vmatprep.subr.bf16.mxu0 %v3103
      %3145 = vmatpush1.bf16.msra.mxu0 %v3102
      %3146 = vmatprep.subr.bf16.mxu0 %v3101
      %3147 = vmatpush1.bf16.msra.mxu0 %v3100
      %3148 = vmatprep.subr.bf16.mxu0 0
      %3149 = vmatpush2.bf16.msra.mxu0 0
      %3150 = vmatprep.subr.bf16.mxu0 0
      %3151 = vmatpush2.bf16.msra.mxu0 0
      %3152 = vmatprep.subr.bf16.mxu0 0
      %3153 = vmatpush2.bf16.msra.mxu0 0
      %3154 = vmatprep.subr.bf16.mxu0 0
      %3155 = vmatpush2.bf16.msra.mxu0 0
      %3156 = vmatprep.subr.bf16.mxu0 0
      %3157 = vmatpush2.bf16.msra.mxu0 0
      %3158 = vmatprep.subr.bf16.mxu0 0
      %3159 = vmatpush2.bf16.msra.mxu0 0
      %3160 = vmatprep.subr.bf16.mxu0 0
      %3161 = vmatpush2.bf16.msra.mxu0 0
      %3162 = vmatprep.subr.bf16.mxu0 0
      %3163 = vmatpush2.bf16.msra.mxu0 0
      %3164 = vmatprep.mubr.bf16.mxu0 0
      %3165 = vmatmul.mubr.bf16.gmra.mxu0 %v3020
      %v3166 = vpop.f32.mrf.mxu0
      %v3167 = vadd.f32 %v3045, %v3166
      %v3168 = vpop.f32.mrf.mxu0
      %v3169 = vadd.f32 %v3049, %v3168
      %v3170 = vpop.f32.mrf.mxu0
      %v3171 = vadd.f32 %v3045, %v3170
      %v3172 = vpop.f32.mrf.mxu0
      %v3173 = vadd.f32 %v3049, %v3172
      %3174 = vmatprep.mubr.bf16.mxu0 0
      %3175 = vmatmul.mubr.bf16.gmra.mxu0 %v3021
      %v3176 = vpop.f32.mrf.mxu0
      %v3177 = vadd.f32 %v3045, %v3176
      %v3178 = vpop.f32.mrf.mxu0
      %v3179 = vadd.f32 %v3049, %v3178
      %v3180 = vpop.f32.mrf.mxu0
      %v3181 = vadd.f32 %v3045, %v3180
      %v3182 = vpop.f32.mrf.mxu0
      %v3183 = vadd.f32 %v3049, %v3182
      %3184 = vdwg.mxu0
      %v3185 = vmul.f32 %v3167, 0.5
      %v3186 = vmul.f32 %v3169, 0.5
      %v3187 = vmul.f32 %v3171, 0.5
      %v3188 = vmul.f32 %v3173, 0.5
      %v3189 = vmul.f32 %v3177, 0.5
      %v3190 = vmul.f32 %v3179, 0.5
      %v3191 = vmul.f32 %v3181, 0.5
      %v3192 = vmul.f32 %v3183, 0.5
      %v3193 = vmul.f32 %v3167, 0.044715
      %v3194 = vmul.f32 %v3169, 0.044715
      %v3195 = vmul.f32 %v3171, 0.044715
      %v3196 = vmul.f32 %v3173, 0.044715
      %v3197 = vmul.f32 %v3177, 0.044715
      %v3198 = vmul.f32 %v3179, 0.044715
      %v3199 = vmul.f32 %v3181, 0.044715
      %v3200 = vmul.f32 %v3183, 0.044715
      %v3201 = vmul.f32 %v3193, %v3167
      %v3202 = vmul.f32 %v3194, %v3169
      %v3203 = vmul.f32 %v3195, %v3171
      %v3204 = vmul.f32 %v3196, %v3173
      %v3205 = vmul.f32 %v3197, %v3177
      %v3206 = vmul.f32 %v3198, %v3179
      %v3207 = vmul.f32 %v3199, %v3181
      %v3208 = vmul.f32 %v3200, %v3183
      %v3209 = vmul.f32 %v3201, %v3167
      %v3210 = vmul.f32 %v3202, %v3169
      %v3211 = vmul.f32 %v3203, %v3171
      %v3212 = vmul.f32 %v3204, %v3173
      %v3213 = vmul.f32 %v3205, %v3177
      %v3214 = vmul.f32 %v3206, %v3179
      %v3215 = vmul.f32 %v3207, %v3181
      %v3216 = vmul.f32 %v3208, %v3183
      %v3217 = vadd.f32 %v3167, %v3209
      %v3218 = vadd.f32 %v3169, %v3210
      %v3219 = vadd.f32 %v3171, %v3211
      %v3220 = vadd.f32 %v3173, %v3212
      %v3221 = vadd.f32 %v3177, %v3213
      %v3222 = vadd.f32 %v3179, %v3214
      %v3223 = vadd.f32 %v3181, %v3215
      %v3224 = vadd.f32 %v3183, %v3216
      %v3225 = vmul.f32 %v3217, 0.7978846
      %v3226 = vmul.f32 %v3218, 0.7978846
      %v3227 = vmul.f32 %v3219, 0.7978846
      %v3228 = vmul.f32 %v3220, 0.7978846
      %v3229 = vmul.f32 %v3221, 0.7978846
      %v3230 = vmul.f32 %v3222, 0.7978846
      %v3231 = vmul.f32 %v3223, 0.7978846
      %v3232 = vmul.f32 %v3224, 0.7978846
      %v3233 = vtanh.pop %v3225
      %v3234 = vtanh.pop %v3226
      %v3235 = vtanh.pop %v3227
      %v3236 = vtanh.pop %v3228
      %v3237 = vtanh.pop %v3229
      %v3238 = vtanh.pop %v3230
      %v3239 = vtanh.pop %v3231
      %v3240 = vtanh.pop %v3232
      %v3241 = vadd.f32 %v3233, 1.0
      %v3242 = vadd.f32 %v3234, 1.0
      %v3243 = vadd.f32 %v3235, 1.0
      %v3244 = vadd.f32 %v3236, 1.0
      %v3245 = vadd.f32 %v3237, 1.0
      %v3246 = vadd.f32 %v3238, 1.0
      %v3247 = vadd.f32 %v3239, 1.0
      %v3248 = vadd.f32 %v3240, 1.0
      %v3249 = vmul.f32 %v3185, %v3241
      %v3250 = vmul.f32 %v3186, %v3242
      %v3251 = vmul.f32 %v3187, %v3243
      %v3252 = vmul.f32 %v3188, %v3244
      %v3253 = vmul.f32 %v3189, %v3245
      %v3254 = vmul.f32 %v3190, %v3246
      %v3255 = vmul.f32 %v3191, %v3247
      %v3256 = vmul.f32 %v3192, %v3248
      %v3257 = vpack.c.bf16 %v3251, %v3249
      %v3258 = vpack.c.bf16 %v3252, %v3250
      %v3259 = vpack.c.bf16 %v3255, %v3253
      %v3260 = vpack.c.bf16 %v3256, %v3254
      %s3261 = scalar_lea.vmem %s12, 128
      %v3262 = vld [vmem:[%s3261] sm:$0xf]
      %v3263 = vld [vmem:[%s3261 + $0x4] sm:$0xf]
      %v3264 = vld [vmem:[%s3261 + $0x8] sm:$0xf]
      %v3265 = vld [vmem:[%s3261 + $0xc] sm:$0xf]
      %v3266 = vld [vmem:[%s3261 + $0x10] sm:$0xf]
      %v3267 = vld [vmem:[%s3261 + $0x14] sm:$0xf]
      %v3268 = vld [vmem:[%s3261 + $0x18] sm:$0xf]
      %v3269 = vld [vmem:[%s3261 + $0x1c] sm:$0xf]
      %v3270 = vld [vmem:[%s3261 + $0x20] sm:$0xf]
      %v3271 = vld [vmem:[%s3261 + $0x24] sm:$0xf]
      %v3272 = vld [vmem:[%s3261 + $0x28] sm:$0xf]
      %v3273 = vld [vmem:[%s3261 + $0x2c] sm:$0xf]
      %v3274 = vld [vmem:[%s3261 + $0x30] sm:$0xf]
      %v3275 = vld [vmem:[%s3261 + $0x34] sm:$0xf]
      %v3276 = vld [vmem:[%s3261 + $0x38] sm:$0xf]
      %v3277 = vld [vmem:[%s3261 + $0x3c] sm:$0xf]
      %v3278 = vld [vmem:[%s3261 + $0x40] sm:$0xf]
      %v3279 = vld [vmem:[%s3261 + $0x44] sm:$0xf]
      %v3280 = vld [vmem:[%s3261 + $0x48] sm:$0xf]
      %v3281 = vld [vmem:[%s3261 + $0x4c] sm:$0xf]
      %v3282 = vld [vmem:[%s3261 + $0x50] sm:$0xf]
      %v3283 = vld [vmem:[%s3261 + $0x54] sm:$0xf]
      %v3284 = vld [vmem:[%s3261 + $0x58] sm:$0xf]
      %v3285 = vld [vmem:[%s3261 + $0x5c] sm:$0xf]
      %v3286 = vld [vmem:[%s3261 + $0x60] sm:$0xf]
      %v3287 = vld [vmem:[%s3261 + $0x64] sm:$0xf]
      %v3288 = vld [vmem:[%s3261 + $0x68] sm:$0xf]
      %v3289 = vld [vmem:[%s3261 + $0x6c] sm:$0xf]
      %v3290 = vld [vmem:[%s3261 + $0x70] sm:$0xf]
      %v3291 = vld [vmem:[%s3261 + $0x74] sm:$0xf]
      %v3292 = vld [vmem:[%s3261 + $0x78] sm:$0xf]
      %v3293 = vld [vmem:[%s3261 + $0x7c] sm:$0xf]
      %s3294 = scalar_lea.vmem %s13, 1
      %v3295 = vld [vmem:[%s3294] sm:$0x1]
      %v3297 = vlaneseq
      %v3298 = vshrl.u32 %v3297, 7
      %v3299 = vsub.s32 0, %v3298
      %v3300 = vrot.slane %v3295, %v3299
      %v3334 = vunpack.c.l.b16 %v3262
      %v3335 = vunpack.c.l.b16 %v3263
      %v3336 = vunpack.c.l.b16 %v3264
      %v3337 = vunpack.c.l.b16 %v3265
      %v3338 = vunpack.c.l.b16 %v3266
      %v3339 = vunpack.c.l.b16 %v3267
      %v3340 = vunpack.c.l.b16 %v3268
      %v3341 = vunpack.c.l.b16 %v3269
      %v3342 = vunpack.c.l.b16 %v3270
      %v3343 = vunpack.c.l.b16 %v3271
      %v3344 = vunpack.c.l.b16 %v3272
      %v3345 = vunpack.c.l.b16 %v3273
      %v3346 = vunpack.c.l.b16 %v3274
      %v3347 = vunpack.c.l.b16 %v3275
      %v3348 = vunpack.c.l.b16 %v3276
      %v3349 = vunpack.c.l.b16 %v3277
      %v3350 = vunpack.c.l.b16 %v3278
      %v3351 = vunpack.c.l.b16 %v3279
      %v3352 = vunpack.c.l.b16 %v3280
      %v3353 = vunpack.c.l.b16 %v3281
      %v3354 = vunpack.c.l.b16 %v3282
      %v3355 = vunpack.c.l.b16 %v3283
      %v3356 = vunpack.c.l.b16 %v3284
      %v3357 = vunpack.c.l.b16 %v3285
      %v3358 = vunpack.c.l.b16 %v3286
      %v3359 = vunpack.c.l.b16 %v3287
      %v3360 = vunpack.c.l.b16 %v3288
      %v3361 = vunpack.c.l.b16 %v3289
      %v3362 = vunpack.c.l.b16 %v3290
      %v3363 = vunpack.c.l.b16 %v3291
      %v3364 = vunpack.c.l.b16 %v3292
      %v3365 = vunpack.c.l.b16 %v3293
      %v3366 = vpack.c.b16 %v3335, %v3334
      %v3367 = vpack.c.b16 %v3337, %v3336
      %v3368 = vpack.c.b16 %v3339, %v3338
      %v3369 = vpack.c.b16 %v3341, %v3340
      %v3370 = vpack.c.b16 %v3343, %v3342
      %v3371 = vpack.c.b16 %v3345, %v3344
      %v3372 = vpack.c.b16 %v3347, %v3346
      %v3373 = vpack.c.b16 %v3349, %v3348
      %v3374 = vpack.c.b16 %v3351, %v3350
      %v3375 = vpack.c.b16 %v3353, %v3352
      %v3376 = vpack.c.b16 %v3355, %v3354
      %v3377 = vpack.c.b16 %v3357, %v3356
      %v3378 = vpack.c.b16 %v3359, %v3358
      %v3379 = vpack.c.b16 %v3361, %v3360
      %v3380 = vpack.c.b16 %v3363, %v3362
      %v3381 = vpack.c.b16 %v3365, %v3364
      %3398 = vmatprep.subr.bf16.mxu0 0
      %3399 = vmatpush1.bf16.msra.mxu0 %v3373
      %3400 = vmatprep.subr.bf16.mxu0 0
      %3401 = vmatpush1.bf16.msra.mxu0 %v3372
      %3402 = vmatprep.subr.bf16.mxu0 0
      %3403 = vmatpush1.bf16.msra.mxu0 %v3371
      %3404 = vmatprep.subr.bf16.mxu0 0
      %3405 = vmatpush1.bf16.msra.mxu0 %v3370
      %3406 = vmatprep.subr.bf16.mxu0 0
      %3407 = vmatpush1.bf16.msra.mxu0 %v3369
      %3408 = vmatprep.subr.bf16.mxu0 0
      %3409 = vmatpush1.bf16.msra.mxu0 %v3368
      %3410 = vmatprep.subr.bf16.mxu0 0
      %3411 = vmatpush1.bf16.msra.mxu0 %v3367
      %3412 = vmatprep.subr.bf16.mxu0 0
      %3413 = vmatpush1.bf16.msra.mxu0 %v3366
      %3414 = vmatprep.subr.bf16.mxu0 0
      %3415 = vmatpush2.bf16.msra.mxu0 %v3381
      %3416 = vmatprep.subr.bf16.mxu0 0
      %3417 = vmatpush2.bf16.msra.mxu0 %v3380
      %3418 = vmatprep.subr.bf16.mxu0 0
      %3419 = vmatpush2.bf16.msra.mxu0 %v3379
      %3420 = vmatprep.subr.bf16.mxu0 0
      %3421 = vmatpush2.bf16.msra.mxu0 %v3378
      %3422 = vmatprep.subr.bf16.mxu0 0
      %3423 = vmatpush2.bf16.msra.mxu0 %v3377
      %3424 = vmatprep.subr.bf16.mxu0 0
      %3425 = vmatpush2.bf16.msra.mxu0 %v3376
      %3426 = vmatprep.subr.bf16.mxu0 0
      %3427 = vmatpush2.bf16.msra.mxu0 %v3375
      %3428 = vmatprep.subr.bf16.mxu0 0
      %3429 = vmatpush2.bf16.msra.mxu0 %v3374
      %3430 = vmatprep.mubr.bf16.mxu0 %v3258
      %3431 = vmatmul.mubr.bf16.gmra.mxu0 %v3257
      %v3432 = vpop.f32.mrf.mxu0
      %v3433 = vadd.f32 %v3300, %v3432
      %v3434 = vpop.f32.mrf.mxu0
      %v3435 = vpop.f32.mrf.mxu0
      %v3436 = vadd.f32 %v3300, %v3435
      %v3437 = vpop.f32.mrf.mxu0
      %3438 = vmatprep.mubr.bf16.mxu0 %v3260
      %3439 = vmatmul.mubr.bf16.gmra.mxu0 %v3259
      %v3440 = vpop.f32.mrf.mxu0
      %v3441 = vadd.f32 %v3300, %v3440
      %v3442 = vpop.f32.mrf.mxu0
      %v3443 = vpop.f32.mrf.mxu0
      %v3444 = vadd.f32 %v3300, %v3443
      %v3445 = vpop.f32.mrf.mxu0
      %3446 = vdwg.mxu0
      %v3447 = vadd.f32 %v3433, %v3016
      %v3448 = vadd.f32 %v3436, %v3017
      %v3449 = vadd.f32 %v3441, %v3018
      %v3450 = vadd.f32 %v3444, %v3019
      %s3451 = scalar_lea.vmem %s14, 1
      %v3452 = vld [vmem:[%s3451] sm:$0x1]
      %s3453 = scalar_lea.vmem %s15, 1
      %v3454 = vld [vmem:[%s3453] sm:$0x1]
      %3455 = vadd.xlane.f32.xlu0 %v3447
      %v3456 = vpop.xlane.xlu0 %3455
      %3457 = vadd.xlane.f32.xlu0 %v3448
      %v3458 = vpop.xlane.xlu0 %3457
      %3459 = vadd.xlane.f32.xlu0 %v3449
      %v3460 = vpop.xlane.xlu0 %3459
      %3461 = vadd.xlane.f32.xlu0 %v3450
      %v3462 = vpop.xlane.xlu0 %3461
      %v3463 = vmul.f32 %v3456, %v674
      %v3464 = vmul.f32 %v3458, %v674
      %v3465 = vmul.f32 %v3460, %v674
      %v3466 = vmul.f32 %v3462, %v674
      %v3467 = vsub.f32 %v3447, %v3463
      %v3468 = vsub.f32 %v3448, %v3464
      %v3469 = vsub.f32 %v3449, %v3465
      %v3470 = vsub.f32 %v3450, %v3466
      %v3471 = vmul.f32 %v3467, %v3467
      %v3472 = vmul.f32 %v3468, %v3468
      %v3473 = vmul.f32 %v3469, %v3469
      %v3474 = vmul.f32 %v3470, %v3470
      %3475 = vadd.xlane.f32.xlu0 %v3471
      %v3476 = vpop.xlane.xlu0 %3475
      %3477 = vadd.xlane.f32.xlu0 %v3472
      %v3478 = vpop.xlane.xlu0 %3477
      %3479 = vadd.xlane.f32.xlu0 %v3473
      %v3480 = vpop.xlane.xlu0 %3479
      %3481 = vadd.xlane.f32.xlu0 %v3474
      %v3482 = vpop.xlane.xlu0 %3481
      %v3483 = vmul.f32 %v3476, %v674
      %v3484 = vmul.f32 %v3478, %v674
      %v3485 = vmul.f32 %v3480, %v674
      %v3486 = vmul.f32 %v3482, %v674
      %v3487 = vadd.f32 %v3483, 1e-12
      %v3488 = vadd.f32 %v3484, 1e-12
      %v3489 = vadd.f32 %v3485, 1e-12
      %v3490 = vadd.f32 %v3486, 1e-12
      %v3491 = vrsqrt.pop %v3487
      %v3492 = vrsqrt.pop %v3488
      %v3493 = vrsqrt.pop %v3489
      %v3494 = vrsqrt.pop %v3490
      %v3495 = vmul.f32 %v3467, %v3491
      %v3496 = vmul.f32 %v3468, %v3492
      %v3497 = vmul.f32 %v3469, %v3493
      %v3498 = vmul.f32 %v3470, %v3494
      %v3500 = vlaneseq
      %v3501 = vshrl.u32 %v3500, 7
      %v3502 = vsub.s32 0, %v3501
      %v3503 = vrot.slane %v3452, %v3502
      %v3505 = vmul.f32 %v3495, %v3503
      %v3506 = vmul.f32 %v3496, %v3503
      %v3507 = vmul.f32 %v3497, %v3503
      %v3508 = vmul.f32 %v3498, %v3503
      %v3510 = vlaneseq
      %v3511 = vshrl.u32 %v3510, 7
      %v3512 = vsub.s32 0, %v3511
      %v3513 = vrot.slane %v3454, %v3512
      %v3515 = vadd.f32 %v3505, %v3513
      %v3516 = vadd.f32 %v3506, %v3513
      %v3517 = vadd.f32 %v3507, %v3513
      %v3518 = vadd.f32 %v3508, %v3513
      %v3519 = vpack.c.bf16 %v3516, %v3515
      %v3520 = vpack.c.bf16 %v3518, %v3517
      %v3521 = vld [vmem:[%s16] sm:$0xf]
      %v3522 = vld [vmem:[%s16 + $0x4] sm:$0xf]
      %v3523 = vld [vmem:[%s16 + $0x8] sm:$0xf]
      %v3524 = vld [vmem:[%s16 + $0xc] sm:$0xf]
      %v3525 = vld [vmem:[%s16 + $0x10] sm:$0xf]
      %v3526 = vld [vmem:[%s16 + $0x14] sm:$0xf]
      %v3527 = vld [vmem:[%s16 + $0x18] sm:$0xf]
      %v3528 = vld [vmem:[%s16 + $0x1c] sm:$0xf]
      %v3529 = vld [vmem:[%s16 + $0x20] sm:$0xf]
      %v3530 = vld [vmem:[%s16 + $0x24] sm:$0xf]
      %v3531 = vld [vmem:[%s16 + $0x28] sm:$0xf]
      %v3532 = vld [vmem:[%s16 + $0x2c] sm:$0xf]
      %v3533 = vld [vmem:[%s16 + $0x30] sm:$0xf]
      %v3534 = vld [vmem:[%s16 + $0x34] sm:$0xf]
      %v3535 = vld [vmem:[%s16 + $0x38] sm:$0xf]
      %v3536 = vld [vmem:[%s16 + $0x3c] sm:$0xf]
      %v3537 = vld [vmem:[%s17] sm:$0x1]
      %v3539 = vlaneseq
      %v3540 = vshrl.u32 %v3539, 7
      %v3541 = vsub.s32 0, %v3540
      %v3542 = vrot.slane %v3537, %v3541
      %v3560 = vunpack.c.l.b16 %v3521
      %v3561 = vunpack.c.l.b16 %v3522
      %v3562 = vunpack.c.l.b16 %v3523
      %v3563 = vunpack.c.l.b16 %v3524
      %v3564 = vunpack.c.l.b16 %v3525
      %v3565 = vunpack.c.l.b16 %v3526
      %v3566 = vunpack.c.l.b16 %v3527
      %v3567 = vunpack.c.l.b16 %v3528
      %v3568 = vunpack.c.l.b16 %v3529
      %v3569 = vunpack.c.l.b16 %v3530
      %v3570 = vunpack.c.l.b16 %v3531
      %v3571 = vunpack.c.l.b16 %v3532
      %v3572 = vunpack.c.l.b16 %v3533
      %v3573 = vunpack.c.l.b16 %v3534
      %v3574 = vunpack.c.l.b16 %v3535
      %v3575 = vunpack.c.l.b16 %v3536
      %v3576 = vpack.c.b16 %v3561, %v3560
      %v3577 = vpack.c.b16 %v3563, %v3562
      %v3578 = vpack.c.b16 %v3565, %v3564
      %v3579 = vpack.c.b16 %v3567, %v3566
      %v3580 = vpack.c.b16 %v3569, %v3568
      %v3581 = vpack.c.b16 %v3571, %v3570
      %v3582 = vpack.c.b16 %v3573, %v3572
      %v3583 = vpack.c.b16 %v3575, %v3574
      %3592 = vmatprep.subr.bf16.mxu0 0
      %3593 = vmatpush1.bf16.msra.mxu0 %v3583
      %3594 = vmatprep.subr.bf16.mxu0 0
      %3595 = vmatpush1.bf16.msra.mxu0 %v3582
      %3596 = vmatprep.subr.bf16.mxu0 0
      %3597 = vmatpush1.bf16.msra.mxu0 %v3581
      %3598 = vmatprep.subr.bf16.mxu0 0
      %3599 = vmatpush1.bf16.msra.mxu0 %v3580
      %3600 = vmatprep.subr.bf16.mxu0 0
      %3601 = vmatpush1.bf16.msra.mxu0 %v3579
      %3602 = vmatprep.subr.bf16.mxu0 0
      %3603 = vmatpush1.bf16.msra.mxu0 %v3578
      %3604 = vmatprep.subr.bf16.mxu0 0
      %3605 = vmatpush1.bf16.msra.mxu0 %v3577
      %3606 = vmatprep.subr.bf16.mxu0 0
      %3607 = vmatpush1.bf16.msra.mxu0 %v3576
      %3608 = vmatprep.subr.bf16.mxu0 0
      %3609 = vmatpush2.bf16.msra.mxu0 0
      %3610 = vmatprep.subr.bf16.mxu0 0
      %3611 = vmatpush2.bf16.msra.mxu0 0
      %3612 = vmatprep.subr.bf16.mxu0 0
      %3613 = vmatpush2.bf16.msra.mxu0 0
      %3614 = vmatprep.subr.bf16.mxu0 0
      %3615 = vmatpush2.bf16.msra.mxu0 0
      %3616 = vmatprep.subr.bf16.mxu0 0
      %3617 = vmatpush2.bf16.msra.mxu0 0
      %3618 = vmatprep.subr.bf16.mxu0 0
      %3619 = vmatpush2.bf16.msra.mxu0 0
      %3620 = vmatprep.subr.bf16.mxu0 0
      %3621 = vmatpush2.bf16.msra.mxu0 0
      %3622 = vmatprep.subr.bf16.mxu0 0
      %3623 = vmatpush2.bf16.msra.mxu0 0
      %3624 = vmatprep.mubr.bf16.mxu0 0
      %3625 = vmatmul.mubr.bf16.gmra.mxu0 %v3519
      %v3626 = vpop.f32.mrf.mxu0
      %v3627 = vadd.f32 %v3542, %v3626
      %v3628 = vpop.f32.mrf.mxu0
      %v3629 = vpop.f32.mrf.mxu0
      %v3630 = vadd.f32 %v3542, %v3629
      %v3631 = vpop.f32.mrf.mxu0
      %3632 = vmatprep.mubr.bf16.mxu0 0
      %3633 = vmatmul.mubr.bf16.gmra.mxu0 %v3520
      %v3634 = vpop.f32.mrf.mxu0
      %v3635 = vadd.f32 %v3542, %v3634
      %v3636 = vpop.f32.mrf.mxu0
      %v3637 = vpop.f32.mrf.mxu0
      %v3638 = vadd.f32 %v3542, %v3637
      %v3639 = vpop.f32.mrf.mxu0
      %3640 = vdwg.mxu0
      %v3641 = vtanh.pop %v3627
      %v3642 = vtanh.pop %v3630
      %v3643 = vtanh.pop %v3635
      %v3644 = vtanh.pop %v3638
      %v3645 = vld [vmem:[%s18] sm:$0x1]
      %v3647 = vlaneseq
      %v3648 = vshrl.u32 %v3647, 7
      %v3649 = vsub.s32 0, %v3648
      %v3650 = vrot.slane %v3645, %v3649
      %v3652 = vmul.f32 %v3641, %v3650
      %v3653 = vmul.f32 %v3642, %v3650
      %v3654 = vmul.f32 %v3643, %v3650
      %v3655 = vmul.f32 %v3644, %v3650
      %3656 = vadd.xlane.f32.xlu0 %v3652
      %v3657 = vpop.xlane.xlu0 %3656
      %3658 = vadd.xlane.f32.xlu0 %v3653
      %v3659 = vpop.xlane.xlu0 %3658
      %3660 = vadd.xlane.f32.xlu0 %v3654
      %v3661 = vpop.xlane.xlu0 %3660
      %3662 = vadd.xlane.f32.xlu0 %v3655
      %v3663 = vpop.xlane.xlu0 %3662
      %v3664 = vld [vmem:[#allocation2] sm:$0x1]
      %v3666 = vlaneseq
      %v3667 = vshrl.u32 %v3666, 7
      %v3668 = vsub.s32 0, %v3667
      %v3669 = vrot.slane %v3664, %v3668
      %v3671 = vadd.f32 %v3657, %v3669
      %v3672 = vadd.f32 %v3659, %v3669
      %v3673 = vadd.f32 %v3661, %v3669
      %v3674 = vadd.f32 %v3663, %v3669
      %vm3675 = vcmask 7168
      %3676 = vst.msk [vmem:[%s653] sm:$0xff] %vm3675, %v3671
      %3677 = vst.msk [vmem:[%s653 + $0x8] sm:$0xff] %vm3675, %v3672
      %3678 = vst.msk [vmem:[%s653 + $0x10] sm:$0xff] %vm3675, %v3673
      %3679 = vst.msk [vmem:[%s653 + $0x18] sm:$0xff] %vm3675, %v3674
      %s3680 = smul.u32 4, %s33
      %p3681 = scmp.lt.s32.totalorder %s3680, 7
      %s3682 = scalar_select %p3681, %s3680, 7
      %s3683 = smul.addr %s3682, 8
      %s3684 = scalar_lea.vmem %s20, %s3683
      // Predicated region
      $region101: #{bert_pair_pro_forward.1} parent=99 // pred_check
        %p3685 = pneg %p481
      $region102: #{bert_pair_pro_forward.1} parent=99 // pred_check_branch
        %3687 = sbr.rel (%p3685) target = $region104
      $region103: #{bert_pair_pro_forward.1} parent=99 // pred_region
        %s3688 = smul.u32 4, %s33
      $region104: #{bert_pair_pro_forward.1} parent=99 // pred_fallthru
        _
    $region100: #{bert_pair_pro_forward.1} parent=5 // pred_fallthru
      _
    %p3689 = scmp.le.s32.totalorder 2, %s28
    // Predicated region
    $region105: #{bert_pair_pro_forward.1} parent=5 // pred_check
      %p3690 = pneg %p3689
    $region106: #{bert_pair_pro_forward.1} parent=5 // pred_check_branch
      %3692 = sbr.rel (%p3690) target = $region108
    $region107: #{bert_pair_pro_forward.1} parent=5 // pred_region
      %s3693 = ssub.s32 %s28, 2
      // Predicated region
      $region109: #{bert_pair_pro_forward.1} parent=107 // pred_check
        %p3694 = pneg %p487
      $region110: #{bert_pair_pro_forward.1} parent=107 // pred_check_branch
        %3696 = sbr.rel (%p3694) target = $region112
      $region111: #{bert_pair_pro_forward.1} parent=107 // pred_region
        %s3697 = smul.u32 4, %s34
        %p3698 = scmp.lt.s32.totalorder %s3697, 7
        %s3699 = scalar_select %p3698, %s3697, 7
        %s3700 = smul.addr %s3699, 8
        %s3701 = scalar_lea.vmem %s20, %s3700
      $region112: #{bert_pair_pro_forward.1} parent=107 // pred_fallthru
        _
    $region108: #{bert_pair_pro_forward.1} parent=5 // pred_fallthru
      _
  $region6: #{bert_pair_pro_forward.1} parent=0 // loop_footer
    %s32 = sadd.s32 1, %s28
  $region7: #{bert_pair_pro_forward.1} parent=0 // loop_footer_branch
    %27 = sbr.rel target = $region3
  $region8: #{bert_pair_pro_forward.1} parent=0 // loop_exit
    _

</llo_original>
